<compile_context>
chip_gen: v6e
topology: v6e:2x2x1
jax: 0.10.0
libtpu: 0.0.40
codegen_flags: <defaults>
</compile_context>

<pallas_src>
import functools

import jax
import jax.numpy as jnp
import numpy as np
from jax import lax
from jax.experimental import pallas as pl
from jax.experimental.pallas import tpu as pltpu


def _round_up(x, m):
    return (x + m - 1) // m * m


# --------------------------- wavefront (unrolled) kernel ---------------------------

def make_wavefront_kernel(num_layers, T, Bp, B, H, compute_dtype):
    """Fully unrolled wavefront kernel.

    Stacked hidden state h has shape (Bp, L*H): lanes [l*H, (l+1)*H) hold layer l's
    hidden state at its current wavefront time index.
    """
    LH = num_layers * H
    n_diag = T + num_layers - 1

    def kernel(x_ref, wih0_ref, wbig_ref, bias_ref, wout_ref, bout_ref, out_ref):
        # Off-chain batched input projection for all timesteps at once; wih0 is already
        # padded so the result lands in block-0 lanes of the stacked layout.
        xz = jnp.dot(x_ref[...], wih0_ref[...],
                     preferred_element_type=jnp.float32)            # (T*Bp, LH)

        w_big = wbig_ref[...]                                        # (LH, LH)
        bias = bias_ref[...]                                         # (1, LH), fused b_ih+b_hh
        lane = lax.broadcasted_iota(jnp.int32, (Bp, LH), 1)          # hoisted once

        h = jnp.zeros((Bp, LH), compute_dtype)
        for d in range(n_diag):                                      # wavefront diagonals
            # One matmul per diagonal: recurrent (diag blocks) + inter-layer (superdiag).
            z = jnp.dot(h, w_big, preferred_element_type=jnp.float32) + bias
            if d < T:                                                # layer 0 time index d
                z = z + xz[d * Bp:(d + 1) * Bp, :]
            new_h = jnp.tanh(z).astype(compute_dtype)

            # Layer l is active at this diagonal iff 0 <= d - l < T (static per d).
            lo = max(0, d - T + 1)
            hi = min(num_layers - 1, d)
            if lo == 0 and hi == num_layers - 1:
                h = new_h                                            # all layers active
            else:
                mask = (lane >= lo * H) & (lane < (hi + 1) * H)
                h = jnp.where(mask, new_h, h)                        # freeze inactive blocks

        # wout_big has zero rows for layers 0..L-2, so frozen/garbage blocks contribute 0.
        out = jnp.dot(h, wout_ref[...], preferred_element_type=jnp.float32) + bout_ref[...]
        out_ref[...] = out[:B, :].astype(out_ref.dtype)

    return kernel


# ------------------------------ fallback (large T) kernel ------------------------------

def make_fallback_kernel(num_layers, T, compute_dtype):
    """Layer-by-layer fori_loop over time; inter-layer activations in a VMEM scratch."""
    n_in = 1 + 3 * num_layers + 2  # x, (wihT, whhT, bias)*L, woutT, bout

    def kernel(*refs):
        x_ref = refs[0]                                   # (T, B, I)
        layer_refs = refs[1:1 + 3 * num_layers]
        woutT_ref = refs[1 + 3 * num_layers]              # (H, O)
        bout_ref = refs[2 + 3 * num_layers]               # (1, O)
        out_ref = refs[n_in]                              # (B, O)
        seq_ref = refs[n_in + 1] if num_layers > 1 else None   # (T, B, H) scratch

        B = x_ref.shape[1]
        H = layer_refs[1].shape[0]

        h = jnp.zeros((B, H), compute_dtype)
        for l in range(num_layers):
            wihT = layer_refs[3 * l][...]
            whhT = layer_refs[3 * l + 1][...]
            bias = layer_refs[3 * l + 2][...]             # (1, H), loaded once per layer
            last = (l == num_layers - 1)

            def step(t, h, _l=l, _wihT=wihT, _whhT=whhT, _b=bias, _last=last):
                inp = x_ref[t] if _l == 0 else seq_ref[t]
                z = (jnp.dot(inp, _wihT, preferred_element_type=jnp.float32)
                     + jnp.dot(h, _whhT, preferred_element_type=jnp.float32)
                     + _b)
                h_new = jnp.tanh(z).astype(compute_dtype)
                if not _last:                             # top layer's sequence not needed
                    seq_ref[t] = h_new
                return h_new

            # unroll lets the LLO scheduler overlap MXU push/pop, adds, tanh and stores.
            h = lax.fori_loop(0, T, step, jnp.zeros((B, H), compute_dtype), unroll=4)

        out = jnp.dot(h, woutT_ref[...], preferred_element_type=jnp.float32) + bout_ref[...]
        out_ref[...] = out.astype(out_ref.dtype)

    return kernel


# ------------------------------------ wrapper ------------------------------------

def make_rnn_forward(params, *, num_inputs, num_outputs, hidden_size, num_layers,
                     compute_dtype=jnp.float32, unroll_threshold=64):
    """Packs weights ONCE into kernel-ready layouts and returns a jitted forward(x)."""
    H, L = hidden_size, num_layers
    LH = L * H

    # ---- one-time packing for the wavefront kernel (done outside the per-call path) ----
    w_big = np.zeros((LH, LH), np.float32)
    bias_stack = np.zeros((1, LH), np.float32)
    for l in range(L):
        w_big[l * H:(l + 1) * H, l * H:(l + 1) * H] = np.asarray(params[f'w_hh_{l}']).T
        if l >= 1:  # inter-layer input projection on the super-diagonal
            w_big[(l - 1) * H:l * H, l * H:(l + 1) * H] = np.asarray(params[f'w_ih_{l}']).T
        bias_stack[0, l * H:(l + 1) * H] = np.asarray(params[f'b_ih_{l}'] + params[f'b_hh_{l}'])
    wih0_pad = np.zeros((num_inputs, LH), np.float32)
    wih0_pad[:, :H] = np.asarray(params['w_ih_0']).T
    wout_big = np.zeros((LH, num_outputs), np.float32)
    wout_big[(L - 1) * H:, :] = np.asarray(params['w_out']).T
    bout = np.asarray(params['b_out'])[None, :].astype(np.float32)

    wave_args = (jnp.asarray(wih0_pad, compute_dtype),
                 jnp.asarray(w_big, compute_dtype),
                 jnp.asarray(bias_stack, jnp.float32),
                 jnp.asarray(wout_big, compute_dtype),
                 jnp.asarray(bout, jnp.float32))

    # ---- one-time packing for the fallback kernel ----
    layer_args = []
    for l in range(L):
        layer_args.append(jnp.asarray(np.asarray(params[f'w_ih_{l}']).T, compute_dtype))
        layer_args.append(jnp.asarray(np.asarray(params[f'w_hh_{l}']).T, compute_dtype))
        layer_args.append(jnp.asarray(
            np.asarray(params[f'b_ih_{l}'] + params[f'b_hh_{l}'])[None, :], np.float32))
    layer_args.append(jnp.asarray(np.asarray(params['w_out']).T, compute_dtype))
    layer_args.append(jnp.asarray(np.asarray(params['b_out'])[None, :], np.float32))
    layer_args = tuple(layer_args)

    vmem_spec = pl.BlockSpec(memory_space=pltpu.MemorySpace.VMEM)

    def forward(x):
        B, T, I = x.shape
        x_tm = jnp.transpose(x, (1, 0, 2)).astype(compute_dtype)   # (T, B, I) time-major

        if T <= unroll_threshold:
            # Pad batch to a multiple of 8 sublanes so per-diagonal row slices are tile
            # aligned; padded rows are row-independent and sliced off at the end.
            Bp = _round_up(B, 8)
            if Bp != B:
                x_tm = jnp.pad(x_tm, ((0, 0), (0, Bp - B), (0, 0)))
            x_flat = x_tm.reshape(T * Bp, I)
            kernel = make_wavefront_kernel(L, T, Bp, B, H, compute_dtype)
            return pl.pallas_call(
                kernel,
                out_shape=jax.ShapeDtypeStruct((B, num_outputs), jnp.float32),
                in_specs=[vmem_spec] * (1 + len(wave_args)),
                out_specs=vmem_spec,
            )(x_flat, *wave_args)

        # -------- fallback: large T, fori_loop over time --------
        kernel = make_fallback_kernel(L, T, compute_dtype)
        scratch = [pltpu.VMEM((T, B, H), compute_dtype)] if L > 1 else []
        itemsize = jnp.dtype(compute_dtype).itemsize
        rows = _round_up(B, 8)
        vmem_est = (T * rows * _round_up(I, 128) * itemsize            # resident x
                    + T * rows * _round_up(H, 128) * itemsize          # inter-layer scratch
                    + (4 << 20))                                       # headroom
        vmem_limit = int(min(max(vmem_est * 2, 32 << 20), 64 << 20))   # v7x physical = 64 MiB
        # TODO(synk): if vmem_est exceeds ~64 MiB, switch to a grid over T-chunks with
        #             BlockSpec pipelining and a persistent carried hidden state.
        return pl.pallas_call(
            kernel,
            out_shape=jax.ShapeDtypeStruct((B, num_outputs), jnp.float32),
            in_specs=[vmem_spec] * (1 + len(layer_args)),
            out_specs=vmem_spec,
            scratch_shapes=scratch,
            compiler_params=pltpu.CompilerParams(vmem_limit_bytes=vmem_limit),
        )(x_tm, *layer_args)

    return jax.jit(forward)


# ------------------------------ reference & init ------------------------------

def rnn_reference(x, params, *, num_layers, hidden_size):
    """Pure-JAX reference matching torch.nn.RNN(batch_first=True) + Linear."""
    B, T, _ = x.shape
    layer_in = x.astype(jnp.float32)
    for l in range(num_layers):
        w_ih, w_hh = params[f'w_ih_{l}'], params[f'w_hh_{l}']
        b_ih, b_hh = params[f'b_ih_{l}'], params[f'b_hh_{l}']
        h = jnp.zeros((B, hidden_size), jnp.float32)
        outs = []
        for t in range(T):
            h = jnp.tanh(layer_in[:, t, :] @ w_ih.T + b_ih + h @ w_hh.T + b_hh)
            outs.append(h)
        layer_in = jnp.stack(outs, axis=1)
    return layer_in[:, -1, :] @ params['w_out'].T + params['b_out']


def init_params(key, *, num_inputs, num_outputs, hidden_size, num_layers):
    """Deterministic init mimicking torch.nn.RNN / Linear: U(-1/sqrt(H), 1/sqrt(H))."""
    k = 1.0 / np.sqrt(hidden_size)
    params = {}
    for l in range(num_layers):
        in_dim = num_inputs if l == 0 else hidden_size
        key, k1, k2, k3, k4 = jax.random.split(key, 5)
        params[f'w_ih_{l}'] = jax.random.uniform(k1, (hidden_size, in_dim), jnp.float32, -k, k)
        params[f'w_hh_{l}'] = jax.random.uniform(k2, (hidden_size, hidden_size), jnp.float32, -k, k)
        params[f'b_ih_{l}'] = jax.random.uniform(k3, (hidden_size,), jnp.float32, -k, k)
        params[f'b_hh_{l}'] = jax.random.uniform(k4, (hidden_size,), jnp.float32, -k, k)
    key, k1, k2 = jax.random.split(key, 3)
    params['w_out'] = jax.random.uniform(k1, (num_outputs, hidden_size), jnp.float32, -k, k)
    params['b_out'] = jax.random.uniform(k2, (num_outputs,), jnp.float32, -k, k)
    return params


if __name__ == "__main__":
    # f32-accurate matmuls in the pure-JAX reference (kernel dots accumulate in f32).
    jax.config.update("jax_default_matmul_precision", "highest")

    # Small shapes consistent with RNNConfig (rnn_type='RNN').
    B, T = 2, 8                  # batch, sequence_length
    NUM_INPUTS = 4
    NUM_OUTPUTS = 3
    HIDDEN_SIZE = 32
    HIDDEN_LAYERS = 2

    key = jax.random.PRNGKey(0)
    key, xkey = jax.random.split(key)
    x = jax.random.normal(xkey, (B, T, NUM_INPUTS), jnp.float32)

    params = init_params(key, num_inputs=NUM_INPUTS, num_outputs=NUM_OUTPUTS,
                         hidden_size=HIDDEN_SIZE, num_layers=HIDDEN_LAYERS)

    # compute_dtype=jnp.float32 by default (review: avoid per-step bf16 casts on v5e and
    # keep f32 accuracy on the tanh recurrence); bf16 weights are opt-in on v6e/v7x.
    fwd = make_rnn_forward(params, num_inputs=NUM_INPUTS, num_outputs=NUM_OUTPUTS,
                           hidden_size=HIDDEN_SIZE, num_layers=HIDDEN_LAYERS,
                           compute_dtype=jnp.float32)

    out = jax.block_until_ready(fwd(x))

    ref = rnn_reference(x, params, num_layers=HIDDEN_LAYERS, hidden_size=HIDDEN_SIZE)
    np.testing.assert_allclose(np.asarray(out), np.asarray(ref), rtol=2e-5, atol=2e-5)

    print("KERNEL_OK")
</pallas_src>

<mosaic_0001>
module attributes {stable_mosaic.version = 11 : i64} {
  func.func @kernel(%arg0: memref<64x4xf32, #tpu.memory_space<vmem>>, %arg1: memref<4x64xf32, #tpu.memory_space<vmem>>, %arg2: memref<64x64xf32, #tpu.memory_space<vmem>>, %arg3: memref<1x64xf32, #tpu.memory_space<vmem>>, %arg4: memref<64x3xf32, #tpu.memory_space<vmem>>, %arg5: memref<1x3xf32, #tpu.memory_space<vmem>>, %arg6: memref<2x3xf32, #tpu.memory_space<vmem>>) attributes {dimension_semantics = [], scalar_prefetch = 0 : i64, scratch_operands = 0 : i64, tpu.core_type = #tpu.core_type<tc>} {
    %c0 = arith.constant 0 : index
    %c0_0 = arith.constant 0 : index
    %0 = vector.load %arg0[%c0, %c0_0] : memref<64x4xf32, #tpu.memory_space<vmem>>, vector<64x4xf32>
    %c0_1 = arith.constant 0 : index
    %c0_2 = arith.constant 0 : index
    %1 = vector.load %arg1[%c0_1, %c0_2] : memref<4x64xf32, #tpu.memory_space<vmem>>, vector<4x64xf32>
    %cst = arith.constant dense<0.000000e+00> : vector<64x64xf32>
    %2 = tpu.matmul %0, %1, %cst {dimension_numbers = #tpu.dot_dimension_numbers<[1], [0], [0], [1], [0, 0, 1, 1], [], []>, precision = #tpu.contract_precision<fp32>} : vector<64x4xf32>, vector<4x64xf32>, vector<64x64xf32> -> vector<64x64xf32>
    %c0_3 = arith.constant 0 : index
    %c0_4 = arith.constant 0 : index
    %3 = vector.load %arg2[%c0_3, %c0_4] : memref<64x64xf32, #tpu.memory_space<vmem>>, vector<64x64xf32>
    %c0_5 = arith.constant 0 : index
    %c0_6 = arith.constant 0 : index
    %4 = vector.load %arg3[%c0_5, %c0_6] : memref<1x64xf32, #tpu.memory_space<vmem>>, vector<1x64xf32>
    %5 = tpu.iota {dimensions = array<i32: 1>} : vector<8x64xi32>
    %cst_7 = arith.constant 0.000000e+00 : f32
    %6 = vector.broadcast %cst_7 : f32 to vector<8x64xf32>
    %cst_8 = arith.constant dense<0.000000e+00> : vector<8x64xf32>
    %7 = tpu.matmul %6, %3, %cst_8 {dimension_numbers = #tpu.dot_dimension_numbers<[1], [0], [0], [1], [0, 0, 1, 1], [], []>, precision = #tpu.contract_precision<fp32>} : vector<8x64xf32>, vector<64x64xf32>, vector<8x64xf32> -> vector<8x64xf32>
    %8 = vector.broadcast %4 : vector<1x64xf32> to vector<8x64xf32>
    %9 = arith.addf %7, %8 : vector<8x64xf32>
    %10 = vector.extract_strided_slice %2 {offsets = [0, 0], sizes = [8, 64], strides = [1, 1]} : vector<64x64xf32> to vector<8x64xf32>
    %11 = arith.addf %9, %10 : vector<8x64xf32>
    %12 = math.tanh %11 : vector<8x64xf32>
    %c0_i32 = arith.constant 0 : i32
    %13 = vector.broadcast %c0_i32 : i32 to vector<8x64xi32>
    %14 = arith.cmpi sge, %5, %13 : vector<8x64xi32>
    %c32_i32 = arith.constant 32 : i32
    %15 = vector.broadcast %c32_i32 : i32 to vector<8x64xi32>
    %16 = arith.cmpi slt, %5, %15 : vector<8x64xi32>
    %17 = arith.andi %14, %16 : vector<8x64xi1>
    %18 = arith.select %17, %12, %6 : vector<8x64xi1>, vector<8x64xf32>
    %cst_9 = arith.constant dense<0.000000e+00> : vector<8x64xf32>
    %19 = tpu.matmul %18, %3, %cst_9 {dimension_numbers = #tpu.dot_dimension_numbers<[1], [0], [0], [1], [0, 0, 1, 1], [], []>, precision = #tpu.contract_precision<fp32>} : vector<8x64xf32>, vector<64x64xf32>, vector<8x64xf32> -> vector<8x64xf32>
    %20 = vector.broadcast %4 : vector<1x64xf32> to vector<8x64xf32>
    %21 = arith.addf %19, %20 : vector<8x64xf32>
    %22 = vector.extract_strided_slice %2 {offsets = [8, 0], sizes = [8, 64], strides = [1, 1]} : vector<64x64xf32> to vector<8x64xf32>
    %23 = arith.addf %21, %22 : vector<8x64xf32>
    %24 = math.tanh %23 : vector<8x64xf32>
    %cst_10 = arith.constant dense<0.000000e+00> : vector<8x64xf32>
    %25 = tpu.matmul %24, %3, %cst_10 {dimension_numbers = #tpu.dot_dimension_numbers<[1], [0], [0], [1], [0, 0, 1, 1], [], []>, precision = #tpu.contract_precision<fp32>} : vector<8x64xf32>, vector<64x64xf32>, vector<8x64xf32> -> vector<8x64xf32>
    %26 = vector.broadcast %4 : vector<1x64xf32> to vector<8x64xf32>
    %27 = arith.addf %25, %26 : vector<8x64xf32>
    %28 = vector.extract_strided_slice %2 {offsets = [16, 0], sizes = [8, 64], strides = [1, 1]} : vector<64x64xf32> to vector<8x64xf32>
    %29 = arith.addf %27, %28 : vector<8x64xf32>
    %30 = math.tanh %29 : vector<8x64xf32>
    %cst_11 = arith.constant dense<0.000000e+00> : vector<8x64xf32>
    %31 = tpu.matmul %30, %3, %cst_11 {dimension_numbers = #tpu.dot_dimension_numbers<[1], [0], [0], [1], [0, 0, 1, 1], [], []>, precision = #tpu.contract_precision<fp32>} : vector<8x64xf32>, vector<64x64xf32>, vector<8x64xf32> -> vector<8x64xf32>
    %32 = vector.broadcast %4 : vector<1x64xf32> to vector<8x64xf32>
    %33 = arith.addf %31, %32 : vector<8x64xf32>
    %34 = vector.extract_strided_slice %2 {offsets = [24, 0], sizes = [8, 64], strides = [1, 1]} : vector<64x64xf32> to vector<8x64xf32>
    %35 = arith.addf %33, %34 : vector<8x64xf32>
    %36 = math.tanh %35 : vector<8x64xf32>
    %cst_12 = arith.constant dense<0.000000e+00> : vector<8x64xf32>
    %37 = tpu.matmul %36, %3, %cst_12 {dimension_numbers = #tpu.dot_dimension_numbers<[1], [0], [0], [1], [0, 0, 1, 1], [], []>, precision = #tpu.contract_precision<fp32>} : vector<8x64xf32>, vector<64x64xf32>, vector<8x64xf32> -> vector<8x64xf32>
    %38 = vector.broadcast %4 : vector<1x64xf32> to vector<8x64xf32>
    %39 = arith.addf %37, %38 : vector<8x64xf32>
    %40 = vector.extract_strided_slice %2 {offsets = [32, 0], sizes = [8, 64], strides = [1, 1]} : vector<64x64xf32> to vector<8x64xf32>
    %41 = arith.addf %39, %40 : vector<8x64xf32>
    %42 = math.tanh %41 : vector<8x64xf32>
    %cst_13 = arith.constant dense<0.000000e+00> : vector<8x64xf32>
    %43 = tpu.matmul %42, %3, %cst_13 {dimension_numbers = #tpu.dot_dimension_numbers<[1], [0], [0], [1], [0, 0, 1, 1], [], []>, precision = #tpu.contract_precision<fp32>} : vector<8x64xf32>, vector<64x64xf32>, vector<8x64xf32> -> vector<8x64xf32>
    %44 = vector.broadcast %4 : vector<1x64xf32> to vector<8x64xf32>
    %45 = arith.addf %43, %44 : vector<8x64xf32>
    %46 = vector.extract_strided_slice %2 {offsets = [40, 0], sizes = [8, 64], strides = [1, 1]} : vector<64x64xf32> to vector<8x64xf32>
    %47 = arith.addf %45, %46 : vector<8x64xf32>
    %48 = math.tanh %47 : vector<8x64xf32>
    %cst_14 = arith.constant dense<0.000000e+00> : vector<8x64xf32>
    %49 = tpu.matmul %48, %3, %cst_14 {dimension_numbers = #tpu.dot_dimension_numbers<[1], [0], [0], [1], [0, 0, 1, 1], [], []>, precision = #tpu.contract_precision<fp32>} : vector<8x64xf32>, vector<64x64xf32>, vector<8x64xf32> -> vector<8x64xf32>
    %50 = vector.broadcast %4 : vector<1x64xf32> to vector<8x64xf32>
    %51 = arith.addf %49, %50 : vector<8x64xf32>
    %52 = vector.extract_strided_slice %2 {offsets = [48, 0], sizes = [8, 64], strides = [1, 1]} : vector<64x64xf32> to vector<8x64xf32>
    %53 = arith.addf %51, %52 : vector<8x64xf32>
    %54 = math.tanh %53 : vector<8x64xf32>
    %cst_15 = arith.constant dense<0.000000e+00> : vector<8x64xf32>
    %55 = tpu.matmul %54, %3, %cst_15 {dimension_numbers = #tpu.dot_dimension_numbers<[1], [0], [0], [1], [0, 0, 1, 1], [], []>, precision = #tpu.contract_precision<fp32>} : vector<8x64xf32>, vector<64x64xf32>, vector<8x64xf32> -> vector<8x64xf32>
    %56 = vector.broadcast %4 : vector<1x64xf32> to vector<8x64xf32>
    %57 = arith.addf %55, %56 : vector<8x64xf32>
    %58 = vector.extract_strided_slice %2 {offsets = [56, 0], sizes = [8, 64], strides = [1, 1]} : vector<64x64xf32> to vector<8x64xf32>
    %59 = arith.addf %57, %58 : vector<8x64xf32>
    %60 = math.tanh %59 : vector<8x64xf32>
    %cst_16 = arith.constant dense<0.000000e+00> : vector<8x64xf32>
    %61 = tpu.matmul %60, %3, %cst_16 {dimension_numbers = #tpu.dot_dimension_numbers<[1], [0], [0], [1], [0, 0, 1, 1], [], []>, precision = #tpu.contract_precision<fp32>} : vector<8x64xf32>, vector<64x64xf32>, vector<8x64xf32> -> vector<8x64xf32>
    %62 = vector.broadcast %4 : vector<1x64xf32> to vector<8x64xf32>
    %63 = arith.addf %61, %62 : vector<8x64xf32>
    %64 = math.tanh %63 : vector<8x64xf32>
    %c32_i32_17 = arith.constant 32 : i32
    %65 = vector.broadcast %c32_i32_17 : i32 to vector<8x64xi32>
    %66 = arith.cmpi sge, %5, %65 : vector<8x64xi32>
    %c64_i32 = arith.constant 64 : i32
    %67 = vector.broadcast %c64_i32 : i32 to vector<8x64xi32>
    %68 = arith.cmpi slt, %5, %67 : vector<8x64xi32>
    %69 = arith.andi %66, %68 : vector<8x64xi1>
    %70 = arith.select %69, %64, %60 : vector<8x64xi1>, vector<8x64xf32>
    %c0_18 = arith.constant 0 : index
    %c0_19 = arith.constant 0 : index
    %71 = vector.load %arg4[%c0_18, %c0_19] : memref<64x3xf32, #tpu.memory_space<vmem>>, vector<64x3xf32>
    %cst_20 = arith.constant dense<0.000000e+00> : vector<8x3xf32>
    %72 = tpu.matmul %70, %71, %cst_20 {dimension_numbers = #tpu.dot_dimension_numbers<[1], [0], [0], [1], [0, 0, 1, 1], [], []>, precision = #tpu.contract_precision<fp32>} : vector<8x64xf32>, vector<64x3xf32>, vector<8x3xf32> -> vector<8x3xf32>
    %c0_21 = arith.constant 0 : index
    %c0_22 = arith.constant 0 : index
    %73 = vector.load %arg5[%c0_21, %c0_22] : memref<1x3xf32, #tpu.memory_space<vmem>>, vector<1x3xf32>
    %74 = vector.broadcast %73 : vector<1x3xf32> to vector<8x3xf32>
    %75 = arith.addf %72, %74 : vector<8x3xf32>
    %76 = vector.extract_strided_slice %75 {offsets = [0, 0], sizes = [2, 3], strides = [1, 1]} : vector<8x3xf32> to vector<2x3xf32>
    %c0_23 = arith.constant 0 : index
    %c0_24 = arith.constant 0 : index
    %77 = vector.load %arg6[%c0_23, %c0_24] : memref<2x3xf32, #tpu.memory_space<vmem>>, vector<2x3xf32>
    tpu.vector_store %arg6[%c0_23, %c0_24], %76 {strides = array<i32>} : memref<2x3xf32, #tpu.memory_space<vmem>>, vector<2x3xf32>,
    return
  }
}

</mosaic_0001>

<llo_original>
// kernel: forward.1
$region0: #{forward.1}
  #allocation0 [shape = 'u32[]', space=smem, size = 0x4, offset = 0x4, fixed_abs, tag = 'smem constant byte address 0x4 - core index']
  #allocation1 [shape = 'u32[144,128]{1,0:T(1,128)}', space=vmem, size = 0x12000, scoped, tag = 'internal scratch']
  %s0 = inlined_call_operand.vmem [shape: f32[64,4], index: 0, kind: input, shape index: {}]
  %s1 = inlined_call_operand.vmem [shape: f32[4,64], index: 1, kind: input, shape index: {}]
  %s2 = inlined_call_operand.hbm [shape: f32[64,64], index: 2, kind: input, shape index: {}]
  %s3 = inlined_call_operand.vmem [shape: f32[1,64], index: 3, kind: input, shape index: {}]
  %s4 = inlined_call_operand.vmem [shape: f32[64,3], index: 4, kind: input, shape index: {}]
  %s5 = inlined_call_operand.vmem [shape: f32[1,3], index: 5, kind: input, shape index: {}]
  %s6 = inlined_call_operand.hbm [shape: f32[2,3], index: 6, kind: output, shape index: {}]
  %s7 = sld [smem:[#allocation0]]
  $region38: #{forward.1} parent=0
    _
  %s9 = ssub.s32 1, %s7
  %s10 = scalar_select 0, %s9, %s7
  $region1: #{forward.1} parent=0
    #allocation2 [shape = 'u8[32768]{0}', space=vmem, size = 0x8000, scoped, tag = 'input window, operand 2, single buffered']
    #allocation3 [shape = 's32[1]{0}', space=sflag, size = 0x4, scoped, tag = 'scoped memory for forward.1']
    #allocation4 [shape = 's32[1]{0}', space=sflag, size = 0x4, scoped, tag = 'scoped memory for forward.1']
    #allocation5 [shape = 'u8[1024]{0}', space=vmem, size = 0x400, scoped, tag = 'output window, operand 0, single buffered']
    %11 = vsyncpa [#allocation3], 0
    %12 = vsyncpa [#allocation4], 0
    // Predicated region
    $region2: #{forward.1} parent=1 // pred_check
      _
    $region3: #{forward.1} parent=1 // pred_check_branch
      %14 = sbr.rel (0) target = $region5
    $region4: #{forward.1} parent=1 // pred_region
      _
    $region5: #{forward.1} parent=1 // pred_fallthru
      _
    // Predicated region
    $region6: #{forward.1} parent=1 // pred_check
      _
    $region7: #{forward.1} parent=1 // pred_check_branch
      %16 = sbr.rel (0) target = $region9
    $region8: #{forward.1} parent=1 // pred_region
      _
    $region9: #{forward.1} parent=1 // pred_fallthru
      _
    // Predicated region
    $region10: #{forward.1} parent=1 // pred_check
      _
    $region11: #{forward.1} parent=1 // pred_check_branch
      %18 = sbr.rel (0) target = $region13
    $region12: #{forward.1} parent=1 // pred_region
      %s20 = ssub.s32 1024, 1024
      %21 = vsyncadd [#allocation3], %s20
      %s22 = sshll.u32 [#allocation2], 4
      %s23 = int_to_ptr.vmem [resolvable:$true] %s22
      %28 = dma.hbm_to_vmem [thread:$0]  %s2, 1024, %s23, [#allocation3], 128, 128, 8
    $region13: #{forward.1} parent=1 // pred_fallthru
      _
    // Predicated region
    $region14: #{forward.1} parent=1 // pred_check
      _
    $region15: #{forward.1} parent=1 // pred_check_branch
      %30 = sbr.rel (0) target = $region17
    $region16: #{forward.1} parent=1 // pred_region
      _
    $region17: #{forward.1} parent=1 // pred_fallthru
      _
    // Predicated region
    $region18: #{forward.1} parent=1 // pred_check
      _
    $region19: #{forward.1} parent=1 // pred_check_branch
      %32 = sbr.rel (0) target = $region21
    $region20: #{forward.1} parent=1 // pred_region
      _
    $region21: #{forward.1} parent=1 // pred_fallthru
      _
    // Predicated region
    $region22: #{forward.1} parent=1 // pred_check
      _
    $region23: #{forward.1} parent=1 // pred_check_branch
      %34 = sbr.rel (0) target = $region25
    $region24: #{forward.1} parent=1 // pred_region
      _
    $region25: #{forward.1} parent=1 // pred_fallthru
      _
    // Predicated region
    $region26: #{forward.1} parent=1 // pred_check
      _
    $region27: #{forward.1} parent=1 // pred_check_branch
      %36 = sbr.rel (0) target = $region29
    $region28: #{forward.1} parent=1 // pred_region
      %37 = dma.done [#allocation3], 1024
    $region29: #{forward.1} parent=1 // pred_fallthru
      _
    %v38 = vld [vmem:[%s0] sm:$0xff]
    %v39 = vld [vmem:[%s0 + $0x8] sm:$0xff]
    %v40 = vld [vmem:[%s0 + $0x10] sm:$0xff]
    %v41 = vld [vmem:[%s0 + $0x18] sm:$0xff]
    %v42 = vld [vmem:[%s0 + $0x20] sm:$0xff]
    %v43 = vld [vmem:[%s0 + $0x28] sm:$0xff]
    %v44 = vld [vmem:[%s0 + $0x30] sm:$0xff]
    %v45 = vld [vmem:[%s0 + $0x38] sm:$0xff]
    %v46 = vld [vmem:[%s1] sm:$0xf]
    %vm47 = vcmask 31744
    %v49 = vsel %vm47, %v38, 0
    %v52 = vsel %vm47, %v39, 0
    %v55 = vsel %vm47, %v40, 0
    %v58 = vsel %vm47, %v41, 0
    %v61 = vsel %vm47, %v42, 0
    %v64 = vsel %vm47, %v43, 0
    %v67 = vsel %vm47, %v44, 0
    %v70 = vsel %vm47, %v45, 0
    %vm72 = vcmask 1043456
    %v74 = vsel %vm72, %v46, 0
    %76 = vmatprep.subr.mxu0 0.0
    %77 = vmatpush1.msra.mxu0 0.0
    %78 = vmatprep.subr.mxu0 0.0
    %79 = vmatpush1.msra.mxu0 0.0
    %80 = vmatprep.subr.mxu0 0.0
    %81 = vmatpush1.msra.mxu0 0.0
    %82 = vmatprep.subr.mxu0 0.0
    %83 = vmatpush1.msra.mxu0 0.0
    %84 = vmatprep.subr.mxu0 0.0
    %85 = vmatpush1.msra.mxu0 0.0
    %86 = vmatprep.subr.mxu0 0.0
    %87 = vmatpush1.msra.mxu0 0.0
    %88 = vmatprep.subr.mxu0 0.0
    %89 = vmatpush1.msra.mxu0 0.0
    %90 = vmatprep.subr.mxu0 0.0
    %91 = vmatpush1.msra.mxu0 0.0
    %92 = vmatprep.subr.mxu0 0.0
    %93 = vmatpush1.msra.mxu0 0.0
    %94 = vmatprep.subr.mxu0 0.0
    %95 = vmatpush1.msra.mxu0 0.0
    %96 = vmatprep.subr.mxu0 0.0
    %97 = vmatpush1.msra.mxu0 0.0
    %98 = vmatprep.subr.mxu0 0.0
    %99 = vmatpush1.msra.mxu0 0.0
    %100 = vmatprep.subr.mxu0 0.0
    %101 = vmatpush1.msra.mxu0 0.0
    %102 = vmatprep.subr.mxu0 0.0
    %103 = vmatpush1.msra.mxu0 0.0
    %104 = vmatprep.subr.mxu0 0.0
    %105 = vmatpush1.msra.mxu0 0.0
    %106 = vmatprep.subr.mxu0 0.0
    %v107 = vand.u32 %v74, 4294901760
    %108 = vmatpush1.msra.mxu0 %v107
    %109 = vmatprep.subr.mxu0 0.0
    %110 = vmatpush2.msra.mxu0 0.0
    %111 = vmatprep.subr.mxu0 0.0
    %112 = vmatpush2.msra.mxu0 0.0
    %113 = vmatprep.subr.mxu0 0.0
    %114 = vmatpush2.msra.mxu0 0.0
    %115 = vmatprep.subr.mxu0 0.0
    %116 = vmatpush2.msra.mxu0 0.0
    %117 = vmatprep.subr.mxu0 0.0
    %118 = vmatpush2.msra.mxu0 0.0
    %119 = vmatprep.subr.mxu0 0.0
    %120 = vmatpush2.msra.mxu0 0.0
    %121 = vmatprep.subr.mxu0 0.0
    %122 = vmatpush2.msra.mxu0 0.0
    %123 = vmatprep.subr.mxu0 0.0
    %124 = vmatpush2.msra.mxu0 0.0
    %125 = vmatprep.subr.mxu0 0.0
    %126 = vmatpush2.msra.mxu0 0.0
    %127 = vmatprep.subr.mxu0 0.0
    %128 = vmatpush2.msra.mxu0 0.0
    %129 = vmatprep.subr.mxu0 0.0
    %130 = vmatpush2.msra.mxu0 0.0
    %131 = vmatprep.subr.mxu0 0.0
    %132 = vmatpush2.msra.mxu0 0.0
    %133 = vmatprep.subr.mxu0 0.0
    %134 = vmatpush2.msra.mxu0 0.0
    %135 = vmatprep.subr.mxu0 0.0
    %136 = vmatpush2.msra.mxu0 0.0
    %137 = vmatprep.subr.mxu0 0.0
    %138 = vmatpush2.msra.mxu0 0.0
    %139 = vmatprep.subr.mxu0 0.0
    %140 = vmatpush2.msra.mxu0 0.0
    %141 = vmatprep.mubr.f32.mxu0 0.0
    %v142 = vand.u32 %v49, 4294901760
    %v143 = vsub.f32 %v49, %v142
    %v144 = vand.u32 %v143, 4294901760
    %v145 = vsub.f32 %v143, %v144
    %v146 = vand.u32 %v145, 4294901760
    %147 = vmatmul.mubr.f32.gmra.mxu0 %v146
    %v148 = vpop.f32.mrf.mxu0
    %v149 = vadd.f32 0.0, %v148
    %v150 = vpop.f32.mrf.mxu0
    %151 = vmatprep.mubr.f32.mxu0 0.0
    %v152 = vand.u32 %v52, 4294901760
    %v153 = vsub.f32 %v52, %v152
    %v154 = vand.u32 %v153, 4294901760
    %v155 = vsub.f32 %v153, %v154
    %v156 = vand.u32 %v155, 4294901760
    %157 = vmatmul.mubr.f32.gmra.mxu0 %v156
    %v158 = vpop.f32.mrf.mxu0
    %v159 = vadd.f32 0.0, %v158
    %v160 = vpop.f32.mrf.mxu0
    %161 = vmatprep.mubr.f32.mxu0 0.0
    %v162 = vand.u32 %v55, 4294901760
    %v163 = vsub.f32 %v55, %v162
    %v164 = vand.u32 %v163, 4294901760
    %v165 = vsub.f32 %v163, %v164
    %v166 = vand.u32 %v165, 4294901760
    %167 = vmatmul.mubr.f32.gmra.mxu0 %v166
    %v168 = vpop.f32.mrf.mxu0
    %v169 = vadd.f32 0.0, %v168
    %v170 = vpop.f32.mrf.mxu0
    %171 = vmatprep.mubr.f32.mxu0 0.0
    %v172 = vand.u32 %v58, 4294901760
    %v173 = vsub.f32 %v58, %v172
    %v174 = vand.u32 %v173, 4294901760
    %v175 = vsub.f32 %v173, %v174
    %v176 = vand.u32 %v175, 4294901760
    %177 = vmatmul.mubr.f32.gmra.mxu0 %v176
    %v178 = vpop.f32.mrf.mxu0
    %v179 = vadd.f32 0.0, %v178
    %v180 = vpop.f32.mrf.mxu0
    %181 = vmatprep.mubr.f32.mxu0 0.0
    %v182 = vand.u32 %v61, 4294901760
    %v183 = vsub.f32 %v61, %v182
    %v184 = vand.u32 %v183, 4294901760
    %v185 = vsub.f32 %v183, %v184
    %v186 = vand.u32 %v185, 4294901760
    %187 = vmatmul.mubr.f32.gmra.mxu0 %v186
    %v188 = vpop.f32.mrf.mxu0
    %v189 = vadd.f32 0.0, %v188
    %v190 = vpop.f32.mrf.mxu0
    %191 = vmatprep.mubr.f32.mxu0 0.0
    %v192 = vand.u32 %v64, 4294901760
    %v193 = vsub.f32 %v64, %v192
    %v194 = vand.u32 %v193, 4294901760
    %v195 = vsub.f32 %v193, %v194
    %v196 = vand.u32 %v195, 4294901760
    %197 = vmatmul.mubr.f32.gmra.mxu0 %v196
    %v198 = vpop.f32.mrf.mxu0
    %v199 = vadd.f32 0.0, %v198
    %v200 = vpop.f32.mrf.mxu0
    %201 = vmatprep.mubr.f32.mxu0 0.0
    %v202 = vand.u32 %v67, 4294901760
    %v203 = vsub.f32 %v67, %v202
    %v204 = vand.u32 %v203, 4294901760
    %v205 = vsub.f32 %v203, %v204
    %v206 = vand.u32 %v205, 4294901760
    %207 = vmatmul.mubr.f32.gmra.mxu0 %v206
    %v208 = vpop.f32.mrf.mxu0
    %v209 = vadd.f32 0.0, %v208
    %v210 = vpop.f32.mrf.mxu0
    %211 = vmatprep.mubr.f32.mxu0 0.0
    %v212 = vand.u32 %v70, 4294901760
    %v213 = vsub.f32 %v70, %v212
    %v214 = vand.u32 %v213, 4294901760
    %v215 = vsub.f32 %v213, %v214
    %v216 = vand.u32 %v215, 4294901760
    %217 = vmatmul.mubr.f32.gmra.mxu0 %v216
    %v218 = vpop.f32.mrf.mxu0
    %v219 = vadd.f32 0.0, %v218
    %v220 = vpop.f32.mrf.mxu0
    %221 = vdwg.mxu0
    %222 = vmatprep.subr.mxu0 0.0
    %223 = vmatpush1.msra.mxu0 0.0
    %224 = vmatprep.subr.mxu0 0.0
    %225 = vmatpush1.msra.mxu0 0.0
    %226 = vmatprep.subr.mxu0 0.0
    %227 = vmatpush1.msra.mxu0 0.0
    %228 = vmatprep.subr.mxu0 0.0
    %229 = vmatpush1.msra.mxu0 0.0
    %230 = vmatprep.subr.mxu0 0.0
    %231 = vmatpush1.msra.mxu0 0.0
    %232 = vmatprep.subr.mxu0 0.0
    %233 = vmatpush1.msra.mxu0 0.0
    %234 = vmatprep.subr.mxu0 0.0
    %235 = vmatpush1.msra.mxu0 0.0
    %236 = vmatprep.subr.mxu0 0.0
    %237 = vmatpush1.msra.mxu0 0.0
    %238 = vmatprep.subr.mxu0 0.0
    %239 = vmatpush1.msra.mxu0 0.0
    %240 = vmatprep.subr.mxu0 0.0
    %241 = vmatpush1.msra.mxu0 0.0
    %242 = vmatprep.subr.mxu0 0.0
    %243 = vmatpush1.msra.mxu0 0.0
    %244 = vmatprep.subr.mxu0 0.0
    %245 = vmatpush1.msra.mxu0 0.0
    %246 = vmatprep.subr.mxu0 0.0
    %247 = vmatpush1.msra.mxu0 0.0
    %248 = vmatprep.subr.mxu0 0.0
    %249 = vmatpush1.msra.mxu0 0.0
    %250 = vmatprep.subr.mxu0 0.0
    %251 = vmatpush1.msra.mxu0 0.0
    %252 = vmatprep.subr.mxu0 0.0
    %v253 = vand.u32 %v74, 4294901760
    %v254 = vsub.f32 %v74, %v253
    %v255 = vand.u32 %v254, 4294901760
    %v256 = vsub.f32 %v254, %v255
    %v257 = vand.u32 %v256, 4294901760
    %258 = vmatpush1.msra.mxu0 %v257
    %259 = vmatprep.subr.mxu0 0.0
    %260 = vmatpush2.msra.mxu0 0.0
    %261 = vmatprep.subr.mxu0 0.0
    %262 = vmatpush2.msra.mxu0 0.0
    %263 = vmatprep.subr.mxu0 0.0
    %264 = vmatpush2.msra.mxu0 0.0
    %265 = vmatprep.subr.mxu0 0.0
    %266 = vmatpush2.msra.mxu0 0.0
    %267 = vmatprep.subr.mxu0 0.0
    %268 = vmatpush2.msra.mxu0 0.0
    %269 = vmatprep.subr.mxu0 0.0
    %270 = vmatpush2.msra.mxu0 0.0
    %271 = vmatprep.subr.mxu0 0.0
    %272 = vmatpush2.msra.mxu0 0.0
    %273 = vmatprep.subr.mxu0 0.0
    %274 = vmatpush2.msra.mxu0 0.0
    %275 = vmatprep.subr.mxu0 0.0
    %276 = vmatpush2.msra.mxu0 0.0
    %277 = vmatprep.subr.mxu0 0.0
    %278 = vmatpush2.msra.mxu0 0.0
    %279 = vmatprep.subr.mxu0 0.0
    %280 = vmatpush2.msra.mxu0 0.0
    %281 = vmatprep.subr.mxu0 0.0
    %282 = vmatpush2.msra.mxu0 0.0
    %283 = vmatprep.subr.mxu0 0.0
    %284 = vmatpush2.msra.mxu0 0.0
    %285 = vmatprep.subr.mxu0 0.0
    %286 = vmatpush2.msra.mxu0 0.0
    %287 = vmatprep.subr.mxu0 0.0
    %288 = vmatpush2.msra.mxu0 0.0
    %289 = vmatprep.subr.mxu0 0.0
    %290 = vmatpush2.msra.mxu0 0.0
    %291 = vmatprep.mubr.f32.mxu0 0.0
    %v292 = vand.u32 %v49, 4294901760
    %293 = vmatmul.mubr.f32.gmra.mxu0 %v292
    %v294 = vpop.f32.mrf.mxu0
    %v295 = vadd.f32 %v149, %v294
    %v296 = vpop.f32.mrf.mxu0
    %297 = vmatprep.mubr.f32.mxu0 0.0
    %v298 = vand.u32 %v52, 4294901760
    %299 = vmatmul.mubr.f32.gmra.mxu0 %v298
    %v300 = vpop.f32.mrf.mxu0
    %v301 = vadd.f32 %v159, %v300
    %v302 = vpop.f32.mrf.mxu0
    %303 = vmatprep.mubr.f32.mxu0 0.0
    %v304 = vand.u32 %v55, 4294901760
    %305 = vmatmul.mubr.f32.gmra.mxu0 %v304
    %v306 = vpop.f32.mrf.mxu0
    %v307 = vadd.f32 %v169, %v306
    %v308 = vpop.f32.mrf.mxu0
    %309 = vmatprep.mubr.f32.mxu0 0.0
    %v310 = vand.u32 %v58, 4294901760
    %311 = vmatmul.mubr.f32.gmra.mxu0 %v310
    %v312 = vpop.f32.mrf.mxu0
    %v313 = vadd.f32 %v179, %v312
    %v314 = vpop.f32.mrf.mxu0
    %315 = vmatprep.mubr.f32.mxu0 0.0
    %v316 = vand.u32 %v61, 4294901760
    %317 = vmatmul.mubr.f32.gmra.mxu0 %v316
    %v318 = vpop.f32.mrf.mxu0
    %v319 = vadd.f32 %v189, %v318
    %v320 = vpop.f32.mrf.mxu0
    %321 = vmatprep.mubr.f32.mxu0 0.0
    %v322 = vand.u32 %v64, 4294901760
    %323 = vmatmul.mubr.f32.gmra.mxu0 %v322
    %v324 = vpop.f32.mrf.mxu0
    %v325 = vadd.f32 %v199, %v324
    %v326 = vpop.f32.mrf.mxu0
    %327 = vmatprep.mubr.f32.mxu0 0.0
    %v328 = vand.u32 %v67, 4294901760
    %329 = vmatmul.mubr.f32.gmra.mxu0 %v328
    %v330 = vpop.f32.mrf.mxu0
    %v331 = vadd.f32 %v209, %v330
    %v332 = vpop.f32.mrf.mxu0
    %333 = vmatprep.mubr.f32.mxu0 0.0
    %v334 = vand.u32 %v70, 4294901760
    %335 = vmatmul.mubr.f32.gmra.mxu0 %v334
    %v336 = vpop.f32.mrf.mxu0
    %v337 = vadd.f32 %v219, %v336
    %v338 = vpop.f32.mrf.mxu0
    %339 = vdwg.mxu0
    %340 = vmatprep.subr.mxu0 0.0
    %341 = vmatpush1.msra.mxu0 0.0
    %342 = vmatprep.subr.mxu0 0.0
    %343 = vmatpush1.msra.mxu0 0.0
    %344 = vmatprep.subr.mxu0 0.0
    %345 = vmatpush1.msra.mxu0 0.0
    %346 = vmatprep.subr.mxu0 0.0
    %347 = vmatpush1.msra.mxu0 0.0
    %348 = vmatprep.subr.mxu0 0.0
    %349 = vmatpush1.msra.mxu0 0.0
    %350 = vmatprep.subr.mxu0 0.0
    %351 = vmatpush1.msra.mxu0 0.0
    %352 = vmatprep.subr.mxu0 0.0
    %353 = vmatpush1.msra.mxu0 0.0
    %354 = vmatprep.subr.mxu0 0.0
    %355 = vmatpush1.msra.mxu0 0.0
    %356 = vmatprep.subr.mxu0 0.0
    %357 = vmatpush1.msra.mxu0 0.0
    %358 = vmatprep.subr.mxu0 0.0
    %359 = vmatpush1.msra.mxu0 0.0
    %360 = vmatprep.subr.mxu0 0.0
    %361 = vmatpush1.msra.mxu0 0.0
    %362 = vmatprep.subr.mxu0 0.0
    %363 = vmatpush1.msra.mxu0 0.0
    %364 = vmatprep.subr.mxu0 0.0
    %365 = vmatpush1.msra.mxu0 0.0
    %366 = vmatprep.subr.mxu0 0.0
    %367 = vmatpush1.msra.mxu0 0.0
    %368 = vmatprep.subr.mxu0 0.0
    %369 = vmatpush1.msra.mxu0 0.0
    %370 = vmatprep.subr.mxu0 0.0
    %v371 = vand.u32 %v74, 4294901760
    %v372 = vsub.f32 %v74, %v371
    %373 = vmatpush1.msra.mxu0 %v372
    %374 = vmatprep.subr.mxu0 0.0
    %375 = vmatpush2.msra.mxu0 0.0
    %376 = vmatprep.subr.mxu0 0.0
    %377 = vmatpush2.msra.mxu0 0.0
    %378 = vmatprep.subr.mxu0 0.0
    %379 = vmatpush2.msra.mxu0 0.0
    %380 = vmatprep.subr.mxu0 0.0
    %381 = vmatpush2.msra.mxu0 0.0
    %382 = vmatprep.subr.mxu0 0.0
    %383 = vmatpush2.msra.mxu0 0.0
    %384 = vmatprep.subr.mxu0 0.0
    %385 = vmatpush2.msra.mxu0 0.0
    %386 = vmatprep.subr.mxu0 0.0
    %387 = vmatpush2.msra.mxu0 0.0
    %388 = vmatprep.subr.mxu0 0.0
    %389 = vmatpush2.msra.mxu0 0.0
    %390 = vmatprep.subr.mxu0 0.0
    %391 = vmatpush2.msra.mxu0 0.0
    %392 = vmatprep.subr.mxu0 0.0
    %393 = vmatpush2.msra.mxu0 0.0
    %394 = vmatprep.subr.mxu0 0.0
    %395 = vmatpush2.msra.mxu0 0.0
    %396 = vmatprep.subr.mxu0 0.0
    %397 = vmatpush2.msra.mxu0 0.0
    %398 = vmatprep.subr.mxu0 0.0
    %399 = vmatpush2.msra.mxu0 0.0
    %400 = vmatprep.subr.mxu0 0.0
    %401 = vmatpush2.msra.mxu0 0.0
    %402 = vmatprep.subr.mxu0 0.0
    %403 = vmatpush2.msra.mxu0 0.0
    %404 = vmatprep.subr.mxu0 0.0
    %405 = vmatpush2.msra.mxu0 0.0
    %406 = vmatprep.mubr.f32.mxu0 0.0
    %v407 = vand.u32 %v49, 4294901760
    %v408 = vsub.f32 %v49, %v407
    %409 = vmatmul.mubr.f32.gmra.mxu0 %v408
    %v410 = vpop.f32.mrf.mxu0
    %v411 = vadd.f32 %v295, %v410
    %v412 = vpop.f32.mrf.mxu0
    %413 = vmatprep.mubr.f32.mxu0 0.0
    %v414 = vand.u32 %v52, 4294901760
    %v415 = vsub.f32 %v52, %v414
    %416 = vmatmul.mubr.f32.gmra.mxu0 %v415
    %v417 = vpop.f32.mrf.mxu0
    %v418 = vadd.f32 %v301, %v417
    %v419 = vpop.f32.mrf.mxu0
    %420 = vmatprep.mubr.f32.mxu0 0.0
    %v421 = vand.u32 %v55, 4294901760
    %v422 = vsub.f32 %v55, %v421
    %423 = vmatmul.mubr.f32.gmra.mxu0 %v422
    %v424 = vpop.f32.mrf.mxu0
    %v425 = vadd.f32 %v307, %v424
    %v426 = vpop.f32.mrf.mxu0
    %427 = vmatprep.mubr.f32.mxu0 0.0
    %v428 = vand.u32 %v58, 4294901760
    %v429 = vsub.f32 %v58, %v428
    %430 = vmatmul.mubr.f32.gmra.mxu0 %v429
    %v431 = vpop.f32.mrf.mxu0
    %v432 = vadd.f32 %v313, %v431
    %v433 = vpop.f32.mrf.mxu0
    %434 = vmatprep.mubr.f32.mxu0 0.0
    %v435 = vand.u32 %v61, 4294901760
    %v436 = vsub.f32 %v61, %v435
    %437 = vmatmul.mubr.f32.gmra.mxu0 %v436
    %v438 = vpop.f32.mrf.mxu0
    %v439 = vadd.f32 %v319, %v438
    %v440 = vpop.f32.mrf.mxu0
    %441 = vmatprep.mubr.f32.mxu0 0.0
    %v442 = vand.u32 %v64, 4294901760
    %v443 = vsub.f32 %v64, %v442
    %444 = vmatmul.mubr.f32.gmra.mxu0 %v443
    %v445 = vpop.f32.mrf.mxu0
    %v446 = vadd.f32 %v325, %v445
    %v447 = vpop.f32.mrf.mxu0
    %448 = vmatprep.mubr.f32.mxu0 0.0
    %v449 = vand.u32 %v67, 4294901760
    %v450 = vsub.f32 %v67, %v449
    %451 = vmatmul.mubr.f32.gmra.mxu0 %v450
    %v452 = vpop.f32.mrf.mxu0
    %v453 = vadd.f32 %v331, %v452
    %v454 = vpop.f32.mrf.mxu0
    %455 = vmatprep.mubr.f32.mxu0 0.0
    %v456 = vand.u32 %v70, 4294901760
    %v457 = vsub.f32 %v70, %v456
    %458 = vmatmul.mubr.f32.gmra.mxu0 %v457
    %v459 = vpop.f32.mrf.mxu0
    %v460 = vadd.f32 %v337, %v459
    %v461 = vpop.f32.mrf.mxu0
    %462 = vdwg.mxu0
    %463 = vmatprep.subr.mxu0 0.0
    %464 = vmatpush1.msra.mxu0 0.0
    %465 = vmatprep.subr.mxu0 0.0
    %466 = vmatpush1.msra.mxu0 0.0
    %467 = vmatprep.subr.mxu0 0.0
    %468 = vmatpush1.msra.mxu0 0.0
    %469 = vmatprep.subr.mxu0 0.0
    %470 = vmatpush1.msra.mxu0 0.0
    %471 = vmatprep.subr.mxu0 0.0
    %472 = vmatpush1.msra.mxu0 0.0
    %473 = vmatprep.subr.mxu0 0.0
    %474 = vmatpush1.msra.mxu0 0.0
    %475 = vmatprep.subr.mxu0 0.0
    %476 = vmatpush1.msra.mxu0 0.0
    %477 = vmatprep.subr.mxu0 0.0
    %478 = vmatpush1.msra.mxu0 0.0
    %479 = vmatprep.subr.mxu0 0.0
    %480 = vmatpush1.msra.mxu0 0.0
    %481 = vmatprep.subr.mxu0 0.0
    %482 = vmatpush1.msra.mxu0 0.0
    %483 = vmatprep.subr.mxu0 0.0
    %484 = vmatpush1.msra.mxu0 0.0
    %485 = vmatprep.subr.mxu0 0.0
    %486 = vmatpush1.msra.mxu0 0.0
    %487 = vmatprep.subr.mxu0 0.0
    %488 = vmatpush1.msra.mxu0 0.0
    %489 = vmatprep.subr.mxu0 0.0
    %490 = vmatpush1.msra.mxu0 0.0
    %491 = vmatprep.subr.mxu0 0.0
    %492 = vmatpush1.msra.mxu0 0.0
    %493 = vmatprep.subr.mxu0 0.0
    %v494 = vand.u32 %v74, 4294901760
    %495 = vmatpush1.msra.mxu0 %v494
    %496 = vmatprep.subr.mxu0 0.0
    %497 = vmatpush2.msra.mxu0 0.0
    %498 = vmatprep.subr.mxu0 0.0
    %499 = vmatpush2.msra.mxu0 0.0
    %500 = vmatprep.subr.mxu0 0.0
    %501 = vmatpush2.msra.mxu0 0.0
    %502 = vmatprep.subr.mxu0 0.0
    %503 = vmatpush2.msra.mxu0 0.0
    %504 = vmatprep.subr.mxu0 0.0
    %505 = vmatpush2.msra.mxu0 0.0
    %506 = vmatprep.subr.mxu0 0.0
    %507 = vmatpush2.msra.mxu0 0.0
    %508 = vmatprep.subr.mxu0 0.0
    %509 = vmatpush2.msra.mxu0 0.0
    %510 = vmatprep.subr.mxu0 0.0
    %511 = vmatpush2.msra.mxu0 0.0
    %512 = vmatprep.subr.mxu0 0.0
    %513 = vmatpush2.msra.mxu0 0.0
    %514 = vmatprep.subr.mxu0 0.0
    %515 = vmatpush2.msra.mxu0 0.0
    %516 = vmatprep.subr.mxu0 0.0
    %517 = vmatpush2.msra.mxu0 0.0
    %518 = vmatprep.subr.mxu0 0.0
    %519 = vmatpush2.msra.mxu0 0.0
    %520 = vmatprep.subr.mxu0 0.0
    %521 = vmatpush2.msra.mxu0 0.0
    %522 = vmatprep.subr.mxu0 0.0
    %523 = vmatpush2.msra.mxu0 0.0
    %524 = vmatprep.subr.mxu0 0.0
    %525 = vmatpush2.msra.mxu0 0.0
    %526 = vmatprep.subr.mxu0 0.0
    %527 = vmatpush2.msra.mxu0 0.0
    %528 = vmatprep.mubr.f32.mxu0 0.0
    %v529 = vand.u32 %v49, 4294901760
    %v530 = vsub.f32 %v49, %v529
    %v531 = vand.u32 %v530, 4294901760
    %532 = vmatmul.mubr.f32.gmra.mxu0 %v531
    %v533 = vpop.f32.mrf.mxu0
    %v534 = vadd.f32 %v411, %v533
    %v535 = vpop.f32.mrf.mxu0
    %536 = vmatprep.mubr.f32.mxu0 0.0
    %v537 = vand.u32 %v52, 4294901760
    %v538 = vsub.f32 %v52, %v537
    %v539 = vand.u32 %v538, 4294901760
    %540 = vmatmul.mubr.f32.gmra.mxu0 %v539
    %v541 = vpop.f32.mrf.mxu0
    %v542 = vadd.f32 %v418, %v541
    %v543 = vpop.f32.mrf.mxu0
    %544 = vmatprep.mubr.f32.mxu0 0.0
    %v545 = vand.u32 %v55, 4294901760
    %v546 = vsub.f32 %v55, %v545
    %v547 = vand.u32 %v546, 4294901760
    %548 = vmatmul.mubr.f32.gmra.mxu0 %v547
    %v549 = vpop.f32.mrf.mxu0
    %v550 = vadd.f32 %v425, %v549
    %v551 = vpop.f32.mrf.mxu0
    %552 = vmatprep.mubr.f32.mxu0 0.0
    %v553 = vand.u32 %v58, 4294901760
    %v554 = vsub.f32 %v58, %v553
    %v555 = vand.u32 %v554, 4294901760
    %556 = vmatmul.mubr.f32.gmra.mxu0 %v555
    %v557 = vpop.f32.mrf.mxu0
    %v558 = vadd.f32 %v432, %v557
    %v559 = vpop.f32.mrf.mxu0
    %560 = vmatprep.mubr.f32.mxu0 0.0
    %v561 = vand.u32 %v61, 4294901760
    %v562 = vsub.f32 %v61, %v561
    %v563 = vand.u32 %v562, 4294901760
    %564 = vmatmul.mubr.f32.gmra.mxu0 %v563
    %v565 = vpop.f32.mrf.mxu0
    %v566 = vadd.f32 %v439, %v565
    %v567 = vpop.f32.mrf.mxu0
    %568 = vmatprep.mubr.f32.mxu0 0.0
    %v569 = vand.u32 %v64, 4294901760
    %v570 = vsub.f32 %v64, %v569
    %v571 = vand.u32 %v570, 4294901760
    %572 = vmatmul.mubr.f32.gmra.mxu0 %v571
    %v573 = vpop.f32.mrf.mxu0
    %v574 = vadd.f32 %v446, %v573
    %v575 = vpop.f32.mrf.mxu0
    %576 = vmatprep.mubr.f32.mxu0 0.0
    %v577 = vand.u32 %v67, 4294901760
    %v578 = vsub.f32 %v67, %v577
    %v579 = vand.u32 %v578, 4294901760
    %580 = vmatmul.mubr.f32.gmra.mxu0 %v579
    %v581 = vpop.f32.mrf.mxu0
    %v582 = vadd.f32 %v453, %v581
    %v583 = vpop.f32.mrf.mxu0
    %584 = vmatprep.mubr.f32.mxu0 0.0
    %v585 = vand.u32 %v70, 4294901760
    %v586 = vsub.f32 %v70, %v585
    %v587 = vand.u32 %v586, 4294901760
    %588 = vmatmul.mubr.f32.gmra.mxu0 %v587
    %v589 = vpop.f32.mrf.mxu0
    %v590 = vadd.f32 %v460, %v589
    %v591 = vpop.f32.mrf.mxu0
    %592 = vdwg.mxu0
    %593 = vmatprep.subr.mxu0 0.0
    %594 = vmatpush1.msra.mxu0 0.0
    %595 = vmatprep.subr.mxu0 0.0
    %596 = vmatpush1.msra.mxu0 0.0
    %597 = vmatprep.subr.mxu0 0.0
    %598 = vmatpush1.msra.mxu0 0.0
    %599 = vmatprep.subr.mxu0 0.0
    %600 = vmatpush1.msra.mxu0 0.0
    %601 = vmatprep.subr.mxu0 0.0
    %602 = vmatpush1.msra.mxu0 0.0
    %603 = vmatprep.subr.mxu0 0.0
    %604 = vmatpush1.msra.mxu0 0.0
    %605 = vmatprep.subr.mxu0 0.0
    %606 = vmatpush1.msra.mxu0 0.0
    %607 = vmatprep.subr.mxu0 0.0
    %608 = vmatpush1.msra.mxu0 0.0
    %609 = vmatprep.subr.mxu0 0.0
    %610 = vmatpush1.msra.mxu0 0.0
    %611 = vmatprep.subr.mxu0 0.0
    %612 = vmatpush1.msra.mxu0 0.0
    %613 = vmatprep.subr.mxu0 0.0
    %614 = vmatpush1.msra.mxu0 0.0
    %615 = vmatprep.subr.mxu0 0.0
    %616 = vmatpush1.msra.mxu0 0.0
    %617 = vmatprep.subr.mxu0 0.0
    %618 = vmatpush1.msra.mxu0 0.0
    %619 = vmatprep.subr.mxu0 0.0
    %620 = vmatpush1.msra.mxu0 0.0
    %621 = vmatprep.subr.mxu0 0.0
    %622 = vmatpush1.msra.mxu0 0.0
    %623 = vmatprep.subr.mxu0 0.0
    %v624 = vand.u32 %v74, 4294901760
    %v625 = vsub.f32 %v74, %v624
    %v626 = vand.u32 %v625, 4294901760
    %627 = vmatpush1.msra.mxu0 %v626
    %628 = vmatprep.subr.mxu0 0.0
    %629 = vmatpush2.msra.mxu0 0.0
    %630 = vmatprep.subr.mxu0 0.0
    %631 = vmatpush2.msra.mxu0 0.0
    %632 = vmatprep.subr.mxu0 0.0
    %633 = vmatpush2.msra.mxu0 0.0
    %634 = vmatprep.subr.mxu0 0.0
    %635 = vmatpush2.msra.mxu0 0.0
    %636 = vmatprep.subr.mxu0 0.0
    %637 = vmatpush2.msra.mxu0 0.0
    %638 = vmatprep.subr.mxu0 0.0
    %639 = vmatpush2.msra.mxu0 0.0
    %640 = vmatprep.subr.mxu0 0.0
    %641 = vmatpush2.msra.mxu0 0.0
    %642 = vmatprep.subr.mxu0 0.0
    %643 = vmatpush2.msra.mxu0 0.0
    %644 = vmatprep.subr.mxu0 0.0
    %645 = vmatpush2.msra.mxu0 0.0
    %646 = vmatprep.subr.mxu0 0.0
    %647 = vmatpush2.msra.mxu0 0.0
    %648 = vmatprep.subr.mxu0 0.0
    %649 = vmatpush2.msra.mxu0 0.0
    %650 = vmatprep.subr.mxu0 0.0
    %651 = vmatpush2.msra.mxu0 0.0
    %652 = vmatprep.subr.mxu0 0.0
    %653 = vmatpush2.msra.mxu0 0.0
    %654 = vmatprep.subr.mxu0 0.0
    %655 = vmatpush2.msra.mxu0 0.0
    %656 = vmatprep.subr.mxu0 0.0
    %657 = vmatpush2.msra.mxu0 0.0
    %658 = vmatprep.subr.mxu0 0.0
    %659 = vmatpush2.msra.mxu0 0.0
    %660 = vmatprep.mubr.f32.mxu0 0.0
    %v661 = vand.u32 %v49, 4294901760
    %662 = vmatmul.mubr.f32.gmra.mxu0 %v661
    %v663 = vpop.f32.mrf.mxu0
    %v664 = vadd.f32 %v534, %v663
    %v665 = vpop.f32.mrf.mxu0
    %666 = vmatprep.mubr.f32.mxu0 0.0
    %v667 = vand.u32 %v52, 4294901760
    %668 = vmatmul.mubr.f32.gmra.mxu0 %v667
    %v669 = vpop.f32.mrf.mxu0
    %v670 = vadd.f32 %v542, %v669
    %v671 = vpop.f32.mrf.mxu0
    %672 = vmatprep.mubr.f32.mxu0 0.0
    %v673 = vand.u32 %v55, 4294901760
    %674 = vmatmul.mubr.f32.gmra.mxu0 %v673
    %v675 = vpop.f32.mrf.mxu0
    %v676 = vadd.f32 %v550, %v675
    %v677 = vpop.f32.mrf.mxu0
    %678 = vmatprep.mubr.f32.mxu0 0.0
    %v679 = vand.u32 %v58, 4294901760
    %680 = vmatmul.mubr.f32.gmra.mxu0 %v679
    %v681 = vpop.f32.mrf.mxu0
    %v682 = vadd.f32 %v558, %v681
    %v683 = vpop.f32.mrf.mxu0
    %684 = vmatprep.mubr.f32.mxu0 0.0
    %v685 = vand.u32 %v61, 4294901760
    %686 = vmatmul.mubr.f32.gmra.mxu0 %v685
    %v687 = vpop.f32.mrf.mxu0
    %v688 = vadd.f32 %v566, %v687
    %v689 = vpop.f32.mrf.mxu0
    %690 = vmatprep.mubr.f32.mxu0 0.0
    %v691 = vand.u32 %v64, 4294901760
    %692 = vmatmul.mubr.f32.gmra.mxu0 %v691
    %v693 = vpop.f32.mrf.mxu0
    %v694 = vadd.f32 %v574, %v693
    %v695 = vpop.f32.mrf.mxu0
    %696 = vmatprep.mubr.f32.mxu0 0.0
    %v697 = vand.u32 %v67, 4294901760
    %698 = vmatmul.mubr.f32.gmra.mxu0 %v697
    %v699 = vpop.f32.mrf.mxu0
    %v700 = vadd.f32 %v582, %v699
    %v701 = vpop.f32.mrf.mxu0
    %702 = vmatprep.mubr.f32.mxu0 0.0
    %v703 = vand.u32 %v70, 4294901760
    %704 = vmatmul.mubr.f32.gmra.mxu0 %v703
    %v705 = vpop.f32.mrf.mxu0
    %v706 = vadd.f32 %v590, %v705
    %v707 = vpop.f32.mrf.mxu0
    %708 = vdwg.mxu0
    %709 = vmatprep.subr.mxu0 0.0
    %710 = vmatpush1.msra.mxu0 0.0
    %711 = vmatprep.subr.mxu0 0.0
    %712 = vmatpush1.msra.mxu0 0.0
    %713 = vmatprep.subr.mxu0 0.0
    %714 = vmatpush1.msra.mxu0 0.0
    %715 = vmatprep.subr.mxu0 0.0
    %716 = vmatpush1.msra.mxu0 0.0
    %717 = vmatprep.subr.mxu0 0.0
    %718 = vmatpush1.msra.mxu0 0.0
    %719 = vmatprep.subr.mxu0 0.0
    %720 = vmatpush1.msra.mxu0 0.0
    %721 = vmatprep.subr.mxu0 0.0
    %722 = vmatpush1.msra.mxu0 0.0
    %723 = vmatprep.subr.mxu0 0.0
    %724 = vmatpush1.msra.mxu0 0.0
    %725 = vmatprep.subr.mxu0 0.0
    %726 = vmatpush1.msra.mxu0 0.0
    %727 = vmatprep.subr.mxu0 0.0
    %728 = vmatpush1.msra.mxu0 0.0
    %729 = vmatprep.subr.mxu0 0.0
    %730 = vmatpush1.msra.mxu0 0.0
    %731 = vmatprep.subr.mxu0 0.0
    %732 = vmatpush1.msra.mxu0 0.0
    %733 = vmatprep.subr.mxu0 0.0
    %734 = vmatpush1.msra.mxu0 0.0
    %735 = vmatprep.subr.mxu0 0.0
    %736 = vmatpush1.msra.mxu0 0.0
    %737 = vmatprep.subr.mxu0 0.0
    %738 = vmatpush1.msra.mxu0 0.0
    %739 = vmatprep.subr.mxu0 0.0
    %v740 = vand.u32 %v74, 4294901760
    %741 = vmatpush1.msra.mxu0 %v740
    %742 = vmatprep.subr.mxu0 0.0
    %743 = vmatpush2.msra.mxu0 0.0
    %744 = vmatprep.subr.mxu0 0.0
    %745 = vmatpush2.msra.mxu0 0.0
    %746 = vmatprep.subr.mxu0 0.0
    %747 = vmatpush2.msra.mxu0 0.0
    %748 = vmatprep.subr.mxu0 0.0
    %749 = vmatpush2.msra.mxu0 0.0
    %750 = vmatprep.subr.mxu0 0.0
    %751 = vmatpush2.msra.mxu0 0.0
    %752 = vmatprep.subr.mxu0 0.0
    %753 = vmatpush2.msra.mxu0 0.0
    %754 = vmatprep.subr.mxu0 0.0
    %755 = vmatpush2.msra.mxu0 0.0
    %756 = vmatprep.subr.mxu0 0.0
    %757 = vmatpush2.msra.mxu0 0.0
    %758 = vmatprep.subr.mxu0 0.0
    %759 = vmatpush2.msra.mxu0 0.0
    %760 = vmatprep.subr.mxu0 0.0
    %761 = vmatpush2.msra.mxu0 0.0
    %762 = vmatprep.subr.mxu0 0.0
    %763 = vmatpush2.msra.mxu0 0.0
    %764 = vmatprep.subr.mxu0 0.0
    %765 = vmatpush2.msra.mxu0 0.0
    %766 = vmatprep.subr.mxu0 0.0
    %767 = vmatpush2.msra.mxu0 0.0
    %768 = vmatprep.subr.mxu0 0.0
    %769 = vmatpush2.msra.mxu0 0.0
    %770 = vmatprep.subr.mxu0 0.0
    %771 = vmatpush2.msra.mxu0 0.0
    %772 = vmatprep.subr.mxu0 0.0
    %773 = vmatpush2.msra.mxu0 0.0
    %774 = vmatprep.mubr.f32.mxu0 0.0
    %v775 = vand.u32 %v49, 4294901760
    %776 = vmatmul.mubr.f32.gmra.mxu0 %v775
    %v777 = vpop.f32.mrf.mxu0
    %v778 = vadd.f32 %v664, %v777
    %v779 = vpop.f32.mrf.mxu0
    %780 = vmatprep.mubr.f32.mxu0 0.0
    %v781 = vand.u32 %v52, 4294901760
    %782 = vmatmul.mubr.f32.gmra.mxu0 %v781
    %v783 = vpop.f32.mrf.mxu0
    %v784 = vadd.f32 %v670, %v783
    %v785 = vpop.f32.mrf.mxu0
    %786 = vmatprep.mubr.f32.mxu0 0.0
    %v787 = vand.u32 %v55, 4294901760
    %788 = vmatmul.mubr.f32.gmra.mxu0 %v787
    %v789 = vpop.f32.mrf.mxu0
    %v790 = vadd.f32 %v676, %v789
    %v791 = vpop.f32.mrf.mxu0
    %792 = vmatprep.mubr.f32.mxu0 0.0
    %v793 = vand.u32 %v58, 4294901760
    %794 = vmatmul.mubr.f32.gmra.mxu0 %v793
    %v795 = vpop.f32.mrf.mxu0
    %v796 = vadd.f32 %v682, %v795
    %v797 = vpop.f32.mrf.mxu0
    %798 = vmatprep.mubr.f32.mxu0 0.0
    %v799 = vand.u32 %v61, 4294901760
    %800 = vmatmul.mubr.f32.gmra.mxu0 %v799
    %v801 = vpop.f32.mrf.mxu0
    %v802 = vadd.f32 %v688, %v801
    %v803 = vpop.f32.mrf.mxu0
    %804 = vmatprep.mubr.f32.mxu0 0.0
    %v805 = vand.u32 %v64, 4294901760
    %806 = vmatmul.mubr.f32.gmra.mxu0 %v805
    %v807 = vpop.f32.mrf.mxu0
    %v808 = vadd.f32 %v694, %v807
    %v809 = vpop.f32.mrf.mxu0
    %810 = vmatprep.mubr.f32.mxu0 0.0
    %v811 = vand.u32 %v67, 4294901760
    %812 = vmatmul.mubr.f32.gmra.mxu0 %v811
    %v813 = vpop.f32.mrf.mxu0
    %v814 = vadd.f32 %v700, %v813
    %v815 = vpop.f32.mrf.mxu0
    %816 = vmatprep.mubr.f32.mxu0 0.0
    %v817 = vand.u32 %v70, 4294901760
    %818 = vmatmul.mubr.f32.gmra.mxu0 %v817
    %v819 = vpop.f32.mrf.mxu0
    %v820 = vadd.f32 %v706, %v819
    %v821 = vpop.f32.mrf.mxu0
    %822 = vdwg.mxu0
    %v823 = vld [vmem:[#allocation2] sm:$0xff]
    %v824 = vld [vmem:[#allocation2 + $0x8] sm:$0xff]
    %v825 = vld [vmem:[#allocation2 + $0x10] sm:$0xff]
    %v826 = vld [vmem:[#allocation2 + $0x18] sm:$0xff]
    %v827 = vld [vmem:[#allocation2 + $0x20] sm:$0xff]
    %v828 = vld [vmem:[#allocation2 + $0x28] sm:$0xff]
    %v829 = vld [vmem:[#allocation2 + $0x30] sm:$0xff]
    %v830 = vld [vmem:[#allocation2 + $0x38] sm:$0xff]
    %v831 = vld [vmem:[%s3] sm:$0x1]
    %v832 = vlaneseq
    %v833 = vand.u32 %v832, 127
    %v835 = vlaneseq
    %v836 = vshrl.u32 %v835, 7
    %v837 = vsub.s32 0, %v836
    %v838 = vrot.slane %v831, %v837
    %vm840 = vcmask 523264
    %v842 = vsel %vm840, 0.0, 0
    %844 = vmatprep.subr.mxu0 0.0
    %845 = vmatpush1.msra.mxu0 0.0
    %846 = vmatprep.subr.mxu0 0.0
    %847 = vmatpush1.msra.mxu0 0.0
    %848 = vmatprep.subr.mxu0 0.0
    %849 = vmatpush1.msra.mxu0 0.0
    %850 = vmatprep.subr.mxu0 0.0
    %851 = vmatpush1.msra.mxu0 0.0
    %852 = vmatprep.subr.mxu0 0.0
    %853 = vmatpush1.msra.mxu0 0.0
    %854 = vmatprep.subr.mxu0 0.0
    %855 = vmatpush1.msra.mxu0 0.0
    %856 = vmatprep.subr.mxu0 0.0
    %857 = vmatpush1.msra.mxu0 0.0
    %858 = vmatprep.subr.mxu0 0.0
    %859 = vmatpush1.msra.mxu0 0.0
    %860 = vmatprep.subr.mxu0 0.0
    %v861 = vand.u32 %v830, 4294901760
    %862 = vmatpush1.msra.mxu0 %v861
    %863 = vmatprep.subr.mxu0 0.0
    %v864 = vand.u32 %v829, 4294901760
    %865 = vmatpush1.msra.mxu0 %v864
    %866 = vmatprep.subr.mxu0 0.0
    %v867 = vand.u32 %v828, 4294901760
    %868 = vmatpush1.msra.mxu0 %v867
    %869 = vmatprep.subr.mxu0 0.0
    %v870 = vand.u32 %v827, 4294901760
    %871 = vmatpush1.msra.mxu0 %v870
    %872 = vmatprep.subr.mxu0 0.0
    %v873 = vand.u32 %v826, 4294901760
    %874 = vmatpush1.msra.mxu0 %v873
    %875 = vmatprep.subr.mxu0 0.0
    %v876 = vand.u32 %v825, 4294901760
    %877 = vmatpush1.msra.mxu0 %v876
    %878 = vmatprep.subr.mxu0 0.0
    %v879 = vand.u32 %v824, 4294901760
    %880 = vmatpush1.msra.mxu0 %v879
    %881 = vmatprep.subr.mxu0 0.0
    %v882 = vand.u32 %v823, 4294901760
    %883 = vmatpush1.msra.mxu0 %v882
    %884 = vmatprep.subr.mxu0 0.0
    %885 = vmatpush2.msra.mxu0 0.0
    %886 = vmatprep.subr.mxu0 0.0
    %887 = vmatpush2.msra.mxu0 0.0
    %888 = vmatprep.subr.mxu0 0.0
    %889 = vmatpush2.msra.mxu0 0.0
    %890 = vmatprep.subr.mxu0 0.0
    %891 = vmatpush2.msra.mxu0 0.0
    %892 = vmatprep.subr.mxu0 0.0
    %893 = vmatpush2.msra.mxu0 0.0
    %894 = vmatprep.subr.mxu0 0.0
    %895 = vmatpush2.msra.mxu0 0.0
    %896 = vmatprep.subr.mxu0 0.0
    %897 = vmatpush2.msra.mxu0 0.0
    %898 = vmatprep.subr.mxu0 0.0
    %899 = vmatpush2.msra.mxu0 0.0
    %900 = vmatprep.subr.mxu0 0.0
    %901 = vmatpush2.msra.mxu0 0.0
    %902 = vmatprep.subr.mxu0 0.0
    %903 = vmatpush2.msra.mxu0 0.0
    %904 = vmatprep.subr.mxu0 0.0
    %905 = vmatpush2.msra.mxu0 0.0
    %906 = vmatprep.subr.mxu0 0.0
    %907 = vmatpush2.msra.mxu0 0.0
    %908 = vmatprep.subr.mxu0 0.0
    %909 = vmatpush2.msra.mxu0 0.0
    %910 = vmatprep.subr.mxu0 0.0
    %911 = vmatpush2.msra.mxu0 0.0
    %912 = vmatprep.subr.mxu0 0.0
    %913 = vmatpush2.msra.mxu0 0.0
    %914 = vmatprep.subr.mxu0 0.0
    %915 = vmatpush2.msra.mxu0 0.0
    %916 = vmatprep.mubr.f32.mxu0 0.0
    %v917 = vand.u32 %v842, 4294901760
    %v918 = vsub.f32 %v842, %v917
    %v919 = vand.u32 %v918, 4294901760
    %v920 = vsub.f32 %v918, %v919
    %v921 = vand.u32 %v920, 4294901760
    %922 = vmatmul.mubr.f32.gmra.mxu0 %v921
    %v923 = vpop.f32.mrf.mxu0
    %v924 = vadd.f32 %v838, %v923
    %v925 = vpop.f32.mrf.mxu0
    %926 = vdwg.mxu0
    %927 = vmatprep.subr.mxu0 0.0
    %928 = vmatpush1.msra.mxu0 0.0
    %929 = vmatprep.subr.mxu0 0.0
    %930 = vmatpush1.msra.mxu0 0.0
    %931 = vmatprep.subr.mxu0 0.0
    %932 = vmatpush1.msra.mxu0 0.0
    %933 = vmatprep.subr.mxu0 0.0
    %934 = vmatpush1.msra.mxu0 0.0
    %935 = vmatprep.subr.mxu0 0.0
    %936 = vmatpush1.msra.mxu0 0.0
    %937 = vmatprep.subr.mxu0 0.0
    %938 = vmatpush1.msra.mxu0 0.0
    %939 = vmatprep.subr.mxu0 0.0
    %940 = vmatpush1.msra.mxu0 0.0
    %941 = vmatprep.subr.mxu0 0.0
    %942 = vmatpush1.msra.mxu0 0.0
    %943 = vmatprep.subr.mxu0 0.0
    %v944 = vand.u32 %v830, 4294901760
    %v945 = vsub.f32 %v830, %v944
    %v946 = vand.u32 %v945, 4294901760
    %v947 = vsub.f32 %v945, %v946
    %v948 = vand.u32 %v947, 4294901760
    %949 = vmatpush1.msra.mxu0 %v948
    %950 = vmatprep.subr.mxu0 0.0
    %v951 = vand.u32 %v829, 4294901760
    %v952 = vsub.f32 %v829, %v951
    %v953 = vand.u32 %v952, 4294901760
    %v954 = vsub.f32 %v952, %v953
    %v955 = vand.u32 %v954, 4294901760
    %956 = vmatpush1.msra.mxu0 %v955
    %957 = vmatprep.subr.mxu0 0.0
    %v958 = vand.u32 %v828, 4294901760
    %v959 = vsub.f32 %v828, %v958
    %v960 = vand.u32 %v959, 4294901760
    %v961 = vsub.f32 %v959, %v960
    %v962 = vand.u32 %v961, 4294901760
    %963 = vmatpush1.msra.mxu0 %v962
    %964 = vmatprep.subr.mxu0 0.0
    %v965 = vand.u32 %v827, 4294901760
    %v966 = vsub.f32 %v827, %v965
    %v967 = vand.u32 %v966, 4294901760
    %v968 = vsub.f32 %v966, %v967
    %v969 = vand.u32 %v968, 4294901760
    %970 = vmatpush1.msra.mxu0 %v969
    %971 = vmatprep.subr.mxu0 0.0
    %v972 = vand.u32 %v826, 4294901760
    %v973 = vsub.f32 %v826, %v972
    %v974 = vand.u32 %v973, 4294901760
    %v975 = vsub.f32 %v973, %v974
    %v976 = vand.u32 %v975, 4294901760
    %977 = vmatpush1.msra.mxu0 %v976
    %978 = vmatprep.subr.mxu0 0.0
    %v979 = vand.u32 %v825, 4294901760
    %v980 = vsub.f32 %v825, %v979
    %v981 = vand.u32 %v980, 4294901760
    %v982 = vsub.f32 %v980, %v981
    %v983 = vand.u32 %v982, 4294901760
    %984 = vmatpush1.msra.mxu0 %v983
    %985 = vmatprep.subr.mxu0 0.0
    %v986 = vand.u32 %v824, 4294901760
    %v987 = vsub.f32 %v824, %v986
    %v988 = vand.u32 %v987, 4294901760
    %v989 = vsub.f32 %v987, %v988
    %v990 = vand.u32 %v989, 4294901760
    %991 = vmatpush1.msra.mxu0 %v990
    %992 = vmatprep.subr.mxu0 0.0
    %v993 = vand.u32 %v823, 4294901760
    %v994 = vsub.f32 %v823, %v993
    %v995 = vand.u32 %v994, 4294901760
    %v996 = vsub.f32 %v994, %v995
    %v997 = vand.u32 %v996, 4294901760
    %998 = vmatpush1.msra.mxu0 %v997
    %999 = vmatprep.subr.mxu0 0.0
    %1000 = vmatpush2.msra.mxu0 0.0
    %1001 = vmatprep.subr.mxu0 0.0
    %1002 = vmatpush2.msra.mxu0 0.0
    %1003 = vmatprep.subr.mxu0 0.0
    %1004 = vmatpush2.msra.mxu0 0.0
    %1005 = vmatprep.subr.mxu0 0.0
    %1006 = vmatpush2.msra.mxu0 0.0
    %1007 = vmatprep.subr.mxu0 0.0
    %1008 = vmatpush2.msra.mxu0 0.0
    %1009 = vmatprep.subr.mxu0 0.0
    %1010 = vmatpush2.msra.mxu0 0.0
    %1011 = vmatprep.subr.mxu0 0.0
    %1012 = vmatpush2.msra.mxu0 0.0
    %1013 = vmatprep.subr.mxu0 0.0
    %1014 = vmatpush2.msra.mxu0 0.0
    %1015 = vmatprep.subr.mxu0 0.0
    %1016 = vmatpush2.msra.mxu0 0.0
    %1017 = vmatprep.subr.mxu0 0.0
    %1018 = vmatpush2.msra.mxu0 0.0
    %1019 = vmatprep.subr.mxu0 0.0
    %1020 = vmatpush2.msra.mxu0 0.0
    %1021 = vmatprep.subr.mxu0 0.0
    %1022 = vmatpush2.msra.mxu0 0.0
    %1023 = vmatprep.subr.mxu0 0.0
    %1024 = vmatpush2.msra.mxu0 0.0
    %1025 = vmatprep.subr.mxu0 0.0
    %1026 = vmatpush2.msra.mxu0 0.0
    %1027 = vmatprep.subr.mxu0 0.0
    %1028 = vmatpush2.msra.mxu0 0.0
    %1029 = vmatprep.subr.mxu0 0.0
    %1030 = vmatpush2.msra.mxu0 0.0
    %1031 = vmatprep.mubr.f32.mxu0 0.0
    %v1032 = vand.u32 %v842, 4294901760
    %1033 = vmatmul.mubr.f32.gmra.mxu0 %v1032
    %v1034 = vpop.f32.mrf.mxu0
    %v1035 = vadd.f32 %v924, %v1034
    %v1036 = vpop.f32.mrf.mxu0
    %1037 = vdwg.mxu0
    %1038 = vmatprep.subr.mxu0 0.0
    %1039 = vmatpush1.msra.mxu0 0.0
    %1040 = vmatprep.subr.mxu0 0.0
    %1041 = vmatpush1.msra.mxu0 0.0
    %1042 = vmatprep.subr.mxu0 0.0
    %1043 = vmatpush1.msra.mxu0 0.0
    %1044 = vmatprep.subr.mxu0 0.0
    %1045 = vmatpush1.msra.mxu0 0.0
    %1046 = vmatprep.subr.mxu0 0.0
    %1047 = vmatpush1.msra.mxu0 0.0
    %1048 = vmatprep.subr.mxu0 0.0
    %1049 = vmatpush1.msra.mxu0 0.0
    %1050 = vmatprep.subr.mxu0 0.0
    %1051 = vmatpush1.msra.mxu0 0.0
    %1052 = vmatprep.subr.mxu0 0.0
    %1053 = vmatpush1.msra.mxu0 0.0
    %1054 = vmatprep.subr.mxu0 0.0
    %v1055 = vand.u32 %v830, 4294901760
    %v1056 = vsub.f32 %v830, %v1055
    %1057 = vmatpush1.msra.mxu0 %v1056
    %1058 = vmatprep.subr.mxu0 0.0
    %v1059 = vand.u32 %v829, 4294901760
    %v1060 = vsub.f32 %v829, %v1059
    %1061 = vmatpush1.msra.mxu0 %v1060
    %1062 = vmatprep.subr.mxu0 0.0
    %v1063 = vand.u32 %v828, 4294901760
    %v1064 = vsub.f32 %v828, %v1063
    %1065 = vmatpush1.msra.mxu0 %v1064
    %1066 = vmatprep.subr.mxu0 0.0
    %v1067 = vand.u32 %v827, 4294901760
    %v1068 = vsub.f32 %v827, %v1067
    %1069 = vmatpush1.msra.mxu0 %v1068
    %1070 = vmatprep.subr.mxu0 0.0
    %v1071 = vand.u32 %v826, 4294901760
    %v1072 = vsub.f32 %v826, %v1071
    %1073 = vmatpush1.msra.mxu0 %v1072
    %1074 = vmatprep.subr.mxu0 0.0
    %v1075 = vand.u32 %v825, 4294901760
    %v1076 = vsub.f32 %v825, %v1075
    %1077 = vmatpush1.msra.mxu0 %v1076
    %1078 = vmatprep.subr.mxu0 0.0
    %v1079 = vand.u32 %v824, 4294901760
    %v1080 = vsub.f32 %v824, %v1079
    %1081 = vmatpush1.msra.mxu0 %v1080
    %1082 = vmatprep.subr.mxu0 0.0
    %v1083 = vand.u32 %v823, 4294901760
    %v1084 = vsub.f32 %v823, %v1083
    %1085 = vmatpush1.msra.mxu0 %v1084
    %1086 = vmatprep.subr.mxu0 0.0
    %1087 = vmatpush2.msra.mxu0 0.0
    %1088 = vmatprep.subr.mxu0 0.0
    %1089 = vmatpush2.msra.mxu0 0.0
    %1090 = vmatprep.subr.mxu0 0.0
    %1091 = vmatpush2.msra.mxu0 0.0
    %1092 = vmatprep.subr.mxu0 0.0
    %1093 = vmatpush2.msra.mxu0 0.0
    %1094 = vmatprep.subr.mxu0 0.0
    %1095 = vmatpush2.msra.mxu0 0.0
    %1096 = vmatprep.subr.mxu0 0.0
    %1097 = vmatpush2.msra.mxu0 0.0
    %1098 = vmatprep.subr.mxu0 0.0
    %1099 = vmatpush2.msra.mxu0 0.0
    %1100 = vmatprep.subr.mxu0 0.0
    %1101 = vmatpush2.msra.mxu0 0.0
    %1102 = vmatprep.subr.mxu0 0.0
    %1103 = vmatpush2.msra.mxu0 0.0
    %1104 = vmatprep.subr.mxu0 0.0
    %1105 = vmatpush2.msra.mxu0 0.0
    %1106 = vmatprep.subr.mxu0 0.0
    %1107 = vmatpush2.msra.mxu0 0.0
    %1108 = vmatprep.subr.mxu0 0.0
    %1109 = vmatpush2.msra.mxu0 0.0
    %1110 = vmatprep.subr.mxu0 0.0
    %1111 = vmatpush2.msra.mxu0 0.0
    %1112 = vmatprep.subr.mxu0 0.0
    %1113 = vmatpush2.msra.mxu0 0.0
    %1114 = vmatprep.subr.mxu0 0.0
    %1115 = vmatpush2.msra.mxu0 0.0
    %1116 = vmatprep.subr.mxu0 0.0
    %1117 = vmatpush2.msra.mxu0 0.0
    %1118 = vmatprep.mubr.f32.mxu0 0.0
    %v1119 = vand.u32 %v842, 4294901760
    %v1120 = vsub.f32 %v842, %v1119
    %1121 = vmatmul.mubr.f32.gmra.mxu0 %v1120
    %v1122 = vpop.f32.mrf.mxu0
    %v1123 = vadd.f32 %v1035, %v1122
    %v1124 = vpop.f32.mrf.mxu0
    %1125 = vdwg.mxu0
    %1126 = vmatprep.subr.mxu0 0.0
    %1127 = vmatpush1.msra.mxu0 0.0
    %1128 = vmatprep.subr.mxu0 0.0
    %1129 = vmatpush1.msra.mxu0 0.0
    %1130 = vmatprep.subr.mxu0 0.0
    %1131 = vmatpush1.msra.mxu0 0.0
    %1132 = vmatprep.subr.mxu0 0.0
    %1133 = vmatpush1.msra.mxu0 0.0
    %1134 = vmatprep.subr.mxu0 0.0
    %1135 = vmatpush1.msra.mxu0 0.0
    %1136 = vmatprep.subr.mxu0 0.0
    %1137 = vmatpush1.msra.mxu0 0.0
    %1138 = vmatprep.subr.mxu0 0.0
    %1139 = vmatpush1.msra.mxu0 0.0
    %1140 = vmatprep.subr.mxu0 0.0
    %1141 = vmatpush1.msra.mxu0 0.0
    %1142 = vmatprep.subr.mxu0 0.0
    %v1143 = vand.u32 %v830, 4294901760
    %1144 = vmatpush1.msra.mxu0 %v1143
    %1145 = vmatprep.subr.mxu0 0.0
    %v1146 = vand.u32 %v829, 4294901760
    %1147 = vmatpush1.msra.mxu0 %v1146
    %1148 = vmatprep.subr.mxu0 0.0
    %v1149 = vand.u32 %v828, 4294901760
    %1150 = vmatpush1.msra.mxu0 %v1149
    %1151 = vmatprep.subr.mxu0 0.0
    %v1152 = vand.u32 %v827, 4294901760
    %1153 = vmatpush1.msra.mxu0 %v1152
    %1154 = vmatprep.subr.mxu0 0.0
    %v1155 = vand.u32 %v826, 4294901760
    %1156 = vmatpush1.msra.mxu0 %v1155
    %1157 = vmatprep.subr.mxu0 0.0
    %v1158 = vand.u32 %v825, 4294901760
    %1159 = vmatpush1.msra.mxu0 %v1158
    %1160 = vmatprep.subr.mxu0 0.0
    %v1161 = vand.u32 %v824, 4294901760
    %1162 = vmatpush1.msra.mxu0 %v1161
    %1163 = vmatprep.subr.mxu0 0.0
    %v1164 = vand.u32 %v823, 4294901760
    %1165 = vmatpush1.msra.mxu0 %v1164
    %1166 = vmatprep.subr.mxu0 0.0
    %1167 = vmatpush2.msra.mxu0 0.0
    %1168 = vmatprep.subr.mxu0 0.0
    %1169 = vmatpush2.msra.mxu0 0.0
    %1170 = vmatprep.subr.mxu0 0.0
    %1171 = vmatpush2.msra.mxu0 0.0
    %1172 = vmatprep.subr.mxu0 0.0
    %1173 = vmatpush2.msra.mxu0 0.0
    %1174 = vmatprep.subr.mxu0 0.0
    %1175 = vmatpush2.msra.mxu0 0.0
    %1176 = vmatprep.subr.mxu0 0.0
    %1177 = vmatpush2.msra.mxu0 0.0
    %1178 = vmatprep.subr.mxu0 0.0
    %1179 = vmatpush2.msra.mxu0 0.0
    %1180 = vmatprep.subr.mxu0 0.0
    %1181 = vmatpush2.msra.mxu0 0.0
    %1182 = vmatprep.subr.mxu0 0.0
    %1183 = vmatpush2.msra.mxu0 0.0
    %1184 = vmatprep.subr.mxu0 0.0
    %1185 = vmatpush2.msra.mxu0 0.0
    %1186 = vmatprep.subr.mxu0 0.0
    %1187 = vmatpush2.msra.mxu0 0.0
    %1188 = vmatprep.subr.mxu0 0.0
    %1189 = vmatpush2.msra.mxu0 0.0
    %1190 = vmatprep.subr.mxu0 0.0
    %1191 = vmatpush2.msra.mxu0 0.0
    %1192 = vmatprep.subr.mxu0 0.0
    %1193 = vmatpush2.msra.mxu0 0.0
    %1194 = vmatprep.subr.mxu0 0.0
    %1195 = vmatpush2.msra.mxu0 0.0
    %1196 = vmatprep.subr.mxu0 0.0
    %1197 = vmatpush2.msra.mxu0 0.0
    %1198 = vmatprep.mubr.f32.mxu0 0.0
    %v1199 = vand.u32 %v842, 4294901760
    %v1200 = vsub.f32 %v842, %v1199
    %v1201 = vand.u32 %v1200, 4294901760
    %1202 = vmatmul.mubr.f32.gmra.mxu0 %v1201
    %v1203 = vpop.f32.mrf.mxu0
    %v1204 = vadd.f32 %v1123, %v1203
    %v1205 = vpop.f32.mrf.mxu0
    %1206 = vdwg.mxu0
    %1207 = vmatprep.subr.mxu0 0.0
    %1208 = vmatpush1.msra.mxu0 0.0
    %1209 = vmatprep.subr.mxu0 0.0
    %1210 = vmatpush1.msra.mxu0 0.0
    %1211 = vmatprep.subr.mxu0 0.0
    %1212 = vmatpush1.msra.mxu0 0.0
    %1213 = vmatprep.subr.mxu0 0.0
    %1214 = vmatpush1.msra.mxu0 0.0
    %1215 = vmatprep.subr.mxu0 0.0
    %1216 = vmatpush1.msra.mxu0 0.0
    %1217 = vmatprep.subr.mxu0 0.0
    %1218 = vmatpush1.msra.mxu0 0.0
    %1219 = vmatprep.subr.mxu0 0.0
    %1220 = vmatpush1.msra.mxu0 0.0
    %1221 = vmatprep.subr.mxu0 0.0
    %1222 = vmatpush1.msra.mxu0 0.0
    %1223 = vmatprep.subr.mxu0 0.0
    %v1224 = vand.u32 %v830, 4294901760
    %v1225 = vsub.f32 %v830, %v1224
    %v1226 = vand.u32 %v1225, 4294901760
    %1227 = vmatpush1.msra.mxu0 %v1226
    %1228 = vmatprep.subr.mxu0 0.0
    %v1229 = vand.u32 %v829, 4294901760
    %v1230 = vsub.f32 %v829, %v1229
    %v1231 = vand.u32 %v1230, 4294901760
    %1232 = vmatpush1.msra.mxu0 %v1231
    %1233 = vmatprep.subr.mxu0 0.0
    %v1234 = vand.u32 %v828, 4294901760
    %v1235 = vsub.f32 %v828, %v1234
    %v1236 = vand.u32 %v1235, 4294901760
    %1237 = vmatpush1.msra.mxu0 %v1236
    %1238 = vmatprep.subr.mxu0 0.0
    %v1239 = vand.u32 %v827, 4294901760
    %v1240 = vsub.f32 %v827, %v1239
    %v1241 = vand.u32 %v1240, 4294901760
    %1242 = vmatpush1.msra.mxu0 %v1241
    %1243 = vmatprep.subr.mxu0 0.0
    %v1244 = vand.u32 %v826, 4294901760
    %v1245 = vsub.f32 %v826, %v1244
    %v1246 = vand.u32 %v1245, 4294901760
    %1247 = vmatpush1.msra.mxu0 %v1246
    %1248 = vmatprep.subr.mxu0 0.0
    %v1249 = vand.u32 %v825, 4294901760
    %v1250 = vsub.f32 %v825, %v1249
    %v1251 = vand.u32 %v1250, 4294901760
    %1252 = vmatpush1.msra.mxu0 %v1251
    %1253 = vmatprep.subr.mxu0 0.0
    %v1254 = vand.u32 %v824, 4294901760
    %v1255 = vsub.f32 %v824, %v1254
    %v1256 = vand.u32 %v1255, 4294901760
    %1257 = vmatpush1.msra.mxu0 %v1256
    %1258 = vmatprep.subr.mxu0 0.0
    %v1259 = vand.u32 %v823, 4294901760
    %v1260 = vsub.f32 %v823, %v1259
    %v1261 = vand.u32 %v1260, 4294901760
    %1262 = vmatpush1.msra.mxu0 %v1261
    %1263 = vmatprep.subr.mxu0 0.0
    %1264 = vmatpush2.msra.mxu0 0.0
    %1265 = vmatprep.subr.mxu0 0.0
    %1266 = vmatpush2.msra.mxu0 0.0
    %1267 = vmatprep.subr.mxu0 0.0
    %1268 = vmatpush2.msra.mxu0 0.0
    %1269 = vmatprep.subr.mxu0 0.0
    %1270 = vmatpush2.msra.mxu0 0.0
    %1271 = vmatprep.subr.mxu0 0.0
    %1272 = vmatpush2.msra.mxu0 0.0
    %1273 = vmatprep.subr.mxu0 0.0
    %1274 = vmatpush2.msra.mxu0 0.0
    %1275 = vmatprep.subr.mxu0 0.0
    %1276 = vmatpush2.msra.mxu0 0.0
    %1277 = vmatprep.subr.mxu0 0.0
    %1278 = vmatpush2.msra.mxu0 0.0
    %1279 = vmatprep.subr.mxu0 0.0
    %1280 = vmatpush2.msra.mxu0 0.0
    %1281 = vmatprep.subr.mxu0 0.0
    %1282 = vmatpush2.msra.mxu0 0.0
    %1283 = vmatprep.subr.mxu0 0.0
    %1284 = vmatpush2.msra.mxu0 0.0
    %1285 = vmatprep.subr.mxu0 0.0
    %1286 = vmatpush2.msra.mxu0 0.0
    %1287 = vmatprep.subr.mxu0 0.0
    %1288 = vmatpush2.msra.mxu0 0.0
    %1289 = vmatprep.subr.mxu0 0.0
    %1290 = vmatpush2.msra.mxu0 0.0
    %1291 = vmatprep.subr.mxu0 0.0
    %1292 = vmatpush2.msra.mxu0 0.0
    %1293 = vmatprep.subr.mxu0 0.0
    %1294 = vmatpush2.msra.mxu0 0.0
    %1295 = vmatprep.mubr.f32.mxu0 0.0
    %v1296 = vand.u32 %v842, 4294901760
    %1297 = vmatmul.mubr.f32.gmra.mxu0 %v1296
    %v1298 = vpop.f32.mrf.mxu0
    %v1299 = vadd.f32 %v1204, %v1298
    %v1300 = vpop.f32.mrf.mxu0
    %1301 = vdwg.mxu0
    %1302 = vmatprep.subr.mxu0 0.0
    %1303 = vmatpush1.msra.mxu0 0.0
    %1304 = vmatprep.subr.mxu0 0.0
    %1305 = vmatpush1.msra.mxu0 0.0
    %1306 = vmatprep.subr.mxu0 0.0
    %1307 = vmatpush1.msra.mxu0 0.0
    %1308 = vmatprep.subr.mxu0 0.0
    %1309 = vmatpush1.msra.mxu0 0.0
    %1310 = vmatprep.subr.mxu0 0.0
    %1311 = vmatpush1.msra.mxu0 0.0
    %1312 = vmatprep.subr.mxu0 0.0
    %1313 = vmatpush1.msra.mxu0 0.0
    %1314 = vmatprep.subr.mxu0 0.0
    %1315 = vmatpush1.msra.mxu0 0.0
    %1316 = vmatprep.subr.mxu0 0.0
    %1317 = vmatpush1.msra.mxu0 0.0
    %1318 = vmatprep.subr.mxu0 0.0
    %v1319 = vand.u32 %v830, 4294901760
    %1320 = vmatpush1.msra.mxu0 %v1319
    %1321 = vmatprep.subr.mxu0 0.0
    %v1322 = vand.u32 %v829, 4294901760
    %1323 = vmatpush1.msra.mxu0 %v1322
    %1324 = vmatprep.subr.mxu0 0.0
    %v1325 = vand.u32 %v828, 4294901760
    %1326 = vmatpush1.msra.mxu0 %v1325
    %1327 = vmatprep.subr.mxu0 0.0
    %v1328 = vand.u32 %v827, 4294901760
    %1329 = vmatpush1.msra.mxu0 %v1328
    %1330 = vmatprep.subr.mxu0 0.0
    %v1331 = vand.u32 %v826, 4294901760
    %1332 = vmatpush1.msra.mxu0 %v1331
    %1333 = vmatprep.subr.mxu0 0.0
    %v1334 = vand.u32 %v825, 4294901760
    %1335 = vmatpush1.msra.mxu0 %v1334
    %1336 = vmatprep.subr.mxu0 0.0
    %v1337 = vand.u32 %v824, 4294901760
    %1338 = vmatpush1.msra.mxu0 %v1337
    %1339 = vmatprep.subr.mxu0 0.0
    %v1340 = vand.u32 %v823, 4294901760
    %1341 = vmatpush1.msra.mxu0 %v1340
    %1342 = vmatprep.subr.mxu0 0.0
    %1343 = vmatpush2.msra.mxu0 0.0
    %1344 = vmatprep.subr.mxu0 0.0
    %1345 = vmatpush2.msra.mxu0 0.0
    %1346 = vmatprep.subr.mxu0 0.0
    %1347 = vmatpush2.msra.mxu0 0.0
    %1348 = vmatprep.subr.mxu0 0.0
    %1349 = vmatpush2.msra.mxu0 0.0
    %1350 = vmatprep.subr.mxu0 0.0
    %1351 = vmatpush2.msra.mxu0 0.0
    %1352 = vmatprep.subr.mxu0 0.0
    %1353 = vmatpush2.msra.mxu0 0.0
    %1354 = vmatprep.subr.mxu0 0.0
    %1355 = vmatpush2.msra.mxu0 0.0
    %1356 = vmatprep.subr.mxu0 0.0
    %1357 = vmatpush2.msra.mxu0 0.0
    %1358 = vmatprep.subr.mxu0 0.0
    %1359 = vmatpush2.msra.mxu0 0.0
    %1360 = vmatprep.subr.mxu0 0.0
    %1361 = vmatpush2.msra.mxu0 0.0
    %1362 = vmatprep.subr.mxu0 0.0
    %1363 = vmatpush2.msra.mxu0 0.0
    %1364 = vmatprep.subr.mxu0 0.0
    %1365 = vmatpush2.msra.mxu0 0.0
    %1366 = vmatprep.subr.mxu0 0.0
    %1367 = vmatpush2.msra.mxu0 0.0
    %1368 = vmatprep.subr.mxu0 0.0
    %1369 = vmatpush2.msra.mxu0 0.0
    %1370 = vmatprep.subr.mxu0 0.0
    %1371 = vmatpush2.msra.mxu0 0.0
    %1372 = vmatprep.subr.mxu0 0.0
    %1373 = vmatpush2.msra.mxu0 0.0
    %1374 = vmatprep.mubr.f32.mxu0 0.0
    %v1375 = vand.u32 %v842, 4294901760
    %1376 = vmatmul.mubr.f32.gmra.mxu0 %v1375
    %v1377 = vpop.f32.mrf.mxu0
    %v1378 = vadd.f32 %v1299, %v1377
    %v1379 = vpop.f32.mrf.mxu0
    %1380 = vdwg.mxu0
    %v1381 = vadd.f32 %v1378, %v778
    %v1382 = vtanh.pop %v1381
    %vm1383 = vcmp.ge.s32.totalorder %v833, 0
    %vm1384 = vcmp.lt.s32.totalorder %v833, 32
    %vm1385 = vmand %vm1383, %vm1384
    %v1386 = vsel %vm1385, %v1382, 0.0
    %v1388 = vsel %vm840, %v1386, 0
    %1390 = vmatprep.subr.mxu0 0.0
    %1391 = vmatpush1.msra.mxu0 0.0
    %1392 = vmatprep.subr.mxu0 0.0
    %1393 = vmatpush1.msra.mxu0 0.0
    %1394 = vmatprep.subr.mxu0 0.0
    %1395 = vmatpush1.msra.mxu0 0.0
    %1396 = vmatprep.subr.mxu0 0.0
    %1397 = vmatpush1.msra.mxu0 0.0
    %1398 = vmatprep.subr.mxu0 0.0
    %1399 = vmatpush1.msra.mxu0 0.0
    %1400 = vmatprep.subr.mxu0 0.0
    %1401 = vmatpush1.msra.mxu0 0.0
    %1402 = vmatprep.subr.mxu0 0.0
    %1403 = vmatpush1.msra.mxu0 0.0
    %1404 = vmatprep.subr.mxu0 0.0
    %1405 = vmatpush1.msra.mxu0 0.0
    %1406 = vmatprep.subr.mxu0 0.0
    %v1407 = vand.u32 %v830, 4294901760
    %1408 = vmatpush1.msra.mxu0 %v1407
    %1409 = vmatprep.subr.mxu0 0.0
    %v1410 = vand.u32 %v829, 4294901760
    %1411 = vmatpush1.msra.mxu0 %v1410
    %1412 = vmatprep.subr.mxu0 0.0
    %v1413 = vand.u32 %v828, 4294901760
    %1414 = vmatpush1.msra.mxu0 %v1413
    %1415 = vmatprep.subr.mxu0 0.0
    %v1416 = vand.u32 %v827, 4294901760
    %1417 = vmatpush1.msra.mxu0 %v1416
    %1418 = vmatprep.subr.mxu0 0.0
    %v1419 = vand.u32 %v826, 4294901760
    %1420 = vmatpush1.msra.mxu0 %v1419
    %1421 = vmatprep.subr.mxu0 0.0
    %v1422 = vand.u32 %v825, 4294901760
    %1423 = vmatpush1.msra.mxu0 %v1422
    %1424 = vmatprep.subr.mxu0 0.0
    %v1425 = vand.u32 %v824, 4294901760
    %1426 = vmatpush1.msra.mxu0 %v1425
    %1427 = vmatprep.subr.mxu0 0.0
    %v1428 = vand.u32 %v823, 4294901760
    %1429 = vmatpush1.msra.mxu0 %v1428
    %1430 = vmatprep.subr.mxu0 0.0
    %1431 = vmatpush2.msra.mxu0 0.0
    %1432 = vmatprep.subr.mxu0 0.0
    %1433 = vmatpush2.msra.mxu0 0.0
    %1434 = vmatprep.subr.mxu0 0.0
    %1435 = vmatpush2.msra.mxu0 0.0
    %1436 = vmatprep.subr.mxu0 0.0
    %1437 = vmatpush2.msra.mxu0 0.0
    %1438 = vmatprep.subr.mxu0 0.0
    %1439 = vmatpush2.msra.mxu0 0.0
    %1440 = vmatprep.subr.mxu0 0.0
    %1441 = vmatpush2.msra.mxu0 0.0
    %1442 = vmatprep.subr.mxu0 0.0
    %1443 = vmatpush2.msra.mxu0 0.0
    %1444 = vmatprep.subr.mxu0 0.0
    %1445 = vmatpush2.msra.mxu0 0.0
    %1446 = vmatprep.subr.mxu0 0.0
    %1447 = vmatpush2.msra.mxu0 0.0
    %1448 = vmatprep.subr.mxu0 0.0
    %1449 = vmatpush2.msra.mxu0 0.0
    %1450 = vmatprep.subr.mxu0 0.0
    %1451 = vmatpush2.msra.mxu0 0.0
    %1452 = vmatprep.subr.mxu0 0.0
    %1453 = vmatpush2.msra.mxu0 0.0
    %1454 = vmatprep.subr.mxu0 0.0
    %1455 = vmatpush2.msra.mxu0 0.0
    %1456 = vmatprep.subr.mxu0 0.0
    %1457 = vmatpush2.msra.mxu0 0.0
    %1458 = vmatprep.subr.mxu0 0.0
    %1459 = vmatpush2.msra.mxu0 0.0
    %1460 = vmatprep.subr.mxu0 0.0
    %1461 = vmatpush2.msra.mxu0 0.0
    %1462 = vmatprep.mubr.f32.mxu0 0.0
    %v1463 = vand.u32 %v1388, 4294901760
    %v1464 = vsub.f32 %v1388, %v1463
    %v1465 = vand.u32 %v1464, 4294901760
    %v1466 = vsub.f32 %v1464, %v1465
    %v1467 = vand.u32 %v1466, 4294901760
    %1468 = vmatmul.mubr.f32.gmra.mxu0 %v1467
    %v1469 = vpop.f32.mrf.mxu0
    %v1470 = vadd.f32 %v838, %v1469
    %v1471 = vpop.f32.mrf.mxu0
    %1472 = vdwg.mxu0
    %1473 = vmatprep.subr.mxu0 0.0
    %1474 = vmatpush1.msra.mxu0 0.0
    %1475 = vmatprep.subr.mxu0 0.0
    %1476 = vmatpush1.msra.mxu0 0.0
    %1477 = vmatprep.subr.mxu0 0.0
    %1478 = vmatpush1.msra.mxu0 0.0
    %1479 = vmatprep.subr.mxu0 0.0
    %1480 = vmatpush1.msra.mxu0 0.0
    %1481 = vmatprep.subr.mxu0 0.0
    %1482 = vmatpush1.msra.mxu0 0.0
    %1483 = vmatprep.subr.mxu0 0.0
    %1484 = vmatpush1.msra.mxu0 0.0
    %1485 = vmatprep.subr.mxu0 0.0
    %1486 = vmatpush1.msra.mxu0 0.0
    %1487 = vmatprep.subr.mxu0 0.0
    %1488 = vmatpush1.msra.mxu0 0.0
    %1489 = vmatprep.subr.mxu0 0.0
    %v1490 = vand.u32 %v830, 4294901760
    %v1491 = vsub.f32 %v830, %v1490
    %v1492 = vand.u32 %v1491, 4294901760
    %v1493 = vsub.f32 %v1491, %v1492
    %v1494 = vand.u32 %v1493, 4294901760
    %1495 = vmatpush1.msra.mxu0 %v1494
    %1496 = vmatprep.subr.mxu0 0.0
    %v1497 = vand.u32 %v829, 4294901760
    %v1498 = vsub.f32 %v829, %v1497
    %v1499 = vand.u32 %v1498, 4294901760
    %v1500 = vsub.f32 %v1498, %v1499
    %v1501 = vand.u32 %v1500, 4294901760
    %1502 = vmatpush1.msra.mxu0 %v1501
    %1503 = vmatprep.subr.mxu0 0.0
    %v1504 = vand.u32 %v828, 4294901760
    %v1505 = vsub.f32 %v828, %v1504
    %v1506 = vand.u32 %v1505, 4294901760
    %v1507 = vsub.f32 %v1505, %v1506
    %v1508 = vand.u32 %v1507, 4294901760
    %1509 = vmatpush1.msra.mxu0 %v1508
    %1510 = vmatprep.subr.mxu0 0.0
    %v1511 = vand.u32 %v827, 4294901760
    %v1512 = vsub.f32 %v827, %v1511
    %v1513 = vand.u32 %v1512, 4294901760
    %v1514 = vsub.f32 %v1512, %v1513
    %v1515 = vand.u32 %v1514, 4294901760
    %1516 = vmatpush1.msra.mxu0 %v1515
    %1517 = vmatprep.subr.mxu0 0.0
    %v1518 = vand.u32 %v826, 4294901760
    %v1519 = vsub.f32 %v826, %v1518
    %v1520 = vand.u32 %v1519, 4294901760
    %v1521 = vsub.f32 %v1519, %v1520
    %v1522 = vand.u32 %v1521, 4294901760
    %1523 = vmatpush1.msra.mxu0 %v1522
    %1524 = vmatprep.subr.mxu0 0.0
    %v1525 = vand.u32 %v825, 4294901760
    %v1526 = vsub.f32 %v825, %v1525
    %v1527 = vand.u32 %v1526, 4294901760
    %v1528 = vsub.f32 %v1526, %v1527
    %v1529 = vand.u32 %v1528, 4294901760
    %1530 = vmatpush1.msra.mxu0 %v1529
    %1531 = vmatprep.subr.mxu0 0.0
    %v1532 = vand.u32 %v824, 4294901760
    %v1533 = vsub.f32 %v824, %v1532
    %v1534 = vand.u32 %v1533, 4294901760
    %v1535 = vsub.f32 %v1533, %v1534
    %v1536 = vand.u32 %v1535, 4294901760
    %1537 = vmatpush1.msra.mxu0 %v1536
    %1538 = vmatprep.subr.mxu0 0.0
    %v1539 = vand.u32 %v823, 4294901760
    %v1540 = vsub.f32 %v823, %v1539
    %v1541 = vand.u32 %v1540, 4294901760
    %v1542 = vsub.f32 %v1540, %v1541
    %v1543 = vand.u32 %v1542, 4294901760
    %1544 = vmatpush1.msra.mxu0 %v1543
    %1545 = vmatprep.subr.mxu0 0.0
    %1546 = vmatpush2.msra.mxu0 0.0
    %1547 = vmatprep.subr.mxu0 0.0
    %1548 = vmatpush2.msra.mxu0 0.0
    %1549 = vmatprep.subr.mxu0 0.0
    %1550 = vmatpush2.msra.mxu0 0.0
    %1551 = vmatprep.subr.mxu0 0.0
    %1552 = vmatpush2.msra.mxu0 0.0
    %1553 = vmatprep.subr.mxu0 0.0
    %1554 = vmatpush2.msra.mxu0 0.0
    %1555 = vmatprep.subr.mxu0 0.0
    %1556 = vmatpush2.msra.mxu0 0.0
    %1557 = vmatprep.subr.mxu0 0.0
    %1558 = vmatpush2.msra.mxu0 0.0
    %1559 = vmatprep.subr.mxu0 0.0
    %1560 = vmatpush2.msra.mxu0 0.0
    %1561 = vmatprep.subr.mxu0 0.0
    %1562 = vmatpush2.msra.mxu0 0.0
    %1563 = vmatprep.subr.mxu0 0.0
    %1564 = vmatpush2.msra.mxu0 0.0
    %1565 = vmatprep.subr.mxu0 0.0
    %1566 = vmatpush2.msra.mxu0 0.0
    %1567 = vmatprep.subr.mxu0 0.0
    %1568 = vmatpush2.msra.mxu0 0.0
    %1569 = vmatprep.subr.mxu0 0.0
    %1570 = vmatpush2.msra.mxu0 0.0
    %1571 = vmatprep.subr.mxu0 0.0
    %1572 = vmatpush2.msra.mxu0 0.0
    %1573 = vmatprep.subr.mxu0 0.0
    %1574 = vmatpush2.msra.mxu0 0.0
    %1575 = vmatprep.subr.mxu0 0.0
    %1576 = vmatpush2.msra.mxu0 0.0
    %1577 = vmatprep.mubr.f32.mxu0 0.0
    %v1578 = vand.u32 %v1388, 4294901760
    %1579 = vmatmul.mubr.f32.gmra.mxu0 %v1578
    %v1580 = vpop.f32.mrf.mxu0
    %v1581 = vadd.f32 %v1470, %v1580
    %v1582 = vpop.f32.mrf.mxu0
    %1583 = vdwg.mxu0
    %1584 = vmatprep.subr.mxu0 0.0
    %1585 = vmatpush1.msra.mxu0 0.0
    %1586 = vmatprep.subr.mxu0 0.0
    %1587 = vmatpush1.msra.mxu0 0.0
    %1588 = vmatprep.subr.mxu0 0.0
    %1589 = vmatpush1.msra.mxu0 0.0
    %1590 = vmatprep.subr.mxu0 0.0
    %1591 = vmatpush1.msra.mxu0 0.0
    %1592 = vmatprep.subr.mxu0 0.0
    %1593 = vmatpush1.msra.mxu0 0.0
    %1594 = vmatprep.subr.mxu0 0.0
    %1595 = vmatpush1.msra.mxu0 0.0
    %1596 = vmatprep.subr.mxu0 0.0
    %1597 = vmatpush1.msra.mxu0 0.0
    %1598 = vmatprep.subr.mxu0 0.0
    %1599 = vmatpush1.msra.mxu0 0.0
    %1600 = vmatprep.subr.mxu0 0.0
    %v1601 = vand.u32 %v830, 4294901760
    %v1602 = vsub.f32 %v830, %v1601
    %1603 = vmatpush1.msra.mxu0 %v1602
    %1604 = vmatprep.subr.mxu0 0.0
    %v1605 = vand.u32 %v829, 4294901760
    %v1606 = vsub.f32 %v829, %v1605
    %1607 = vmatpush1.msra.mxu0 %v1606
    %1608 = vmatprep.subr.mxu0 0.0
    %v1609 = vand.u32 %v828, 4294901760
    %v1610 = vsub.f32 %v828, %v1609
    %1611 = vmatpush1.msra.mxu0 %v1610
    %1612 = vmatprep.subr.mxu0 0.0
    %v1613 = vand.u32 %v827, 4294901760
    %v1614 = vsub.f32 %v827, %v1613
    %1615 = vmatpush1.msra.mxu0 %v1614
    %1616 = vmatprep.subr.mxu0 0.0
    %v1617 = vand.u32 %v826, 4294901760
    %v1618 = vsub.f32 %v826, %v1617
    %1619 = vmatpush1.msra.mxu0 %v1618
    %1620 = vmatprep.subr.mxu0 0.0
    %v1621 = vand.u32 %v825, 4294901760
    %v1622 = vsub.f32 %v825, %v1621
    %1623 = vmatpush1.msra.mxu0 %v1622
    %1624 = vmatprep.subr.mxu0 0.0
    %v1625 = vand.u32 %v824, 4294901760
    %v1626 = vsub.f32 %v824, %v1625
    %1627 = vmatpush1.msra.mxu0 %v1626
    %1628 = vmatprep.subr.mxu0 0.0
    %v1629 = vand.u32 %v823, 4294901760
    %v1630 = vsub.f32 %v823, %v1629
    %1631 = vmatpush1.msra.mxu0 %v1630
    %1632 = vmatprep.subr.mxu0 0.0
    %1633 = vmatpush2.msra.mxu0 0.0
    %1634 = vmatprep.subr.mxu0 0.0
    %1635 = vmatpush2.msra.mxu0 0.0
    %1636 = vmatprep.subr.mxu0 0.0
    %1637 = vmatpush2.msra.mxu0 0.0
    %1638 = vmatprep.subr.mxu0 0.0
    %1639 = vmatpush2.msra.mxu0 0.0
    %1640 = vmatprep.subr.mxu0 0.0
    %1641 = vmatpush2.msra.mxu0 0.0
    %1642 = vmatprep.subr.mxu0 0.0
    %1643 = vmatpush2.msra.mxu0 0.0
    %1644 = vmatprep.subr.mxu0 0.0
    %1645 = vmatpush2.msra.mxu0 0.0
    %1646 = vmatprep.subr.mxu0 0.0
    %1647 = vmatpush2.msra.mxu0 0.0
    %1648 = vmatprep.subr.mxu0 0.0
    %1649 = vmatpush2.msra.mxu0 0.0
    %1650 = vmatprep.subr.mxu0 0.0
    %1651 = vmatpush2.msra.mxu0 0.0
    %1652 = vmatprep.subr.mxu0 0.0
    %1653 = vmatpush2.msra.mxu0 0.0
    %1654 = vmatprep.subr.mxu0 0.0
    %1655 = vmatpush2.msra.mxu0 0.0
    %1656 = vmatprep.subr.mxu0 0.0
    %1657 = vmatpush2.msra.mxu0 0.0
    %1658 = vmatprep.subr.mxu0 0.0
    %1659 = vmatpush2.msra.mxu0 0.0
    %1660 = vmatprep.subr.mxu0 0.0
    %1661 = vmatpush2.msra.mxu0 0.0
    %1662 = vmatprep.subr.mxu0 0.0
    %1663 = vmatpush2.msra.mxu0 0.0
    %1664 = vmatprep.mubr.f32.mxu0 0.0
    %v1665 = vand.u32 %v1388, 4294901760
    %v1666 = vsub.f32 %v1388, %v1665
    %1667 = vmatmul.mubr.f32.gmra.mxu0 %v1666
    %v1668 = vpop.f32.mrf.mxu0
    %v1669 = vadd.f32 %v1581, %v1668
    %v1670 = vpop.f32.mrf.mxu0
    %1671 = vdwg.mxu0
    %1672 = vmatprep.subr.mxu0 0.0
    %1673 = vmatpush1.msra.mxu0 0.0
    %1674 = vmatprep.subr.mxu0 0.0
    %1675 = vmatpush1.msra.mxu0 0.0
    %1676 = vmatprep.subr.mxu0 0.0
    %1677 = vmatpush1.msra.mxu0 0.0
    %1678 = vmatprep.subr.mxu0 0.0
    %1679 = vmatpush1.msra.mxu0 0.0
    %1680 = vmatprep.subr.mxu0 0.0
    %1681 = vmatpush1.msra.mxu0 0.0
    %1682 = vmatprep.subr.mxu0 0.0
    %1683 = vmatpush1.msra.mxu0 0.0
    %1684 = vmatprep.subr.mxu0 0.0
    %1685 = vmatpush1.msra.mxu0 0.0
    %1686 = vmatprep.subr.mxu0 0.0
    %1687 = vmatpush1.msra.mxu0 0.0
    %1688 = vmatprep.subr.mxu0 0.0
    %v1689 = vand.u32 %v830, 4294901760
    %1690 = vmatpush1.msra.mxu0 %v1689
    %1691 = vmatprep.subr.mxu0 0.0
    %v1692 = vand.u32 %v829, 4294901760
    %1693 = vmatpush1.msra.mxu0 %v1692
    %1694 = vmatprep.subr.mxu0 0.0
    %v1695 = vand.u32 %v828, 4294901760
    %1696 = vmatpush1.msra.mxu0 %v1695
    %1697 = vmatprep.subr.mxu0 0.0
    %v1698 = vand.u32 %v827, 4294901760
    %1699 = vmatpush1.msra.mxu0 %v1698
    %1700 = vmatprep.subr.mxu0 0.0
    %v1701 = vand.u32 %v826, 4294901760
    %1702 = vmatpush1.msra.mxu0 %v1701
    %1703 = vmatprep.subr.mxu0 0.0
    %v1704 = vand.u32 %v825, 4294901760
    %1705 = vmatpush1.msra.mxu0 %v1704
    %1706 = vmatprep.subr.mxu0 0.0
    %v1707 = vand.u32 %v824, 4294901760
    %1708 = vmatpush1.msra.mxu0 %v1707
    %1709 = vmatprep.subr.mxu0 0.0
    %v1710 = vand.u32 %v823, 4294901760
    %1711 = vmatpush1.msra.mxu0 %v1710
    %1712 = vmatprep.subr.mxu0 0.0
    %1713 = vmatpush2.msra.mxu0 0.0
    %1714 = vmatprep.subr.mxu0 0.0
    %1715 = vmatpush2.msra.mxu0 0.0
    %1716 = vmatprep.subr.mxu0 0.0
    %1717 = vmatpush2.msra.mxu0 0.0
    %1718 = vmatprep.subr.mxu0 0.0
    %1719 = vmatpush2.msra.mxu0 0.0
    %1720 = vmatprep.subr.mxu0 0.0
    %1721 = vmatpush2.msra.mxu0 0.0
    %1722 = vmatprep.subr.mxu0 0.0
    %1723 = vmatpush2.msra.mxu0 0.0
    %1724 = vmatprep.subr.mxu0 0.0
    %1725 = vmatpush2.msra.mxu0 0.0
    %1726 = vmatprep.subr.mxu0 0.0
    %1727 = vmatpush2.msra.mxu0 0.0
    %1728 = vmatprep.subr.mxu0 0.0
    %1729 = vmatpush2.msra.mxu0 0.0
    %1730 = vmatprep.subr.mxu0 0.0
    %1731 = vmatpush2.msra.mxu0 0.0
    %1732 = vmatprep.subr.mxu0 0.0
    %1733 = vmatpush2.msra.mxu0 0.0
    %1734 = vmatprep.subr.mxu0 0.0
    %1735 = vmatpush2.msra.mxu0 0.0
    %1736 = vmatprep.subr.mxu0 0.0
    %1737 = vmatpush2.msra.mxu0 0.0
    %1738 = vmatprep.subr.mxu0 0.0
    %1739 = vmatpush2.msra.mxu0 0.0
    %1740 = vmatprep.subr.mxu0 0.0
    %1741 = vmatpush2.msra.mxu0 0.0
    %1742 = vmatprep.subr.mxu0 0.0
    %1743 = vmatpush2.msra.mxu0 0.0
    %1744 = vmatprep.mubr.f32.mxu0 0.0
    %v1745 = vand.u32 %v1388, 4294901760
    %v1746 = vsub.f32 %v1388, %v1745
    %v1747 = vand.u32 %v1746, 4294901760
    %1748 = vmatmul.mubr.f32.gmra.mxu0 %v1747
    %v1749 = vpop.f32.mrf.mxu0
    %v1750 = vadd.f32 %v1669, %v1749
    %v1751 = vpop.f32.mrf.mxu0
    %1752 = vdwg.mxu0
    %1753 = vmatprep.subr.mxu0 0.0
    %1754 = vmatpush1.msra.mxu0 0.0
    %1755 = vmatprep.subr.mxu0 0.0
    %1756 = vmatpush1.msra.mxu0 0.0
    %1757 = vmatprep.subr.mxu0 0.0
    %1758 = vmatpush1.msra.mxu0 0.0
    %1759 = vmatprep.subr.mxu0 0.0
    %1760 = vmatpush1.msra.mxu0 0.0
    %1761 = vmatprep.subr.mxu0 0.0
    %1762 = vmatpush1.msra.mxu0 0.0
    %1763 = vmatprep.subr.mxu0 0.0
    %1764 = vmatpush1.msra.mxu0 0.0
    %1765 = vmatprep.subr.mxu0 0.0
    %1766 = vmatpush1.msra.mxu0 0.0
    %1767 = vmatprep.subr.mxu0 0.0
    %1768 = vmatpush1.msra.mxu0 0.0
    %1769 = vmatprep.subr.mxu0 0.0
    %v1770 = vand.u32 %v830, 4294901760
    %v1771 = vsub.f32 %v830, %v1770
    %v1772 = vand.u32 %v1771, 4294901760
    %1773 = vmatpush1.msra.mxu0 %v1772
    %1774 = vmatprep.subr.mxu0 0.0
    %v1775 = vand.u32 %v829, 4294901760
    %v1776 = vsub.f32 %v829, %v1775
    %v1777 = vand.u32 %v1776, 4294901760
    %1778 = vmatpush1.msra.mxu0 %v1777
    %1779 = vmatprep.subr.mxu0 0.0
    %v1780 = vand.u32 %v828, 4294901760
    %v1781 = vsub.f32 %v828, %v1780
    %v1782 = vand.u32 %v1781, 4294901760
    %1783 = vmatpush1.msra.mxu0 %v1782
    %1784 = vmatprep.subr.mxu0 0.0
    %v1785 = vand.u32 %v827, 4294901760
    %v1786 = vsub.f32 %v827, %v1785
    %v1787 = vand.u32 %v1786, 4294901760
    %1788 = vmatpush1.msra.mxu0 %v1787
    %1789 = vmatprep.subr.mxu0 0.0
    %v1790 = vand.u32 %v826, 4294901760
    %v1791 = vsub.f32 %v826, %v1790
    %v1792 = vand.u32 %v1791, 4294901760
    %1793 = vmatpush1.msra.mxu0 %v1792
    %1794 = vmatprep.subr.mxu0 0.0
    %v1795 = vand.u32 %v825, 4294901760
    %v1796 = vsub.f32 %v825, %v1795
    %v1797 = vand.u32 %v1796, 4294901760
    %1798 = vmatpush1.msra.mxu0 %v1797
    %1799 = vmatprep.subr.mxu0 0.0
    %v1800 = vand.u32 %v824, 4294901760
    %v1801 = vsub.f32 %v824, %v1800
    %v1802 = vand.u32 %v1801, 4294901760
    %1803 = vmatpush1.msra.mxu0 %v1802
    %1804 = vmatprep.subr.mxu0 0.0
    %v1805 = vand.u32 %v823, 4294901760
    %v1806 = vsub.f32 %v823, %v1805
    %v1807 = vand.u32 %v1806, 4294901760
    %1808 = vmatpush1.msra.mxu0 %v1807
    %1809 = vmatprep.subr.mxu0 0.0
    %1810 = vmatpush2.msra.mxu0 0.0
    %1811 = vmatprep.subr.mxu0 0.0
    %1812 = vmatpush2.msra.mxu0 0.0
    %1813 = vmatprep.subr.mxu0 0.0
    %1814 = vmatpush2.msra.mxu0 0.0
    %1815 = vmatprep.subr.mxu0 0.0
    %1816 = vmatpush2.msra.mxu0 0.0
    %1817 = vmatprep.subr.mxu0 0.0
    %1818 = vmatpush2.msra.mxu0 0.0
    %1819 = vmatprep.subr.mxu0 0.0
    %1820 = vmatpush2.msra.mxu0 0.0
    %1821 = vmatprep.subr.mxu0 0.0
    %1822 = vmatpush2.msra.mxu0 0.0
    %1823 = vmatprep.subr.mxu0 0.0
    %1824 = vmatpush2.msra.mxu0 0.0
    %1825 = vmatprep.subr.mxu0 0.0
    %1826 = vmatpush2.msra.mxu0 0.0
    %1827 = vmatprep.subr.mxu0 0.0
    %1828 = vmatpush2.msra.mxu0 0.0
    %1829 = vmatprep.subr.mxu0 0.0
    %1830 = vmatpush2.msra.mxu0 0.0
    %1831 = vmatprep.subr.mxu0 0.0
    %1832 = vmatpush2.msra.mxu0 0.0
    %1833 = vmatprep.subr.mxu0 0.0
    %1834 = vmatpush2.msra.mxu0 0.0
    %1835 = vmatprep.subr.mxu0 0.0
    %1836 = vmatpush2.msra.mxu0 0.0
    %1837 = vmatprep.subr.mxu0 0.0
    %1838 = vmatpush2.msra.mxu0 0.0
    %1839 = vmatprep.subr.mxu0 0.0
    %1840 = vmatpush2.msra.mxu0 0.0
    %1841 = vmatprep.mubr.f32.mxu0 0.0
    %v1842 = vand.u32 %v1388, 4294901760
    %1843 = vmatmul.mubr.f32.gmra.mxu0 %v1842
    %v1844 = vpop.f32.mrf.mxu0
    %v1845 = vadd.f32 %v1750, %v1844
    %v1846 = vpop.f32.mrf.mxu0
    %1847 = vdwg.mxu0
    %1848 = vmatprep.subr.mxu0 0.0
    %1849 = vmatpush1.msra.mxu0 0.0
    %1850 = vmatprep.subr.mxu0 0.0
    %1851 = vmatpush1.msra.mxu0 0.0
    %1852 = vmatprep.subr.mxu0 0.0
    %1853 = vmatpush1.msra.mxu0 0.0
    %1854 = vmatprep.subr.mxu0 0.0
    %1855 = vmatpush1.msra.mxu0 0.0
    %1856 = vmatprep.subr.mxu0 0.0
    %1857 = vmatpush1.msra.mxu0 0.0
    %1858 = vmatprep.subr.mxu0 0.0
    %1859 = vmatpush1.msra.mxu0 0.0
    %1860 = vmatprep.subr.mxu0 0.0
    %1861 = vmatpush1.msra.mxu0 0.0
    %1862 = vmatprep.subr.mxu0 0.0
    %1863 = vmatpush1.msra.mxu0 0.0
    %1864 = vmatprep.subr.mxu0 0.0
    %v1865 = vand.u32 %v830, 4294901760
    %1866 = vmatpush1.msra.mxu0 %v1865
    %1867 = vmatprep.subr.mxu0 0.0
    %v1868 = vand.u32 %v829, 4294901760
    %1869 = vmatpush1.msra.mxu0 %v1868
    %1870 = vmatprep.subr.mxu0 0.0
    %v1871 = vand.u32 %v828, 4294901760
    %1872 = vmatpush1.msra.mxu0 %v1871
    %1873 = vmatprep.subr.mxu0 0.0
    %v1874 = vand.u32 %v827, 4294901760
    %1875 = vmatpush1.msra.mxu0 %v1874
    %1876 = vmatprep.subr.mxu0 0.0
    %v1877 = vand.u32 %v826, 4294901760
    %1878 = vmatpush1.msra.mxu0 %v1877
    %1879 = vmatprep.subr.mxu0 0.0
    %v1880 = vand.u32 %v825, 4294901760
    %1881 = vmatpush1.msra.mxu0 %v1880
    %1882 = vmatprep.subr.mxu0 0.0
    %v1883 = vand.u32 %v824, 4294901760
    %1884 = vmatpush1.msra.mxu0 %v1883
    %1885 = vmatprep.subr.mxu0 0.0
    %v1886 = vand.u32 %v823, 4294901760
    %1887 = vmatpush1.msra.mxu0 %v1886
    %1888 = vmatprep.subr.mxu0 0.0
    %1889 = vmatpush2.msra.mxu0 0.0
    %1890 = vmatprep.subr.mxu0 0.0
    %1891 = vmatpush2.msra.mxu0 0.0
    %1892 = vmatprep.subr.mxu0 0.0
    %1893 = vmatpush2.msra.mxu0 0.0
    %1894 = vmatprep.subr.mxu0 0.0
    %1895 = vmatpush2.msra.mxu0 0.0
    %1896 = vmatprep.subr.mxu0 0.0
    %1897 = vmatpush2.msra.mxu0 0.0
    %1898 = vmatprep.subr.mxu0 0.0
    %1899 = vmatpush2.msra.mxu0 0.0
    %1900 = vmatprep.subr.mxu0 0.0
    %1901 = vmatpush2.msra.mxu0 0.0
    %1902 = vmatprep.subr.mxu0 0.0
    %1903 = vmatpush2.msra.mxu0 0.0
    %1904 = vmatprep.subr.mxu0 0.0
    %1905 = vmatpush2.msra.mxu0 0.0
    %1906 = vmatprep.subr.mxu0 0.0
    %1907 = vmatpush2.msra.mxu0 0.0
    %1908 = vmatprep.subr.mxu0 0.0
    %1909 = vmatpush2.msra.mxu0 0.0
    %1910 = vmatprep.subr.mxu0 0.0
    %1911 = vmatpush2.msra.mxu0 0.0
    %1912 = vmatprep.subr.mxu0 0.0
    %1913 = vmatpush2.msra.mxu0 0.0
    %1914 = vmatprep.subr.mxu0 0.0
    %1915 = vmatpush2.msra.mxu0 0.0
    %1916 = vmatprep.subr.mxu0 0.0
    %1917 = vmatpush2.msra.mxu0 0.0
    %1918 = vmatprep.subr.mxu0 0.0
    %1919 = vmatpush2.msra.mxu0 0.0
    %1920 = vmatprep.mubr.f32.mxu0 0.0
    %v1921 = vand.u32 %v1388, 4294901760
    %1922 = vmatmul.mubr.f32.gmra.mxu0 %v1921
    %v1923 = vpop.f32.mrf.mxu0
    %v1924 = vadd.f32 %v1845, %v1923
    %v1925 = vpop.f32.mrf.mxu0
    %1926 = vdwg.mxu0
    %v1927 = vadd.f32 %v1924, %v784
    %v1928 = vtanh.pop %v1927
    %v1930 = vsel %vm840, %v1928, 0
    %1932 = vmatprep.subr.mxu0 0.0
    %1933 = vmatpush1.msra.mxu0 0.0
    %1934 = vmatprep.subr.mxu0 0.0
    %1935 = vmatpush1.msra.mxu0 0.0
    %1936 = vmatprep.subr.mxu0 0.0
    %1937 = vmatpush1.msra.mxu0 0.0
    %1938 = vmatprep.subr.mxu0 0.0
    %1939 = vmatpush1.msra.mxu0 0.0
    %1940 = vmatprep.subr.mxu0 0.0
    %1941 = vmatpush1.msra.mxu0 0.0
    %1942 = vmatprep.subr.mxu0 0.0
    %1943 = vmatpush1.msra.mxu0 0.0
    %1944 = vmatprep.subr.mxu0 0.0
    %1945 = vmatpush1.msra.mxu0 0.0
    %1946 = vmatprep.subr.mxu0 0.0
    %1947 = vmatpush1.msra.mxu0 0.0
    %1948 = vmatprep.subr.mxu0 0.0
    %v1949 = vand.u32 %v830, 4294901760
    %1950 = vmatpush1.msra.mxu0 %v1949
    %1951 = vmatprep.subr.mxu0 0.0
    %v1952 = vand.u32 %v829, 4294901760
    %1953 = vmatpush1.msra.mxu0 %v1952
    %1954 = vmatprep.subr.mxu0 0.0
    %v1955 = vand.u32 %v828, 4294901760
    %1956 = vmatpush1.msra.mxu0 %v1955
    %1957 = vmatprep.subr.mxu0 0.0
    %v1958 = vand.u32 %v827, 4294901760
    %1959 = vmatpush1.msra.mxu0 %v1958
    %1960 = vmatprep.subr.mxu0 0.0
    %v1961 = vand.u32 %v826, 4294901760
    %1962 = vmatpush1.msra.mxu0 %v1961
    %1963 = vmatprep.subr.mxu0 0.0
    %v1964 = vand.u32 %v825, 4294901760
    %1965 = vmatpush1.msra.mxu0 %v1964
    %1966 = vmatprep.subr.mxu0 0.0
    %v1967 = vand.u32 %v824, 4294901760
    %1968 = vmatpush1.msra.mxu0 %v1967
    %1969 = vmatprep.subr.mxu0 0.0
    %v1970 = vand.u32 %v823, 4294901760
    %1971 = vmatpush1.msra.mxu0 %v1970
    %1972 = vmatprep.subr.mxu0 0.0
    %1973 = vmatpush2.msra.mxu0 0.0
    %1974 = vmatprep.subr.mxu0 0.0
    %1975 = vmatpush2.msra.mxu0 0.0
    %1976 = vmatprep.subr.mxu0 0.0
    %1977 = vmatpush2.msra.mxu0 0.0
    %1978 = vmatprep.subr.mxu0 0.0
    %1979 = vmatpush2.msra.mxu0 0.0
    %1980 = vmatprep.subr.mxu0 0.0
    %1981 = vmatpush2.msra.mxu0 0.0
    %1982 = vmatprep.subr.mxu0 0.0
    %1983 = vmatpush2.msra.mxu0 0.0
    %1984 = vmatprep.subr.mxu0 0.0
    %1985 = vmatpush2.msra.mxu0 0.0
    %1986 = vmatprep.subr.mxu0 0.0
    %1987 = vmatpush2.msra.mxu0 0.0
    %1988 = vmatprep.subr.mxu0 0.0
    %1989 = vmatpush2.msra.mxu0 0.0
    %1990 = vmatprep.subr.mxu0 0.0
    %1991 = vmatpush2.msra.mxu0 0.0
    %1992 = vmatprep.subr.mxu0 0.0
    %1993 = vmatpush2.msra.mxu0 0.0
    %1994 = vmatprep.subr.mxu0 0.0
    %1995 = vmatpush2.msra.mxu0 0.0
    %1996 = vmatprep.subr.mxu0 0.0
    %1997 = vmatpush2.msra.mxu0 0.0
    %1998 = vmatprep.subr.mxu0 0.0
    %1999 = vmatpush2.msra.mxu0 0.0
    %2000 = vmatprep.subr.mxu0 0.0
    %2001 = vmatpush2.msra.mxu0 0.0
    %2002 = vmatprep.subr.mxu0 0.0
    %2003 = vmatpush2.msra.mxu0 0.0
    %2004 = vmatprep.mubr.f32.mxu0 0.0
    %v2005 = vand.u32 %v1930, 4294901760
    %v2006 = vsub.f32 %v1930, %v2005
    %v2007 = vand.u32 %v2006, 4294901760
    %v2008 = vsub.f32 %v2006, %v2007
    %v2009 = vand.u32 %v2008, 4294901760
    %2010 = vmatmul.mubr.f32.gmra.mxu0 %v2009
    %v2011 = vpop.f32.mrf.mxu0
    %v2012 = vadd.f32 %v838, %v2011
    %v2013 = vpop.f32.mrf.mxu0
    %2014 = vdwg.mxu0
    %2015 = vmatprep.subr.mxu0 0.0
    %2016 = vmatpush1.msra.mxu0 0.0
    %2017 = vmatprep.subr.mxu0 0.0
    %2018 = vmatpush1.msra.mxu0 0.0
    %2019 = vmatprep.subr.mxu0 0.0
    %2020 = vmatpush1.msra.mxu0 0.0
    %2021 = vmatprep.subr.mxu0 0.0
    %2022 = vmatpush1.msra.mxu0 0.0
    %2023 = vmatprep.subr.mxu0 0.0
    %2024 = vmatpush1.msra.mxu0 0.0
    %2025 = vmatprep.subr.mxu0 0.0
    %2026 = vmatpush1.msra.mxu0 0.0
    %2027 = vmatprep.subr.mxu0 0.0
    %2028 = vmatpush1.msra.mxu0 0.0
    %2029 = vmatprep.subr.mxu0 0.0
    %2030 = vmatpush1.msra.mxu0 0.0
    %2031 = vmatprep.subr.mxu0 0.0
    %v2032 = vand.u32 %v830, 4294901760
    %v2033 = vsub.f32 %v830, %v2032
    %v2034 = vand.u32 %v2033, 4294901760
    %v2035 = vsub.f32 %v2033, %v2034
    %v2036 = vand.u32 %v2035, 4294901760
    %2037 = vmatpush1.msra.mxu0 %v2036
    %2038 = vmatprep.subr.mxu0 0.0
    %v2039 = vand.u32 %v829, 4294901760
    %v2040 = vsub.f32 %v829, %v2039
    %v2041 = vand.u32 %v2040, 4294901760
    %v2042 = vsub.f32 %v2040, %v2041
    %v2043 = vand.u32 %v2042, 4294901760
    %2044 = vmatpush1.msra.mxu0 %v2043
    %2045 = vmatprep.subr.mxu0 0.0
    %v2046 = vand.u32 %v828, 4294901760
    %v2047 = vsub.f32 %v828, %v2046
    %v2048 = vand.u32 %v2047, 4294901760
    %v2049 = vsub.f32 %v2047, %v2048
    %v2050 = vand.u32 %v2049, 4294901760
    %2051 = vmatpush1.msra.mxu0 %v2050
    %2052 = vmatprep.subr.mxu0 0.0
    %v2053 = vand.u32 %v827, 4294901760
    %v2054 = vsub.f32 %v827, %v2053
    %v2055 = vand.u32 %v2054, 4294901760
    %v2056 = vsub.f32 %v2054, %v2055
    %v2057 = vand.u32 %v2056, 4294901760
    %2058 = vmatpush1.msra.mxu0 %v2057
    %2059 = vmatprep.subr.mxu0 0.0
    %v2060 = vand.u32 %v826, 4294901760
    %v2061 = vsub.f32 %v826, %v2060
    %v2062 = vand.u32 %v2061, 4294901760
    %v2063 = vsub.f32 %v2061, %v2062
    %v2064 = vand.u32 %v2063, 4294901760
    %2065 = vmatpush1.msra.mxu0 %v2064
    %2066 = vmatprep.subr.mxu0 0.0
    %v2067 = vand.u32 %v825, 4294901760
    %v2068 = vsub.f32 %v825, %v2067
    %v2069 = vand.u32 %v2068, 4294901760
    %v2070 = vsub.f32 %v2068, %v2069
    %v2071 = vand.u32 %v2070, 4294901760
    %2072 = vmatpush1.msra.mxu0 %v2071
    %2073 = vmatprep.subr.mxu0 0.0
    %v2074 = vand.u32 %v824, 4294901760
    %v2075 = vsub.f32 %v824, %v2074
    %v2076 = vand.u32 %v2075, 4294901760
    %v2077 = vsub.f32 %v2075, %v2076
    %v2078 = vand.u32 %v2077, 4294901760
    %2079 = vmatpush1.msra.mxu0 %v2078
    %2080 = vmatprep.subr.mxu0 0.0
    %v2081 = vand.u32 %v823, 4294901760
    %v2082 = vsub.f32 %v823, %v2081
    %v2083 = vand.u32 %v2082, 4294901760
    %v2084 = vsub.f32 %v2082, %v2083
    %v2085 = vand.u32 %v2084, 4294901760
    %2086 = vmatpush1.msra.mxu0 %v2085
    %2087 = vmatprep.subr.mxu0 0.0
    %2088 = vmatpush2.msra.mxu0 0.0
    %2089 = vmatprep.subr.mxu0 0.0
    %2090 = vmatpush2.msra.mxu0 0.0
    %2091 = vmatprep.subr.mxu0 0.0
    %2092 = vmatpush2.msra.mxu0 0.0
    %2093 = vmatprep.subr.mxu0 0.0
    %2094 = vmatpush2.msra.mxu0 0.0
    %2095 = vmatprep.subr.mxu0 0.0
    %2096 = vmatpush2.msra.mxu0 0.0
    %2097 = vmatprep.subr.mxu0 0.0
    %2098 = vmatpush2.msra.mxu0 0.0
    %2099 = vmatprep.subr.mxu0 0.0
    %2100 = vmatpush2.msra.mxu0 0.0
    %2101 = vmatprep.subr.mxu0 0.0
    %2102 = vmatpush2.msra.mxu0 0.0
    %2103 = vmatprep.subr.mxu0 0.0
    %2104 = vmatpush2.msra.mxu0 0.0
    %2105 = vmatprep.subr.mxu0 0.0
    %2106 = vmatpush2.msra.mxu0 0.0
    %2107 = vmatprep.subr.mxu0 0.0
    %2108 = vmatpush2.msra.mxu0 0.0
    %2109 = vmatprep.subr.mxu0 0.0
    %2110 = vmatpush2.msra.mxu0 0.0
    %2111 = vmatprep.subr.mxu0 0.0
    %2112 = vmatpush2.msra.mxu0 0.0
    %2113 = vmatprep.subr.mxu0 0.0
    %2114 = vmatpush2.msra.mxu0 0.0
    %2115 = vmatprep.subr.mxu0 0.0
    %2116 = vmatpush2.msra.mxu0 0.0
    %2117 = vmatprep.subr.mxu0 0.0
    %2118 = vmatpush2.msra.mxu0 0.0
    %2119 = vmatprep.mubr.f32.mxu0 0.0
    %v2120 = vand.u32 %v1930, 4294901760
    %2121 = vmatmul.mubr.f32.gmra.mxu0 %v2120
    %v2122 = vpop.f32.mrf.mxu0
    %v2123 = vadd.f32 %v2012, %v2122
    %v2124 = vpop.f32.mrf.mxu0
    %2125 = vdwg.mxu0
    %2126 = vmatprep.subr.mxu0 0.0
    %2127 = vmatpush1.msra.mxu0 0.0
    %2128 = vmatprep.subr.mxu0 0.0
    %2129 = vmatpush1.msra.mxu0 0.0
    %2130 = vmatprep.subr.mxu0 0.0
    %2131 = vmatpush1.msra.mxu0 0.0
    %2132 = vmatprep.subr.mxu0 0.0
    %2133 = vmatpush1.msra.mxu0 0.0
    %2134 = vmatprep.subr.mxu0 0.0
    %2135 = vmatpush1.msra.mxu0 0.0
    %2136 = vmatprep.subr.mxu0 0.0
    %2137 = vmatpush1.msra.mxu0 0.0
    %2138 = vmatprep.subr.mxu0 0.0
    %2139 = vmatpush1.msra.mxu0 0.0
    %2140 = vmatprep.subr.mxu0 0.0
    %2141 = vmatpush1.msra.mxu0 0.0
    %2142 = vmatprep.subr.mxu0 0.0
    %v2143 = vand.u32 %v830, 4294901760
    %v2144 = vsub.f32 %v830, %v2143
    %2145 = vmatpush1.msra.mxu0 %v2144
    %2146 = vmatprep.subr.mxu0 0.0
    %v2147 = vand.u32 %v829, 4294901760
    %v2148 = vsub.f32 %v829, %v2147
    %2149 = vmatpush1.msra.mxu0 %v2148
    %2150 = vmatprep.subr.mxu0 0.0
    %v2151 = vand.u32 %v828, 4294901760
    %v2152 = vsub.f32 %v828, %v2151
    %2153 = vmatpush1.msra.mxu0 %v2152
    %2154 = vmatprep.subr.mxu0 0.0
    %v2155 = vand.u32 %v827, 4294901760
    %v2156 = vsub.f32 %v827, %v2155
    %2157 = vmatpush1.msra.mxu0 %v2156
    %2158 = vmatprep.subr.mxu0 0.0
    %v2159 = vand.u32 %v826, 4294901760
    %v2160 = vsub.f32 %v826, %v2159
    %2161 = vmatpush1.msra.mxu0 %v2160
    %2162 = vmatprep.subr.mxu0 0.0
    %v2163 = vand.u32 %v825, 4294901760
    %v2164 = vsub.f32 %v825, %v2163
    %2165 = vmatpush1.msra.mxu0 %v2164
    %2166 = vmatprep.subr.mxu0 0.0
    %v2167 = vand.u32 %v824, 4294901760
    %v2168 = vsub.f32 %v824, %v2167
    %2169 = vmatpush1.msra.mxu0 %v2168
    %2170 = vmatprep.subr.mxu0 0.0
    %v2171 = vand.u32 %v823, 4294901760
    %v2172 = vsub.f32 %v823, %v2171
    %2173 = vmatpush1.msra.mxu0 %v2172
    %2174 = vmatprep.subr.mxu0 0.0
    %2175 = vmatpush2.msra.mxu0 0.0
    %2176 = vmatprep.subr.mxu0 0.0
    %2177 = vmatpush2.msra.mxu0 0.0
    %2178 = vmatprep.subr.mxu0 0.0
    %2179 = vmatpush2.msra.mxu0 0.0
    %2180 = vmatprep.subr.mxu0 0.0
    %2181 = vmatpush2.msra.mxu0 0.0
    %2182 = vmatprep.subr.mxu0 0.0
    %2183 = vmatpush2.msra.mxu0 0.0
    %2184 = vmatprep.subr.mxu0 0.0
    %2185 = vmatpush2.msra.mxu0 0.0
    %2186 = vmatprep.subr.mxu0 0.0
    %2187 = vmatpush2.msra.mxu0 0.0
    %2188 = vmatprep.subr.mxu0 0.0
    %2189 = vmatpush2.msra.mxu0 0.0
    %2190 = vmatprep.subr.mxu0 0.0
    %2191 = vmatpush2.msra.mxu0 0.0
    %2192 = vmatprep.subr.mxu0 0.0
    %2193 = vmatpush2.msra.mxu0 0.0
    %2194 = vmatprep.subr.mxu0 0.0
    %2195 = vmatpush2.msra.mxu0 0.0
    %2196 = vmatprep.subr.mxu0 0.0
    %2197 = vmatpush2.msra.mxu0 0.0
    %2198 = vmatprep.subr.mxu0 0.0
    %2199 = vmatpush2.msra.mxu0 0.0
    %2200 = vmatprep.subr.mxu0 0.0
    %2201 = vmatpush2.msra.mxu0 0.0
    %2202 = vmatprep.subr.mxu0 0.0
    %2203 = vmatpush2.msra.mxu0 0.0
    %2204 = vmatprep.subr.mxu0 0.0
    %2205 = vmatpush2.msra.mxu0 0.0
    %2206 = vmatprep.mubr.f32.mxu0 0.0
    %v2207 = vand.u32 %v1930, 4294901760
    %v2208 = vsub.f32 %v1930, %v2207
    %2209 = vmatmul.mubr.f32.gmra.mxu0 %v2208
    %v2210 = vpop.f32.mrf.mxu0
    %v2211 = vadd.f32 %v2123, %v2210
    %v2212 = vpop.f32.mrf.mxu0
    %2213 = vdwg.mxu0
    %2214 = vmatprep.subr.mxu0 0.0
    %2215 = vmatpush1.msra.mxu0 0.0
    %2216 = vmatprep.subr.mxu0 0.0
    %2217 = vmatpush1.msra.mxu0 0.0
    %2218 = vmatprep.subr.mxu0 0.0
    %2219 = vmatpush1.msra.mxu0 0.0
    %2220 = vmatprep.subr.mxu0 0.0
    %2221 = vmatpush1.msra.mxu0 0.0
    %2222 = vmatprep.subr.mxu0 0.0
    %2223 = vmatpush1.msra.mxu0 0.0
    %2224 = vmatprep.subr.mxu0 0.0
    %2225 = vmatpush1.msra.mxu0 0.0
    %2226 = vmatprep.subr.mxu0 0.0
    %2227 = vmatpush1.msra.mxu0 0.0
    %2228 = vmatprep.subr.mxu0 0.0
    %2229 = vmatpush1.msra.mxu0 0.0
    %2230 = vmatprep.subr.mxu0 0.0
    %v2231 = vand.u32 %v830, 4294901760
    %2232 = vmatpush1.msra.mxu0 %v2231
    %2233 = vmatprep.subr.mxu0 0.0
    %v2234 = vand.u32 %v829, 4294901760
    %2235 = vmatpush1.msra.mxu0 %v2234
    %2236 = vmatprep.subr.mxu0 0.0
    %v2237 = vand.u32 %v828, 4294901760
    %2238 = vmatpush1.msra.mxu0 %v2237
    %2239 = vmatprep.subr.mxu0 0.0
    %v2240 = vand.u32 %v827, 4294901760
    %2241 = vmatpush1.msra.mxu0 %v2240
    %2242 = vmatprep.subr.mxu0 0.0
    %v2243 = vand.u32 %v826, 4294901760
    %2244 = vmatpush1.msra.mxu0 %v2243
    %2245 = vmatprep.subr.mxu0 0.0
    %v2246 = vand.u32 %v825, 4294901760
    %2247 = vmatpush1.msra.mxu0 %v2246
    %2248 = vmatprep.subr.mxu0 0.0
    %v2249 = vand.u32 %v824, 4294901760
    %2250 = vmatpush1.msra.mxu0 %v2249
    %2251 = vmatprep.subr.mxu0 0.0
    %v2252 = vand.u32 %v823, 4294901760
    %2253 = vmatpush1.msra.mxu0 %v2252
    %2254 = vmatprep.subr.mxu0 0.0
    %2255 = vmatpush2.msra.mxu0 0.0
    %2256 = vmatprep.subr.mxu0 0.0
    %2257 = vmatpush2.msra.mxu0 0.0
    %2258 = vmatprep.subr.mxu0 0.0
    %2259 = vmatpush2.msra.mxu0 0.0
    %2260 = vmatprep.subr.mxu0 0.0
    %2261 = vmatpush2.msra.mxu0 0.0
    %2262 = vmatprep.subr.mxu0 0.0
    %2263 = vmatpush2.msra.mxu0 0.0
    %2264 = vmatprep.subr.mxu0 0.0
    %2265 = vmatpush2.msra.mxu0 0.0
    %2266 = vmatprep.subr.mxu0 0.0
    %2267 = vmatpush2.msra.mxu0 0.0
    %2268 = vmatprep.subr.mxu0 0.0
    %2269 = vmatpush2.msra.mxu0 0.0
    %2270 = vmatprep.subr.mxu0 0.0
    %2271 = vmatpush2.msra.mxu0 0.0
    %2272 = vmatprep.subr.mxu0 0.0
    %2273 = vmatpush2.msra.mxu0 0.0
    %2274 = vmatprep.subr.mxu0 0.0
    %2275 = vmatpush2.msra.mxu0 0.0
    %2276 = vmatprep.subr.mxu0 0.0
    %2277 = vmatpush2.msra.mxu0 0.0
    %2278 = vmatprep.subr.mxu0 0.0
    %2279 = vmatpush2.msra.mxu0 0.0
    %2280 = vmatprep.subr.mxu0 0.0
    %2281 = vmatpush2.msra.mxu0 0.0
    %2282 = vmatprep.subr.mxu0 0.0
    %2283 = vmatpush2.msra.mxu0 0.0
    %2284 = vmatprep.subr.mxu0 0.0
    %2285 = vmatpush2.msra.mxu0 0.0
    %2286 = vmatprep.mubr.f32.mxu0 0.0
    %v2287 = vand.u32 %v1930, 4294901760
    %v2288 = vsub.f32 %v1930, %v2287
    %v2289 = vand.u32 %v2288, 4294901760
    %2290 = vmatmul.mubr.f32.gmra.mxu0 %v2289
    %v2291 = vpop.f32.mrf.mxu0
    %v2292 = vadd.f32 %v2211, %v2291
    %v2293 = vpop.f32.mrf.mxu0
    %2294 = vdwg.mxu0
    %2295 = vmatprep.subr.mxu0 0.0
    %2296 = vmatpush1.msra.mxu0 0.0
    %2297 = vmatprep.subr.mxu0 0.0
    %2298 = vmatpush1.msra.mxu0 0.0
    %2299 = vmatprep.subr.mxu0 0.0
    %2300 = vmatpush1.msra.mxu0 0.0
    %2301 = vmatprep.subr.mxu0 0.0
    %2302 = vmatpush1.msra.mxu0 0.0
    %2303 = vmatprep.subr.mxu0 0.0
    %2304 = vmatpush1.msra.mxu0 0.0
    %2305 = vmatprep.subr.mxu0 0.0
    %2306 = vmatpush1.msra.mxu0 0.0
    %2307 = vmatprep.subr.mxu0 0.0
    %2308 = vmatpush1.msra.mxu0 0.0
    %2309 = vmatprep.subr.mxu0 0.0
    %2310 = vmatpush1.msra.mxu0 0.0
    %2311 = vmatprep.subr.mxu0 0.0
    %v2312 = vand.u32 %v830, 4294901760
    %v2313 = vsub.f32 %v830, %v2312
    %v2314 = vand.u32 %v2313, 4294901760
    %2315 = vmatpush1.msra.mxu0 %v2314
    %2316 = vmatprep.subr.mxu0 0.0
    %v2317 = vand.u32 %v829, 4294901760
    %v2318 = vsub.f32 %v829, %v2317
    %v2319 = vand.u32 %v2318, 4294901760
    %2320 = vmatpush1.msra.mxu0 %v2319
    %2321 = vmatprep.subr.mxu0 0.0
    %v2322 = vand.u32 %v828, 4294901760
    %v2323 = vsub.f32 %v828, %v2322
    %v2324 = vand.u32 %v2323, 4294901760
    %2325 = vmatpush1.msra.mxu0 %v2324
    %2326 = vmatprep.subr.mxu0 0.0
    %v2327 = vand.u32 %v827, 4294901760
    %v2328 = vsub.f32 %v827, %v2327
    %v2329 = vand.u32 %v2328, 4294901760
    %2330 = vmatpush1.msra.mxu0 %v2329
    %2331 = vmatprep.subr.mxu0 0.0
    %v2332 = vand.u32 %v826, 4294901760
    %v2333 = vsub.f32 %v826, %v2332
    %v2334 = vand.u32 %v2333, 4294901760
    %2335 = vmatpush1.msra.mxu0 %v2334
    %2336 = vmatprep.subr.mxu0 0.0
    %v2337 = vand.u32 %v825, 4294901760
    %v2338 = vsub.f32 %v825, %v2337
    %v2339 = vand.u32 %v2338, 4294901760
    %2340 = vmatpush1.msra.mxu0 %v2339
    %2341 = vmatprep.subr.mxu0 0.0
    %v2342 = vand.u32 %v824, 4294901760
    %v2343 = vsub.f32 %v824, %v2342
    %v2344 = vand.u32 %v2343, 4294901760
    %2345 = vmatpush1.msra.mxu0 %v2344
    %2346 = vmatprep.subr.mxu0 0.0
    %v2347 = vand.u32 %v823, 4294901760
    %v2348 = vsub.f32 %v823, %v2347
    %v2349 = vand.u32 %v2348, 4294901760
    %2350 = vmatpush1.msra.mxu0 %v2349
    %2351 = vmatprep.subr.mxu0 0.0
    %2352 = vmatpush2.msra.mxu0 0.0
    %2353 = vmatprep.subr.mxu0 0.0
    %2354 = vmatpush2.msra.mxu0 0.0
    %2355 = vmatprep.subr.mxu0 0.0
    %2356 = vmatpush2.msra.mxu0 0.0
    %2357 = vmatprep.subr.mxu0 0.0
    %2358 = vmatpush2.msra.mxu0 0.0
    %2359 = vmatprep.subr.mxu0 0.0
    %2360 = vmatpush2.msra.mxu0 0.0
    %2361 = vmatprep.subr.mxu0 0.0
    %2362 = vmatpush2.msra.mxu0 0.0
    %2363 = vmatprep.subr.mxu0 0.0
    %2364 = vmatpush2.msra.mxu0 0.0
    %2365 = vmatprep.subr.mxu0 0.0
    %2366 = vmatpush2.msra.mxu0 0.0
    %2367 = vmatprep.subr.mxu0 0.0
    %2368 = vmatpush2.msra.mxu0 0.0
    %2369 = vmatprep.subr.mxu0 0.0
    %2370 = vmatpush2.msra.mxu0 0.0
    %2371 = vmatprep.subr.mxu0 0.0
    %2372 = vmatpush2.msra.mxu0 0.0
    %2373 = vmatprep.subr.mxu0 0.0
    %2374 = vmatpush2.msra.mxu0 0.0
    %2375 = vmatprep.subr.mxu0 0.0
    %2376 = vmatpush2.msra.mxu0 0.0
    %2377 = vmatprep.subr.mxu0 0.0
    %2378 = vmatpush2.msra.mxu0 0.0
    %2379 = vmatprep.subr.mxu0 0.0
    %2380 = vmatpush2.msra.mxu0 0.0
    %2381 = vmatprep.subr.mxu0 0.0
    %2382 = vmatpush2.msra.mxu0 0.0
    %2383 = vmatprep.mubr.f32.mxu0 0.0
    %v2384 = vand.u32 %v1930, 4294901760
    %2385 = vmatmul.mubr.f32.gmra.mxu0 %v2384
    %v2386 = vpop.f32.mrf.mxu0
    %v2387 = vadd.f32 %v2292, %v2386
    %v2388 = vpop.f32.mrf.mxu0
    %2389 = vdwg.mxu0
    %2390 = vmatprep.subr.mxu0 0.0
    %2391 = vmatpush1.msra.mxu0 0.0
    %2392 = vmatprep.subr.mxu0 0.0
    %2393 = vmatpush1.msra.mxu0 0.0
    %2394 = vmatprep.subr.mxu0 0.0
    %2395 = vmatpush1.msra.mxu0 0.0
    %2396 = vmatprep.subr.mxu0 0.0
    %2397 = vmatpush1.msra.mxu0 0.0
    %2398 = vmatprep.subr.mxu0 0.0
    %2399 = vmatpush1.msra.mxu0 0.0
    %2400 = vmatprep.subr.mxu0 0.0
    %2401 = vmatpush1.msra.mxu0 0.0
    %2402 = vmatprep.subr.mxu0 0.0
    %2403 = vmatpush1.msra.mxu0 0.0
    %2404 = vmatprep.subr.mxu0 0.0
    %2405 = vmatpush1.msra.mxu0 0.0
    %2406 = vmatprep.subr.mxu0 0.0
    %v2407 = vand.u32 %v830, 4294901760
    %2408 = vmatpush1.msra.mxu0 %v2407
    %2409 = vmatprep.subr.mxu0 0.0
    %v2410 = vand.u32 %v829, 4294901760
    %2411 = vmatpush1.msra.mxu0 %v2410
    %2412 = vmatprep.subr.mxu0 0.0
    %v2413 = vand.u32 %v828, 4294901760
    %2414 = vmatpush1.msra.mxu0 %v2413
    %2415 = vmatprep.subr.mxu0 0.0
    %v2416 = vand.u32 %v827, 4294901760
    %2417 = vmatpush1.msra.mxu0 %v2416
    %2418 = vmatprep.subr.mxu0 0.0
    %v2419 = vand.u32 %v826, 4294901760
    %2420 = vmatpush1.msra.mxu0 %v2419
    %2421 = vmatprep.subr.mxu0 0.0
    %v2422 = vand.u32 %v825, 4294901760
    %2423 = vmatpush1.msra.mxu0 %v2422
    %2424 = vmatprep.subr.mxu0 0.0
    %v2425 = vand.u32 %v824, 4294901760
    %2426 = vmatpush1.msra.mxu0 %v2425
    %2427 = vmatprep.subr.mxu0 0.0
    %v2428 = vand.u32 %v823, 4294901760
    %2429 = vmatpush1.msra.mxu0 %v2428
    %2430 = vmatprep.subr.mxu0 0.0
    %2431 = vmatpush2.msra.mxu0 0.0
    %2432 = vmatprep.subr.mxu0 0.0
    %2433 = vmatpush2.msra.mxu0 0.0
    %2434 = vmatprep.subr.mxu0 0.0
    %2435 = vmatpush2.msra.mxu0 0.0
    %2436 = vmatprep.subr.mxu0 0.0
    %2437 = vmatpush2.msra.mxu0 0.0
    %2438 = vmatprep.subr.mxu0 0.0
    %2439 = vmatpush2.msra.mxu0 0.0
    %2440 = vmatprep.subr.mxu0 0.0
    %2441 = vmatpush2.msra.mxu0 0.0
    %2442 = vmatprep.subr.mxu0 0.0
    %2443 = vmatpush2.msra.mxu0 0.0
    %2444 = vmatprep.subr.mxu0 0.0
    %2445 = vmatpush2.msra.mxu0 0.0
    %2446 = vmatprep.subr.mxu0 0.0
    %2447 = vmatpush2.msra.mxu0 0.0
    %2448 = vmatprep.subr.mxu0 0.0
    %2449 = vmatpush2.msra.mxu0 0.0
    %2450 = vmatprep.subr.mxu0 0.0
    %2451 = vmatpush2.msra.mxu0 0.0
    %2452 = vmatprep.subr.mxu0 0.0
    %2453 = vmatpush2.msra.mxu0 0.0
    %2454 = vmatprep.subr.mxu0 0.0
    %2455 = vmatpush2.msra.mxu0 0.0
    %2456 = vmatprep.subr.mxu0 0.0
    %2457 = vmatpush2.msra.mxu0 0.0
    %2458 = vmatprep.subr.mxu0 0.0
    %2459 = vmatpush2.msra.mxu0 0.0
    %2460 = vmatprep.subr.mxu0 0.0
    %2461 = vmatpush2.msra.mxu0 0.0
    %2462 = vmatprep.mubr.f32.mxu0 0.0
    %v2463 = vand.u32 %v1930, 4294901760
    %2464 = vmatmul.mubr.f32.gmra.mxu0 %v2463
    %v2465 = vpop.f32.mrf.mxu0
    %v2466 = vadd.f32 %v2387, %v2465
    %v2467 = vpop.f32.mrf.mxu0
    %2468 = vdwg.mxu0
    %v2469 = vadd.f32 %v2466, %v790
    %v2470 = vtanh.pop %v2469
    %v2472 = vsel %vm840, %v2470, 0
    %2474 = vmatprep.subr.mxu0 0.0
    %2475 = vmatpush1.msra.mxu0 0.0
    %2476 = vmatprep.subr.mxu0 0.0
    %2477 = vmatpush1.msra.mxu0 0.0
    %2478 = vmatprep.subr.mxu0 0.0
    %2479 = vmatpush1.msra.mxu0 0.0
    %2480 = vmatprep.subr.mxu0 0.0
    %2481 = vmatpush1.msra.mxu0 0.0
    %2482 = vmatprep.subr.mxu0 0.0
    %2483 = vmatpush1.msra.mxu0 0.0
    %2484 = vmatprep.subr.mxu0 0.0
    %2485 = vmatpush1.msra.mxu0 0.0
    %2486 = vmatprep.subr.mxu0 0.0
    %2487 = vmatpush1.msra.mxu0 0.0
    %2488 = vmatprep.subr.mxu0 0.0
    %2489 = vmatpush1.msra.mxu0 0.0
    %2490 = vmatprep.subr.mxu0 0.0
    %v2491 = vand.u32 %v830, 4294901760
    %2492 = vmatpush1.msra.mxu0 %v2491
    %2493 = vmatprep.subr.mxu0 0.0
    %v2494 = vand.u32 %v829, 4294901760
    %2495 = vmatpush1.msra.mxu0 %v2494
    %2496 = vmatprep.subr.mxu0 0.0
    %v2497 = vand.u32 %v828, 4294901760
    %2498 = vmatpush1.msra.mxu0 %v2497
    %2499 = vmatprep.subr.mxu0 0.0
    %v2500 = vand.u32 %v827, 4294901760
    %2501 = vmatpush1.msra.mxu0 %v2500
    %2502 = vmatprep.subr.mxu0 0.0
    %v2503 = vand.u32 %v826, 4294901760
    %2504 = vmatpush1.msra.mxu0 %v2503
    %2505 = vmatprep.subr.mxu0 0.0
    %v2506 = vand.u32 %v825, 4294901760
    %2507 = vmatpush1.msra.mxu0 %v2506
    %2508 = vmatprep.subr.mxu0 0.0
    %v2509 = vand.u32 %v824, 4294901760
    %2510 = vmatpush1.msra.mxu0 %v2509
    %2511 = vmatprep.subr.mxu0 0.0
    %v2512 = vand.u32 %v823, 4294901760
    %2513 = vmatpush1.msra.mxu0 %v2512
    %2514 = vmatprep.subr.mxu0 0.0
    %2515 = vmatpush2.msra.mxu0 0.0
    %2516 = vmatprep.subr.mxu0 0.0
    %2517 = vmatpush2.msra.mxu0 0.0
    %2518 = vmatprep.subr.mxu0 0.0
    %2519 = vmatpush2.msra.mxu0 0.0
    %2520 = vmatprep.subr.mxu0 0.0
    %2521 = vmatpush2.msra.mxu0 0.0
    %2522 = vmatprep.subr.mxu0 0.0
    %2523 = vmatpush2.msra.mxu0 0.0
    %2524 = vmatprep.subr.mxu0 0.0
    %2525 = vmatpush2.msra.mxu0 0.0
    %2526 = vmatprep.subr.mxu0 0.0
    %2527 = vmatpush2.msra.mxu0 0.0
    %2528 = vmatprep.subr.mxu0 0.0
    %2529 = vmatpush2.msra.mxu0 0.0
    %2530 = vmatprep.subr.mxu0 0.0
    %2531 = vmatpush2.msra.mxu0 0.0
    %2532 = vmatprep.subr.mxu0 0.0
    %2533 = vmatpush2.msra.mxu0 0.0
    %2534 = vmatprep.subr.mxu0 0.0
    %2535 = vmatpush2.msra.mxu0 0.0
    %2536 = vmatprep.subr.mxu0 0.0
    %2537 = vmatpush2.msra.mxu0 0.0
    %2538 = vmatprep.subr.mxu0 0.0
    %2539 = vmatpush2.msra.mxu0 0.0
    %2540 = vmatprep.subr.mxu0 0.0
    %2541 = vmatpush2.msra.mxu0 0.0
    %2542 = vmatprep.subr.mxu0 0.0
    %2543 = vmatpush2.msra.mxu0 0.0
    %2544 = vmatprep.subr.mxu0 0.0
    %2545 = vmatpush2.msra.mxu0 0.0
    %2546 = vmatprep.mubr.f32.mxu0 0.0
    %v2547 = vand.u32 %v2472, 4294901760
    %v2548 = vsub.f32 %v2472, %v2547
    %v2549 = vand.u32 %v2548, 4294901760
    %v2550 = vsub.f32 %v2548, %v2549
    %v2551 = vand.u32 %v2550, 4294901760
    %2552 = vmatmul.mubr.f32.gmra.mxu0 %v2551
    %v2553 = vpop.f32.mrf.mxu0
    %v2554 = vadd.f32 %v838, %v2553
    %v2555 = vpop.f32.mrf.mxu0
    %2556 = vdwg.mxu0
    %2557 = vmatprep.subr.mxu0 0.0
    %2558 = vmatpush1.msra.mxu0 0.0
    %2559 = vmatprep.subr.mxu0 0.0
    %2560 = vmatpush1.msra.mxu0 0.0
    %2561 = vmatprep.subr.mxu0 0.0
    %2562 = vmatpush1.msra.mxu0 0.0
    %2563 = vmatprep.subr.mxu0 0.0
    %2564 = vmatpush1.msra.mxu0 0.0
    %2565 = vmatprep.subr.mxu0 0.0
    %2566 = vmatpush1.msra.mxu0 0.0
    %2567 = vmatprep.subr.mxu0 0.0
    %2568 = vmatpush1.msra.mxu0 0.0
    %2569 = vmatprep.subr.mxu0 0.0
    %2570 = vmatpush1.msra.mxu0 0.0
    %2571 = vmatprep.subr.mxu0 0.0
    %2572 = vmatpush1.msra.mxu0 0.0
    %2573 = vmatprep.subr.mxu0 0.0
    %v2574 = vand.u32 %v830, 4294901760
    %v2575 = vsub.f32 %v830, %v2574
    %v2576 = vand.u32 %v2575, 4294901760
    %v2577 = vsub.f32 %v2575, %v2576
    %v2578 = vand.u32 %v2577, 4294901760
    %2579 = vmatpush1.msra.mxu0 %v2578
    %2580 = vmatprep.subr.mxu0 0.0
    %v2581 = vand.u32 %v829, 4294901760
    %v2582 = vsub.f32 %v829, %v2581
    %v2583 = vand.u32 %v2582, 4294901760
    %v2584 = vsub.f32 %v2582, %v2583
    %v2585 = vand.u32 %v2584, 4294901760
    %2586 = vmatpush1.msra.mxu0 %v2585
    %2587 = vmatprep.subr.mxu0 0.0
    %v2588 = vand.u32 %v828, 4294901760
    %v2589 = vsub.f32 %v828, %v2588
    %v2590 = vand.u32 %v2589, 4294901760
    %v2591 = vsub.f32 %v2589, %v2590
    %v2592 = vand.u32 %v2591, 4294901760
    %2593 = vmatpush1.msra.mxu0 %v2592
    %2594 = vmatprep.subr.mxu0 0.0
    %v2595 = vand.u32 %v827, 4294901760
    %v2596 = vsub.f32 %v827, %v2595
    %v2597 = vand.u32 %v2596, 4294901760
    %v2598 = vsub.f32 %v2596, %v2597
    %v2599 = vand.u32 %v2598, 4294901760
    %2600 = vmatpush1.msra.mxu0 %v2599
    %2601 = vmatprep.subr.mxu0 0.0
    %v2602 = vand.u32 %v826, 4294901760
    %v2603 = vsub.f32 %v826, %v2602
    %v2604 = vand.u32 %v2603, 4294901760
    %v2605 = vsub.f32 %v2603, %v2604
    %v2606 = vand.u32 %v2605, 4294901760
    %2607 = vmatpush1.msra.mxu0 %v2606
    %2608 = vmatprep.subr.mxu0 0.0
    %v2609 = vand.u32 %v825, 4294901760
    %v2610 = vsub.f32 %v825, %v2609
    %v2611 = vand.u32 %v2610, 4294901760
    %v2612 = vsub.f32 %v2610, %v2611
    %v2613 = vand.u32 %v2612, 4294901760
    %2614 = vmatpush1.msra.mxu0 %v2613
    %2615 = vmatprep.subr.mxu0 0.0
    %v2616 = vand.u32 %v824, 4294901760
    %v2617 = vsub.f32 %v824, %v2616
    %v2618 = vand.u32 %v2617, 4294901760
    %v2619 = vsub.f32 %v2617, %v2618
    %v2620 = vand.u32 %v2619, 4294901760
    %2621 = vmatpush1.msra.mxu0 %v2620
    %2622 = vmatprep.subr.mxu0 0.0
    %v2623 = vand.u32 %v823, 4294901760
    %v2624 = vsub.f32 %v823, %v2623
    %v2625 = vand.u32 %v2624, 4294901760
    %v2626 = vsub.f32 %v2624, %v2625
    %v2627 = vand.u32 %v2626, 4294901760
    %2628 = vmatpush1.msra.mxu0 %v2627
    %2629 = vmatprep.subr.mxu0 0.0
    %2630 = vmatpush2.msra.mxu0 0.0
    %2631 = vmatprep.subr.mxu0 0.0
    %2632 = vmatpush2.msra.mxu0 0.0
    %2633 = vmatprep.subr.mxu0 0.0
    %2634 = vmatpush2.msra.mxu0 0.0
    %2635 = vmatprep.subr.mxu0 0.0
    %2636 = vmatpush2.msra.mxu0 0.0
    %2637 = vmatprep.subr.mxu0 0.0
    %2638 = vmatpush2.msra.mxu0 0.0
    %2639 = vmatprep.subr.mxu0 0.0
    %2640 = vmatpush2.msra.mxu0 0.0
    %2641 = vmatprep.subr.mxu0 0.0
    %2642 = vmatpush2.msra.mxu0 0.0
    %2643 = vmatprep.subr.mxu0 0.0
    %2644 = vmatpush2.msra.mxu0 0.0
    %2645 = vmatprep.subr.mxu0 0.0
    %2646 = vmatpush2.msra.mxu0 0.0
    %2647 = vmatprep.subr.mxu0 0.0
    %2648 = vmatpush2.msra.mxu0 0.0
    %2649 = vmatprep.subr.mxu0 0.0
    %2650 = vmatpush2.msra.mxu0 0.0
    %2651 = vmatprep.subr.mxu0 0.0
    %2652 = vmatpush2.msra.mxu0 0.0
    %2653 = vmatprep.subr.mxu0 0.0
    %2654 = vmatpush2.msra.mxu0 0.0
    %2655 = vmatprep.subr.mxu0 0.0
    %2656 = vmatpush2.msra.mxu0 0.0
    %2657 = vmatprep.subr.mxu0 0.0
    %2658 = vmatpush2.msra.mxu0 0.0
    %2659 = vmatprep.subr.mxu0 0.0
    %2660 = vmatpush2.msra.mxu0 0.0
    %2661 = vmatprep.mubr.f32.mxu0 0.0
    %v2662 = vand.u32 %v2472, 4294901760
    %2663 = vmatmul.mubr.f32.gmra.mxu0 %v2662
    %v2664 = vpop.f32.mrf.mxu0
    %v2665 = vadd.f32 %v2554, %v2664
    %v2666 = vpop.f32.mrf.mxu0
    %2667 = vdwg.mxu0
    %2668 = vmatprep.subr.mxu0 0.0
    %2669 = vmatpush1.msra.mxu0 0.0
    %2670 = vmatprep.subr.mxu0 0.0
    %2671 = vmatpush1.msra.mxu0 0.0
    %2672 = vmatprep.subr.mxu0 0.0
    %2673 = vmatpush1.msra.mxu0 0.0
    %2674 = vmatprep.subr.mxu0 0.0
    %2675 = vmatpush1.msra.mxu0 0.0
    %2676 = vmatprep.subr.mxu0 0.0
    %2677 = vmatpush1.msra.mxu0 0.0
    %2678 = vmatprep.subr.mxu0 0.0
    %2679 = vmatpush1.msra.mxu0 0.0
    %2680 = vmatprep.subr.mxu0 0.0
    %2681 = vmatpush1.msra.mxu0 0.0
    %2682 = vmatprep.subr.mxu0 0.0
    %2683 = vmatpush1.msra.mxu0 0.0
    %2684 = vmatprep.subr.mxu0 0.0
    %v2685 = vand.u32 %v830, 4294901760
    %v2686 = vsub.f32 %v830, %v2685
    %2687 = vmatpush1.msra.mxu0 %v2686
    %2688 = vmatprep.subr.mxu0 0.0
    %v2689 = vand.u32 %v829, 4294901760
    %v2690 = vsub.f32 %v829, %v2689
    %2691 = vmatpush1.msra.mxu0 %v2690
    %2692 = vmatprep.subr.mxu0 0.0
    %v2693 = vand.u32 %v828, 4294901760
    %v2694 = vsub.f32 %v828, %v2693
    %2695 = vmatpush1.msra.mxu0 %v2694
    %2696 = vmatprep.subr.mxu0 0.0
    %v2697 = vand.u32 %v827, 4294901760
    %v2698 = vsub.f32 %v827, %v2697
    %2699 = vmatpush1.msra.mxu0 %v2698
    %2700 = vmatprep.subr.mxu0 0.0
    %v2701 = vand.u32 %v826, 4294901760
    %v2702 = vsub.f32 %v826, %v2701
    %2703 = vmatpush1.msra.mxu0 %v2702
    %2704 = vmatprep.subr.mxu0 0.0
    %v2705 = vand.u32 %v825, 4294901760
    %v2706 = vsub.f32 %v825, %v2705
    %2707 = vmatpush1.msra.mxu0 %v2706
    %2708 = vmatprep.subr.mxu0 0.0
    %v2709 = vand.u32 %v824, 4294901760
    %v2710 = vsub.f32 %v824, %v2709
    %2711 = vmatpush1.msra.mxu0 %v2710
    %2712 = vmatprep.subr.mxu0 0.0
    %v2713 = vand.u32 %v823, 4294901760
    %v2714 = vsub.f32 %v823, %v2713
    %2715 = vmatpush1.msra.mxu0 %v2714
    %2716 = vmatprep.subr.mxu0 0.0
    %2717 = vmatpush2.msra.mxu0 0.0
    %2718 = vmatprep.subr.mxu0 0.0
    %2719 = vmatpush2.msra.mxu0 0.0
    %2720 = vmatprep.subr.mxu0 0.0
    %2721 = vmatpush2.msra.mxu0 0.0
    %2722 = vmatprep.subr.mxu0 0.0
    %2723 = vmatpush2.msra.mxu0 0.0
    %2724 = vmatprep.subr.mxu0 0.0
    %2725 = vmatpush2.msra.mxu0 0.0
    %2726 = vmatprep.subr.mxu0 0.0
    %2727 = vmatpush2.msra.mxu0 0.0
    %2728 = vmatprep.subr.mxu0 0.0
    %2729 = vmatpush2.msra.mxu0 0.0
    %2730 = vmatprep.subr.mxu0 0.0
    %2731 = vmatpush2.msra.mxu0 0.0
    %2732 = vmatprep.subr.mxu0 0.0
    %2733 = vmatpush2.msra.mxu0 0.0
    %2734 = vmatprep.subr.mxu0 0.0
    %2735 = vmatpush2.msra.mxu0 0.0
    %2736 = vmatprep.subr.mxu0 0.0
    %2737 = vmatpush2.msra.mxu0 0.0
    %2738 = vmatprep.subr.mxu0 0.0
    %2739 = vmatpush2.msra.mxu0 0.0
    %2740 = vmatprep.subr.mxu0 0.0
    %2741 = vmatpush2.msra.mxu0 0.0
    %2742 = vmatprep.subr.mxu0 0.0
    %2743 = vmatpush2.msra.mxu0 0.0
    %2744 = vmatprep.subr.mxu0 0.0
    %2745 = vmatpush2.msra.mxu0 0.0
    %2746 = vmatprep.subr.mxu0 0.0
    %2747 = vmatpush2.msra.mxu0 0.0
    %2748 = vmatprep.mubr.f32.mxu0 0.0
    %v2749 = vand.u32 %v2472, 4294901760
    %v2750 = vsub.f32 %v2472, %v2749
    %2751 = vmatmul.mubr.f32.gmra.mxu0 %v2750
    %v2752 = vpop.f32.mrf.mxu0
    %v2753 = vadd.f32 %v2665, %v2752
    %v2754 = vpop.f32.mrf.mxu0
    %2755 = vdwg.mxu0
    %2756 = vmatprep.subr.mxu0 0.0
    %2757 = vmatpush1.msra.mxu0 0.0
    %2758 = vmatprep.subr.mxu0 0.0
    %2759 = vmatpush1.msra.mxu0 0.0
    %2760 = vmatprep.subr.mxu0 0.0
    %2761 = vmatpush1.msra.mxu0 0.0
    %2762 = vmatprep.subr.mxu0 0.0
    %2763 = vmatpush1.msra.mxu0 0.0
    %2764 = vmatprep.subr.mxu0 0.0
    %2765 = vmatpush1.msra.mxu0 0.0
    %2766 = vmatprep.subr.mxu0 0.0
    %2767 = vmatpush1.msra.mxu0 0.0
    %2768 = vmatprep.subr.mxu0 0.0
    %2769 = vmatpush1.msra.mxu0 0.0
    %2770 = vmatprep.subr.mxu0 0.0
    %2771 = vmatpush1.msra.mxu0 0.0
    %2772 = vmatprep.subr.mxu0 0.0
    %v2773 = vand.u32 %v830, 4294901760
    %2774 = vmatpush1.msra.mxu0 %v2773
    %2775 = vmatprep.subr.mxu0 0.0
    %v2776 = vand.u32 %v829, 4294901760
    %2777 = vmatpush1.msra.mxu0 %v2776
    %2778 = vmatprep.subr.mxu0 0.0
    %v2779 = vand.u32 %v828, 4294901760
    %2780 = vmatpush1.msra.mxu0 %v2779
    %2781 = vmatprep.subr.mxu0 0.0
    %v2782 = vand.u32 %v827, 4294901760
    %2783 = vmatpush1.msra.mxu0 %v2782
    %2784 = vmatprep.subr.mxu0 0.0
    %v2785 = vand.u32 %v826, 4294901760
    %2786 = vmatpush1.msra.mxu0 %v2785
    %2787 = vmatprep.subr.mxu0 0.0
    %v2788 = vand.u32 %v825, 4294901760
    %2789 = vmatpush1.msra.mxu0 %v2788
    %2790 = vmatprep.subr.mxu0 0.0
    %v2791 = vand.u32 %v824, 4294901760
    %2792 = vmatpush1.msra.mxu0 %v2791
    %2793 = vmatprep.subr.mxu0 0.0
    %v2794 = vand.u32 %v823, 4294901760
    %2795 = vmatpush1.msra.mxu0 %v2794
    %2796 = vmatprep.subr.mxu0 0.0
    %2797 = vmatpush2.msra.mxu0 0.0
    %2798 = vmatprep.subr.mxu0 0.0
    %2799 = vmatpush2.msra.mxu0 0.0
    %2800 = vmatprep.subr.mxu0 0.0
    %2801 = vmatpush2.msra.mxu0 0.0
    %2802 = vmatprep.subr.mxu0 0.0
    %2803 = vmatpush2.msra.mxu0 0.0
    %2804 = vmatprep.subr.mxu0 0.0
    %2805 = vmatpush2.msra.mxu0 0.0
    %2806 = vmatprep.subr.mxu0 0.0
    %2807 = vmatpush2.msra.mxu0 0.0
    %2808 = vmatprep.subr.mxu0 0.0
    %2809 = vmatpush2.msra.mxu0 0.0
    %2810 = vmatprep.subr.mxu0 0.0
    %2811 = vmatpush2.msra.mxu0 0.0
    %2812 = vmatprep.subr.mxu0 0.0
    %2813 = vmatpush2.msra.mxu0 0.0
    %2814 = vmatprep.subr.mxu0 0.0
    %2815 = vmatpush2.msra.mxu0 0.0
    %2816 = vmatprep.subr.mxu0 0.0
    %2817 = vmatpush2.msra.mxu0 0.0
    %2818 = vmatprep.subr.mxu0 0.0
    %2819 = vmatpush2.msra.mxu0 0.0
    %2820 = vmatprep.subr.mxu0 0.0
    %2821 = vmatpush2.msra.mxu0 0.0
    %2822 = vmatprep.subr.mxu0 0.0
    %2823 = vmatpush2.msra.mxu0 0.0
    %2824 = vmatprep.subr.mxu0 0.0
    %2825 = vmatpush2.msra.mxu0 0.0
    %2826 = vmatprep.subr.mxu0 0.0
    %2827 = vmatpush2.msra.mxu0 0.0
    %2828 = vmatprep.mubr.f32.mxu0 0.0
    %v2829 = vand.u32 %v2472, 4294901760
    %v2830 = vsub.f32 %v2472, %v2829
    %v2831 = vand.u32 %v2830, 4294901760
    %2832 = vmatmul.mubr.f32.gmra.mxu0 %v2831
    %v2833 = vpop.f32.mrf.mxu0
    %v2834 = vadd.f32 %v2753, %v2833
    %v2835 = vpop.f32.mrf.mxu0
    %2836 = vdwg.mxu0
    %2837 = vmatprep.subr.mxu0 0.0
    %2838 = vmatpush1.msra.mxu0 0.0
    %2839 = vmatprep.subr.mxu0 0.0
    %2840 = vmatpush1.msra.mxu0 0.0
    %2841 = vmatprep.subr.mxu0 0.0
    %2842 = vmatpush1.msra.mxu0 0.0
    %2843 = vmatprep.subr.mxu0 0.0
    %2844 = vmatpush1.msra.mxu0 0.0
    %2845 = vmatprep.subr.mxu0 0.0
    %2846 = vmatpush1.msra.mxu0 0.0
    %2847 = vmatprep.subr.mxu0 0.0
    %2848 = vmatpush1.msra.mxu0 0.0
    %2849 = vmatprep.subr.mxu0 0.0
    %2850 = vmatpush1.msra.mxu0 0.0
    %2851 = vmatprep.subr.mxu0 0.0
    %2852 = vmatpush1.msra.mxu0 0.0
    %2853 = vmatprep.subr.mxu0 0.0
    %v2854 = vand.u32 %v830, 4294901760
    %v2855 = vsub.f32 %v830, %v2854
    %v2856 = vand.u32 %v2855, 4294901760
    %2857 = vmatpush1.msra.mxu0 %v2856
    %2858 = vmatprep.subr.mxu0 0.0
    %v2859 = vand.u32 %v829, 4294901760
    %v2860 = vsub.f32 %v829, %v2859
    %v2861 = vand.u32 %v2860, 4294901760
    %2862 = vmatpush1.msra.mxu0 %v2861
    %2863 = vmatprep.subr.mxu0 0.0
    %v2864 = vand.u32 %v828, 4294901760
    %v2865 = vsub.f32 %v828, %v2864
    %v2866 = vand.u32 %v2865, 4294901760
    %2867 = vmatpush1.msra.mxu0 %v2866
    %2868 = vmatprep.subr.mxu0 0.0
    %v2869 = vand.u32 %v827, 4294901760
    %v2870 = vsub.f32 %v827, %v2869
    %v2871 = vand.u32 %v2870, 4294901760
    %2872 = vmatpush1.msra.mxu0 %v2871
    %2873 = vmatprep.subr.mxu0 0.0
    %v2874 = vand.u32 %v826, 4294901760
    %v2875 = vsub.f32 %v826, %v2874
    %v2876 = vand.u32 %v2875, 4294901760
    %2877 = vmatpush1.msra.mxu0 %v2876
    %2878 = vmatprep.subr.mxu0 0.0
    %v2879 = vand.u32 %v825, 4294901760
    %v2880 = vsub.f32 %v825, %v2879
    %v2881 = vand.u32 %v2880, 4294901760
    %2882 = vmatpush1.msra.mxu0 %v2881
    %2883 = vmatprep.subr.mxu0 0.0
    %v2884 = vand.u32 %v824, 4294901760
    %v2885 = vsub.f32 %v824, %v2884
    %v2886 = vand.u32 %v2885, 4294901760
    %2887 = vmatpush1.msra.mxu0 %v2886
    %2888 = vmatprep.subr.mxu0 0.0
    %v2889 = vand.u32 %v823, 4294901760
    %v2890 = vsub.f32 %v823, %v2889
    %v2891 = vand.u32 %v2890, 4294901760
    %2892 = vmatpush1.msra.mxu0 %v2891
    %2893 = vmatprep.subr.mxu0 0.0
    %2894 = vmatpush2.msra.mxu0 0.0
    %2895 = vmatprep.subr.mxu0 0.0
    %2896 = vmatpush2.msra.mxu0 0.0
    %2897 = vmatprep.subr.mxu0 0.0
    %2898 = vmatpush2.msra.mxu0 0.0
    %2899 = vmatprep.subr.mxu0 0.0
    %2900 = vmatpush2.msra.mxu0 0.0
    %2901 = vmatprep.subr.mxu0 0.0
    %2902 = vmatpush2.msra.mxu0 0.0
    %2903 = vmatprep.subr.mxu0 0.0
    %2904 = vmatpush2.msra.mxu0 0.0
    %2905 = vmatprep.subr.mxu0 0.0
    %2906 = vmatpush2.msra.mxu0 0.0
    %2907 = vmatprep.subr.mxu0 0.0
    %2908 = vmatpush2.msra.mxu0 0.0
    %2909 = vmatprep.subr.mxu0 0.0
    %2910 = vmatpush2.msra.mxu0 0.0
    %2911 = vmatprep.subr.mxu0 0.0
    %2912 = vmatpush2.msra.mxu0 0.0
    %2913 = vmatprep.subr.mxu0 0.0
    %2914 = vmatpush2.msra.mxu0 0.0
    %2915 = vmatprep.subr.mxu0 0.0
    %2916 = vmatpush2.msra.mxu0 0.0
    %2917 = vmatprep.subr.mxu0 0.0
    %2918 = vmatpush2.msra.mxu0 0.0
    %2919 = vmatprep.subr.mxu0 0.0
    %2920 = vmatpush2.msra.mxu0 0.0
    %2921 = vmatprep.subr.mxu0 0.0
    %2922 = vmatpush2.msra.mxu0 0.0
    %2923 = vmatprep.subr.mxu0 0.0
    %2924 = vmatpush2.msra.mxu0 0.0
    %2925 = vmatprep.mubr.f32.mxu0 0.0
    %v2926 = vand.u32 %v2472, 4294901760
    %2927 = vmatmul.mubr.f32.gmra.mxu0 %v2926
    %v2928 = vpop.f32.mrf.mxu0
    %v2929 = vadd.f32 %v2834, %v2928
    %v2930 = vpop.f32.mrf.mxu0
    %2931 = vdwg.mxu0
    %2932 = vmatprep.subr.mxu0 0.0
    %2933 = vmatpush1.msra.mxu0 0.0
    %2934 = vmatprep.subr.mxu0 0.0
    %2935 = vmatpush1.msra.mxu0 0.0
    %2936 = vmatprep.subr.mxu0 0.0
    %2937 = vmatpush1.msra.mxu0 0.0
    %2938 = vmatprep.subr.mxu0 0.0
    %2939 = vmatpush1.msra.mxu0 0.0
    %2940 = vmatprep.subr.mxu0 0.0
    %2941 = vmatpush1.msra.mxu0 0.0
    %2942 = vmatprep.subr.mxu0 0.0
    %2943 = vmatpush1.msra.mxu0 0.0
    %2944 = vmatprep.subr.mxu0 0.0
    %2945 = vmatpush1.msra.mxu0 0.0
    %2946 = vmatprep.subr.mxu0 0.0
    %2947 = vmatpush1.msra.mxu0 0.0
    %2948 = vmatprep.subr.mxu0 0.0
    %v2949 = vand.u32 %v830, 4294901760
    %2950 = vmatpush1.msra.mxu0 %v2949
    %2951 = vmatprep.subr.mxu0 0.0
    %v2952 = vand.u32 %v829, 4294901760
    %2953 = vmatpush1.msra.mxu0 %v2952
    %2954 = vmatprep.subr.mxu0 0.0
    %v2955 = vand.u32 %v828, 4294901760
    %2956 = vmatpush1.msra.mxu0 %v2955
    %2957 = vmatprep.subr.mxu0 0.0
    %v2958 = vand.u32 %v827, 4294901760
    %2959 = vmatpush1.msra.mxu0 %v2958
    %2960 = vmatprep.subr.mxu0 0.0
    %v2961 = vand.u32 %v826, 4294901760
    %2962 = vmatpush1.msra.mxu0 %v2961
    %2963 = vmatprep.subr.mxu0 0.0
    %v2964 = vand.u32 %v825, 4294901760
    %2965 = vmatpush1.msra.mxu0 %v2964
    %2966 = vmatprep.subr.mxu0 0.0
    %v2967 = vand.u32 %v824, 4294901760
    %2968 = vmatpush1.msra.mxu0 %v2967
    %2969 = vmatprep.subr.mxu0 0.0
    %v2970 = vand.u32 %v823, 4294901760
    %2971 = vmatpush1.msra.mxu0 %v2970
    %2972 = vmatprep.subr.mxu0 0.0
    %2973 = vmatpush2.msra.mxu0 0.0
    %2974 = vmatprep.subr.mxu0 0.0
    %2975 = vmatpush2.msra.mxu0 0.0
    %2976 = vmatprep.subr.mxu0 0.0
    %2977 = vmatpush2.msra.mxu0 0.0
    %2978 = vmatprep.subr.mxu0 0.0
    %2979 = vmatpush2.msra.mxu0 0.0
    %2980 = vmatprep.subr.mxu0 0.0
    %2981 = vmatpush2.msra.mxu0 0.0
    %2982 = vmatprep.subr.mxu0 0.0
    %2983 = vmatpush2.msra.mxu0 0.0
    %2984 = vmatprep.subr.mxu0 0.0
    %2985 = vmatpush2.msra.mxu0 0.0
    %2986 = vmatprep.subr.mxu0 0.0
    %2987 = vmatpush2.msra.mxu0 0.0
    %2988 = vmatprep.subr.mxu0 0.0
    %2989 = vmatpush2.msra.mxu0 0.0
    %2990 = vmatprep.subr.mxu0 0.0
    %2991 = vmatpush2.msra.mxu0 0.0
    %2992 = vmatprep.subr.mxu0 0.0
    %2993 = vmatpush2.msra.mxu0 0.0
    %2994 = vmatprep.subr.mxu0 0.0
    %2995 = vmatpush2.msra.mxu0 0.0
    %2996 = vmatprep.subr.mxu0 0.0
    %2997 = vmatpush2.msra.mxu0 0.0
    %2998 = vmatprep.subr.mxu0 0.0
    %2999 = vmatpush2.msra.mxu0 0.0
    %3000 = vmatprep.subr.mxu0 0.0
    %3001 = vmatpush2.msra.mxu0 0.0
    %3002 = vmatprep.subr.mxu0 0.0
    %3003 = vmatpush2.msra.mxu0 0.0
    %3004 = vmatprep.mubr.f32.mxu0 0.0
    %v3005 = vand.u32 %v2472, 4294901760
    %3006 = vmatmul.mubr.f32.gmra.mxu0 %v3005
    %v3007 = vpop.f32.mrf.mxu0
    %v3008 = vadd.f32 %v2929, %v3007
    %v3009 = vpop.f32.mrf.mxu0
    %3010 = vdwg.mxu0
    %v3011 = vadd.f32 %v3008, %v796
    %v3012 = vtanh.pop %v3011
    %v3014 = vsel %vm840, %v3012, 0
    %3016 = vmatprep.subr.mxu0 0.0
    %3017 = vmatpush1.msra.mxu0 0.0
    %3018 = vmatprep.subr.mxu0 0.0
    %3019 = vmatpush1.msra.mxu0 0.0
    %3020 = vmatprep.subr.mxu0 0.0
    %3021 = vmatpush1.msra.mxu0 0.0
    %3022 = vmatprep.subr.mxu0 0.0
    %3023 = vmatpush1.msra.mxu0 0.0
    %3024 = vmatprep.subr.mxu0 0.0
    %3025 = vmatpush1.msra.mxu0 0.0
    %3026 = vmatprep.subr.mxu0 0.0
    %3027 = vmatpush1.msra.mxu0 0.0
    %3028 = vmatprep.subr.mxu0 0.0
    %3029 = vmatpush1.msra.mxu0 0.0
    %3030 = vmatprep.subr.mxu0 0.0
    %3031 = vmatpush1.msra.mxu0 0.0
    %3032 = vmatprep.subr.mxu0 0.0
    %v3033 = vand.u32 %v830, 4294901760
    %3034 = vmatpush1.msra.mxu0 %v3033
    %3035 = vmatprep.subr.mxu0 0.0
    %v3036 = vand.u32 %v829, 4294901760
    %3037 = vmatpush1.msra.mxu0 %v3036
    %3038 = vmatprep.subr.mxu0 0.0
    %v3039 = vand.u32 %v828, 4294901760
    %3040 = vmatpush1.msra.mxu0 %v3039
    %3041 = vmatprep.subr.mxu0 0.0
    %v3042 = vand.u32 %v827, 4294901760
    %3043 = vmatpush1.msra.mxu0 %v3042
    %3044 = vmatprep.subr.mxu0 0.0
    %v3045 = vand.u32 %v826, 4294901760
    %3046 = vmatpush1.msra.mxu0 %v3045
    %3047 = vmatprep.subr.mxu0 0.0
    %v3048 = vand.u32 %v825, 4294901760
    %3049 = vmatpush1.msra.mxu0 %v3048
    %3050 = vmatprep.subr.mxu0 0.0
    %v3051 = vand.u32 %v824, 4294901760
    %3052 = vmatpush1.msra.mxu0 %v3051
    %3053 = vmatprep.subr.mxu0 0.0
    %v3054 = vand.u32 %v823, 4294901760
    %3055 = vmatpush1.msra.mxu0 %v3054
    %3056 = vmatprep.subr.mxu0 0.0
    %3057 = vmatpush2.msra.mxu0 0.0
    %3058 = vmatprep.subr.mxu0 0.0
    %3059 = vmatpush2.msra.mxu0 0.0
    %3060 = vmatprep.subr.mxu0 0.0
    %3061 = vmatpush2.msra.mxu0 0.0
    %3062 = vmatprep.subr.mxu0 0.0
    %3063 = vmatpush2.msra.mxu0 0.0
    %3064 = vmatprep.subr.mxu0 0.0
    %3065 = vmatpush2.msra.mxu0 0.0
    %3066 = vmatprep.subr.mxu0 0.0
    %3067 = vmatpush2.msra.mxu0 0.0
    %3068 = vmatprep.subr.mxu0 0.0
    %3069 = vmatpush2.msra.mxu0 0.0
    %3070 = vmatprep.subr.mxu0 0.0
    %3071 = vmatpush2.msra.mxu0 0.0
    %3072 = vmatprep.subr.mxu0 0.0
    %3073 = vmatpush2.msra.mxu0 0.0
    %3074 = vmatprep.subr.mxu0 0.0
    %3075 = vmatpush2.msra.mxu0 0.0
    %3076 = vmatprep.subr.mxu0 0.0
    %3077 = vmatpush2.msra.mxu0 0.0
    %3078 = vmatprep.subr.mxu0 0.0
    %3079 = vmatpush2.msra.mxu0 0.0
    %3080 = vmatprep.subr.mxu0 0.0
    %3081 = vmatpush2.msra.mxu0 0.0
    %3082 = vmatprep.subr.mxu0 0.0
    %3083 = vmatpush2.msra.mxu0 0.0
    %3084 = vmatprep.subr.mxu0 0.0
    %3085 = vmatpush2.msra.mxu0 0.0
    %3086 = vmatprep.subr.mxu0 0.0
    %3087 = vmatpush2.msra.mxu0 0.0
    %3088 = vmatprep.mubr.f32.mxu0 0.0
    %v3089 = vand.u32 %v3014, 4294901760
    %v3090 = vsub.f32 %v3014, %v3089
    %v3091 = vand.u32 %v3090, 4294901760
    %v3092 = vsub.f32 %v3090, %v3091
    %v3093 = vand.u32 %v3092, 4294901760
    %3094 = vmatmul.mubr.f32.gmra.mxu0 %v3093
    %v3095 = vpop.f32.mrf.mxu0
    %v3096 = vadd.f32 %v838, %v3095
    %v3097 = vpop.f32.mrf.mxu0
    %3098 = vdwg.mxu0
    %3099 = vmatprep.subr.mxu0 0.0
    %3100 = vmatpush1.msra.mxu0 0.0
    %3101 = vmatprep.subr.mxu0 0.0
    %3102 = vmatpush1.msra.mxu0 0.0
    %3103 = vmatprep.subr.mxu0 0.0
    %3104 = vmatpush1.msra.mxu0 0.0
    %3105 = vmatprep.subr.mxu0 0.0
    %3106 = vmatpush1.msra.mxu0 0.0
    %3107 = vmatprep.subr.mxu0 0.0
    %3108 = vmatpush1.msra.mxu0 0.0
    %3109 = vmatprep.subr.mxu0 0.0
    %3110 = vmatpush1.msra.mxu0 0.0
    %3111 = vmatprep.subr.mxu0 0.0
    %3112 = vmatpush1.msra.mxu0 0.0
    %3113 = vmatprep.subr.mxu0 0.0
    %3114 = vmatpush1.msra.mxu0 0.0
    %3115 = vmatprep.subr.mxu0 0.0
    %v3116 = vand.u32 %v830, 4294901760
    %v3117 = vsub.f32 %v830, %v3116
    %v3118 = vand.u32 %v3117, 4294901760
    %v3119 = vsub.f32 %v3117, %v3118
    %v3120 = vand.u32 %v3119, 4294901760
    %3121 = vmatpush1.msra.mxu0 %v3120
    %3122 = vmatprep.subr.mxu0 0.0
    %v3123 = vand.u32 %v829, 4294901760
    %v3124 = vsub.f32 %v829, %v3123
    %v3125 = vand.u32 %v3124, 4294901760
    %v3126 = vsub.f32 %v3124, %v3125
    %v3127 = vand.u32 %v3126, 4294901760
    %3128 = vmatpush1.msra.mxu0 %v3127
    %3129 = vmatprep.subr.mxu0 0.0
    %v3130 = vand.u32 %v828, 4294901760
    %v3131 = vsub.f32 %v828, %v3130
    %v3132 = vand.u32 %v3131, 4294901760
    %v3133 = vsub.f32 %v3131, %v3132
    %v3134 = vand.u32 %v3133, 4294901760
    %3135 = vmatpush1.msra.mxu0 %v3134
    %3136 = vmatprep.subr.mxu0 0.0
    %v3137 = vand.u32 %v827, 4294901760
    %v3138 = vsub.f32 %v827, %v3137
    %v3139 = vand.u32 %v3138, 4294901760
    %v3140 = vsub.f32 %v3138, %v3139
    %v3141 = vand.u32 %v3140, 4294901760
    %3142 = vmatpush1.msra.mxu0 %v3141
    %3143 = vmatprep.subr.mxu0 0.0
    %v3144 = vand.u32 %v826, 4294901760
    %v3145 = vsub.f32 %v826, %v3144
    %v3146 = vand.u32 %v3145, 4294901760
    %v3147 = vsub.f32 %v3145, %v3146
    %v3148 = vand.u32 %v3147, 4294901760
    %3149 = vmatpush1.msra.mxu0 %v3148
    %3150 = vmatprep.subr.mxu0 0.0
    %v3151 = vand.u32 %v825, 4294901760
    %v3152 = vsub.f32 %v825, %v3151
    %v3153 = vand.u32 %v3152, 4294901760
    %v3154 = vsub.f32 %v3152, %v3153
    %v3155 = vand.u32 %v3154, 4294901760
    %3156 = vmatpush1.msra.mxu0 %v3155
    %3157 = vmatprep.subr.mxu0 0.0
    %v3158 = vand.u32 %v824, 4294901760
    %v3159 = vsub.f32 %v824, %v3158
    %v3160 = vand.u32 %v3159, 4294901760
    %v3161 = vsub.f32 %v3159, %v3160
    %v3162 = vand.u32 %v3161, 4294901760
    %3163 = vmatpush1.msra.mxu0 %v3162
    %3164 = vmatprep.subr.mxu0 0.0
    %v3165 = vand.u32 %v823, 4294901760
    %v3166 = vsub.f32 %v823, %v3165
    %v3167 = vand.u32 %v3166, 4294901760
    %v3168 = vsub.f32 %v3166, %v3167
    %v3169 = vand.u32 %v3168, 4294901760
    %3170 = vmatpush1.msra.mxu0 %v3169
    %3171 = vmatprep.subr.mxu0 0.0
    %3172 = vmatpush2.msra.mxu0 0.0
    %3173 = vmatprep.subr.mxu0 0.0
    %3174 = vmatpush2.msra.mxu0 0.0
    %3175 = vmatprep.subr.mxu0 0.0
    %3176 = vmatpush2.msra.mxu0 0.0
    %3177 = vmatprep.subr.mxu0 0.0
    %3178 = vmatpush2.msra.mxu0 0.0
    %3179 = vmatprep.subr.mxu0 0.0
    %3180 = vmatpush2.msra.mxu0 0.0
    %3181 = vmatprep.subr.mxu0 0.0
    %3182 = vmatpush2.msra.mxu0 0.0
    %3183 = vmatprep.subr.mxu0 0.0
    %3184 = vmatpush2.msra.mxu0 0.0
    %3185 = vmatprep.subr.mxu0 0.0
    %3186 = vmatpush2.msra.mxu0 0.0
    %3187 = vmatprep.subr.mxu0 0.0
    %3188 = vmatpush2.msra.mxu0 0.0
    %3189 = vmatprep.subr.mxu0 0.0
    %3190 = vmatpush2.msra.mxu0 0.0
    %3191 = vmatprep.subr.mxu0 0.0
    %3192 = vmatpush2.msra.mxu0 0.0
    %3193 = vmatprep.subr.mxu0 0.0
    %3194 = vmatpush2.msra.mxu0 0.0
    %3195 = vmatprep.subr.mxu0 0.0
    %3196 = vmatpush2.msra.mxu0 0.0
    %3197 = vmatprep.subr.mxu0 0.0
    %3198 = vmatpush2.msra.mxu0 0.0
    %3199 = vmatprep.subr.mxu0 0.0
    %3200 = vmatpush2.msra.mxu0 0.0
    %3201 = vmatprep.subr.mxu0 0.0
    %3202 = vmatpush2.msra.mxu0 0.0
    %3203 = vmatprep.mubr.f32.mxu0 0.0
    %v3204 = vand.u32 %v3014, 4294901760
    %3205 = vmatmul.mubr.f32.gmra.mxu0 %v3204
    %v3206 = vpop.f32.mrf.mxu0
    %v3207 = vadd.f32 %v3096, %v3206
    %v3208 = vpop.f32.mrf.mxu0
    %3209 = vdwg.mxu0
    %3210 = vmatprep.subr.mxu0 0.0
    %3211 = vmatpush1.msra.mxu0 0.0
    %3212 = vmatprep.subr.mxu0 0.0
    %3213 = vmatpush1.msra.mxu0 0.0
    %3214 = vmatprep.subr.mxu0 0.0
    %3215 = vmatpush1.msra.mxu0 0.0
    %3216 = vmatprep.subr.mxu0 0.0
    %3217 = vmatpush1.msra.mxu0 0.0
    %3218 = vmatprep.subr.mxu0 0.0
    %3219 = vmatpush1.msra.mxu0 0.0
    %3220 = vmatprep.subr.mxu0 0.0
    %3221 = vmatpush1.msra.mxu0 0.0
    %3222 = vmatprep.subr.mxu0 0.0
    %3223 = vmatpush1.msra.mxu0 0.0
    %3224 = vmatprep.subr.mxu0 0.0
    %3225 = vmatpush1.msra.mxu0 0.0
    %3226 = vmatprep.subr.mxu0 0.0
    %v3227 = vand.u32 %v830, 4294901760
    %v3228 = vsub.f32 %v830, %v3227
    %3229 = vmatpush1.msra.mxu0 %v3228
    %3230 = vmatprep.subr.mxu0 0.0
    %v3231 = vand.u32 %v829, 4294901760
    %v3232 = vsub.f32 %v829, %v3231
    %3233 = vmatpush1.msra.mxu0 %v3232
    %3234 = vmatprep.subr.mxu0 0.0
    %v3235 = vand.u32 %v828, 4294901760
    %v3236 = vsub.f32 %v828, %v3235
    %3237 = vmatpush1.msra.mxu0 %v3236
    %3238 = vmatprep.subr.mxu0 0.0
    %v3239 = vand.u32 %v827, 4294901760
    %v3240 = vsub.f32 %v827, %v3239
    %3241 = vmatpush1.msra.mxu0 %v3240
    %3242 = vmatprep.subr.mxu0 0.0
    %v3243 = vand.u32 %v826, 4294901760
    %v3244 = vsub.f32 %v826, %v3243
    %3245 = vmatpush1.msra.mxu0 %v3244
    %3246 = vmatprep.subr.mxu0 0.0
    %v3247 = vand.u32 %v825, 4294901760
    %v3248 = vsub.f32 %v825, %v3247
    %3249 = vmatpush1.msra.mxu0 %v3248
    %3250 = vmatprep.subr.mxu0 0.0
    %v3251 = vand.u32 %v824, 4294901760
    %v3252 = vsub.f32 %v824, %v3251
    %3253 = vmatpush1.msra.mxu0 %v3252
    %3254 = vmatprep.subr.mxu0 0.0
    %v3255 = vand.u32 %v823, 4294901760
    %v3256 = vsub.f32 %v823, %v3255
    %3257 = vmatpush1.msra.mxu0 %v3256
    %3258 = vmatprep.subr.mxu0 0.0
    %3259 = vmatpush2.msra.mxu0 0.0
    %3260 = vmatprep.subr.mxu0 0.0
    %3261 = vmatpush2.msra.mxu0 0.0
    %3262 = vmatprep.subr.mxu0 0.0
    %3263 = vmatpush2.msra.mxu0 0.0
    %3264 = vmatprep.subr.mxu0 0.0
    %3265 = vmatpush2.msra.mxu0 0.0
    %3266 = vmatprep.subr.mxu0 0.0
    %3267 = vmatpush2.msra.mxu0 0.0
    %3268 = vmatprep.subr.mxu0 0.0
    %3269 = vmatpush2.msra.mxu0 0.0
    %3270 = vmatprep.subr.mxu0 0.0
    %3271 = vmatpush2.msra.mxu0 0.0
    %3272 = vmatprep.subr.mxu0 0.0
    %3273 = vmatpush2.msra.mxu0 0.0
    %3274 = vmatprep.subr.mxu0 0.0
    %3275 = vmatpush2.msra.mxu0 0.0
    %3276 = vmatprep.subr.mxu0 0.0
    %3277 = vmatpush2.msra.mxu0 0.0
    %3278 = vmatprep.subr.mxu0 0.0
    %3279 = vmatpush2.msra.mxu0 0.0
    %3280 = vmatprep.subr.mxu0 0.0
    %3281 = vmatpush2.msra.mxu0 0.0
    %3282 = vmatprep.subr.mxu0 0.0
    %3283 = vmatpush2.msra.mxu0 0.0
    %3284 = vmatprep.subr.mxu0 0.0
    %3285 = vmatpush2.msra.mxu0 0.0
    %3286 = vmatprep.subr.mxu0 0.0
    %3287 = vmatpush2.msra.mxu0 0.0
    %3288 = vmatprep.subr.mxu0 0.0
    %3289 = vmatpush2.msra.mxu0 0.0
    %3290 = vmatprep.mubr.f32.mxu0 0.0
    %v3291 = vand.u32 %v3014, 4294901760
    %v3292 = vsub.f32 %v3014, %v3291
    %3293 = vmatmul.mubr.f32.gmra.mxu0 %v3292
    %v3294 = vpop.f32.mrf.mxu0
    %v3295 = vadd.f32 %v3207, %v3294
    %v3296 = vpop.f32.mrf.mxu0
    %3297 = vdwg.mxu0
    %3298 = vmatprep.subr.mxu0 0.0
    %3299 = vmatpush1.msra.mxu0 0.0
    %3300 = vmatprep.subr.mxu0 0.0
    %3301 = vmatpush1.msra.mxu0 0.0
    %3302 = vmatprep.subr.mxu0 0.0
    %3303 = vmatpush1.msra.mxu0 0.0
    %3304 = vmatprep.subr.mxu0 0.0
    %3305 = vmatpush1.msra.mxu0 0.0
    %3306 = vmatprep.subr.mxu0 0.0
    %3307 = vmatpush1.msra.mxu0 0.0
    %3308 = vmatprep.subr.mxu0 0.0
    %3309 = vmatpush1.msra.mxu0 0.0
    %3310 = vmatprep.subr.mxu0 0.0
    %3311 = vmatpush1.msra.mxu0 0.0
    %3312 = vmatprep.subr.mxu0 0.0
    %3313 = vmatpush1.msra.mxu0 0.0
    %3314 = vmatprep.subr.mxu0 0.0
    %v3315 = vand.u32 %v830, 4294901760
    %3316 = vmatpush1.msra.mxu0 %v3315
    %3317 = vmatprep.subr.mxu0 0.0
    %v3318 = vand.u32 %v829, 4294901760
    %3319 = vmatpush1.msra.mxu0 %v3318
    %3320 = vmatprep.subr.mxu0 0.0
    %v3321 = vand.u32 %v828, 4294901760
    %3322 = vmatpush1.msra.mxu0 %v3321
    %3323 = vmatprep.subr.mxu0 0.0
    %v3324 = vand.u32 %v827, 4294901760
    %3325 = vmatpush1.msra.mxu0 %v3324
    %3326 = vmatprep.subr.mxu0 0.0
    %v3327 = vand.u32 %v826, 4294901760
    %3328 = vmatpush1.msra.mxu0 %v3327
    %3329 = vmatprep.subr.mxu0 0.0
    %v3330 = vand.u32 %v825, 4294901760
    %3331 = vmatpush1.msra.mxu0 %v3330
    %3332 = vmatprep.subr.mxu0 0.0
    %v3333 = vand.u32 %v824, 4294901760
    %3334 = vmatpush1.msra.mxu0 %v3333
    %3335 = vmatprep.subr.mxu0 0.0
    %v3336 = vand.u32 %v823, 4294901760
    %3337 = vmatpush1.msra.mxu0 %v3336
    %3338 = vmatprep.subr.mxu0 0.0
    %3339 = vmatpush2.msra.mxu0 0.0
    %3340 = vmatprep.subr.mxu0 0.0
    %3341 = vmatpush2.msra.mxu0 0.0
    %3342 = vmatprep.subr.mxu0 0.0
    %3343 = vmatpush2.msra.mxu0 0.0
    %3344 = vmatprep.subr.mxu0 0.0
    %3345 = vmatpush2.msra.mxu0 0.0
    %3346 = vmatprep.subr.mxu0 0.0
    %3347 = vmatpush2.msra.mxu0 0.0
    %3348 = vmatprep.subr.mxu0 0.0
    %3349 = vmatpush2.msra.mxu0 0.0
    %3350 = vmatprep.subr.mxu0 0.0
    %3351 = vmatpush2.msra.mxu0 0.0
    %3352 = vmatprep.subr.mxu0 0.0
    %3353 = vmatpush2.msra.mxu0 0.0
    %3354 = vmatprep.subr.mxu0 0.0
    %3355 = vmatpush2.msra.mxu0 0.0
    %3356 = vmatprep.subr.mxu0 0.0
    %3357 = vmatpush2.msra.mxu0 0.0
    %3358 = vmatprep.subr.mxu0 0.0
    %3359 = vmatpush2.msra.mxu0 0.0
    %3360 = vmatprep.subr.mxu0 0.0
    %3361 = vmatpush2.msra.mxu0 0.0
    %3362 = vmatprep.subr.mxu0 0.0
    %3363 = vmatpush2.msra.mxu0 0.0
    %3364 = vmatprep.subr.mxu0 0.0
    %3365 = vmatpush2.msra.mxu0 0.0
    %3366 = vmatprep.subr.mxu0 0.0
    %3367 = vmatpush2.msra.mxu0 0.0
    %3368 = vmatprep.subr.mxu0 0.0
    %3369 = vmatpush2.msra.mxu0 0.0
    %3370 = vmatprep.mubr.f32.mxu0 0.0
    %v3371 = vand.u32 %v3014, 4294901760
    %v3372 = vsub.f32 %v3014, %v3371
    %v3373 = vand.u32 %v3372, 4294901760
    %3374 = vmatmul.mubr.f32.gmra.mxu0 %v3373
    %v3375 = vpop.f32.mrf.mxu0
    %v3376 = vadd.f32 %v3295, %v3375
    %v3377 = vpop.f32.mrf.mxu0
    %3378 = vdwg.mxu0
    %3379 = vmatprep.subr.mxu0 0.0
    %3380 = vmatpush1.msra.mxu0 0.0
    %3381 = vmatprep.subr.mxu0 0.0
    %3382 = vmatpush1.msra.mxu0 0.0
    %3383 = vmatprep.subr.mxu0 0.0
    %3384 = vmatpush1.msra.mxu0 0.0
    %3385 = vmatprep.subr.mxu0 0.0
    %3386 = vmatpush1.msra.mxu0 0.0
    %3387 = vmatprep.subr.mxu0 0.0
    %3388 = vmatpush1.msra.mxu0 0.0
    %3389 = vmatprep.subr.mxu0 0.0
    %3390 = vmatpush1.msra.mxu0 0.0
    %3391 = vmatprep.subr.mxu0 0.0
    %3392 = vmatpush1.msra.mxu0 0.0
    %3393 = vmatprep.subr.mxu0 0.0
    %3394 = vmatpush1.msra.mxu0 0.0
    %3395 = vmatprep.subr.mxu0 0.0
    %v3396 = vand.u32 %v830, 4294901760
    %v3397 = vsub.f32 %v830, %v3396
    %v3398 = vand.u32 %v3397, 4294901760
    %3399 = vmatpush1.msra.mxu0 %v3398
    %3400 = vmatprep.subr.mxu0 0.0
    %v3401 = vand.u32 %v829, 4294901760
    %v3402 = vsub.f32 %v829, %v3401
    %v3403 = vand.u32 %v3402, 4294901760
    %3404 = vmatpush1.msra.mxu0 %v3403
    %3405 = vmatprep.subr.mxu0 0.0
    %v3406 = vand.u32 %v828, 4294901760
    %v3407 = vsub.f32 %v828, %v3406
    %v3408 = vand.u32 %v3407, 4294901760
    %3409 = vmatpush1.msra.mxu0 %v3408
    %3410 = vmatprep.subr.mxu0 0.0
    %v3411 = vand.u32 %v827, 4294901760
    %v3412 = vsub.f32 %v827, %v3411
    %v3413 = vand.u32 %v3412, 4294901760
    %3414 = vmatpush1.msra.mxu0 %v3413
    %3415 = vmatprep.subr.mxu0 0.0
    %v3416 = vand.u32 %v826, 4294901760
    %v3417 = vsub.f32 %v826, %v3416
    %v3418 = vand.u32 %v3417, 4294901760
    %3419 = vmatpush1.msra.mxu0 %v3418
    %3420 = vmatprep.subr.mxu0 0.0
    %v3421 = vand.u32 %v825, 4294901760
    %v3422 = vsub.f32 %v825, %v3421
    %v3423 = vand.u32 %v3422, 4294901760
    %3424 = vmatpush1.msra.mxu0 %v3423
    %3425 = vmatprep.subr.mxu0 0.0
    %v3426 = vand.u32 %v824, 4294901760
    %v3427 = vsub.f32 %v824, %v3426
    %v3428 = vand.u32 %v3427, 4294901760
    %3429 = vmatpush1.msra.mxu0 %v3428
    %3430 = vmatprep.subr.mxu0 0.0
    %v3431 = vand.u32 %v823, 4294901760
    %v3432 = vsub.f32 %v823, %v3431
    %v3433 = vand.u32 %v3432, 4294901760
    %3434 = vmatpush1.msra.mxu0 %v3433
    %3435 = vmatprep.subr.mxu0 0.0
    %3436 = vmatpush2.msra.mxu0 0.0
    %3437 = vmatprep.subr.mxu0 0.0
    %3438 = vmatpush2.msra.mxu0 0.0
    %3439 = vmatprep.subr.mxu0 0.0
    %3440 = vmatpush2.msra.mxu0 0.0
    %3441 = vmatprep.subr.mxu0 0.0
    %3442 = vmatpush2.msra.mxu0 0.0
    %3443 = vmatprep.subr.mxu0 0.0
    %3444 = vmatpush2.msra.mxu0 0.0
    %3445 = vmatprep.subr.mxu0 0.0
    %3446 = vmatpush2.msra.mxu0 0.0
    %3447 = vmatprep.subr.mxu0 0.0
    %3448 = vmatpush2.msra.mxu0 0.0
    %3449 = vmatprep.subr.mxu0 0.0
    %3450 = vmatpush2.msra.mxu0 0.0
    %3451 = vmatprep.subr.mxu0 0.0
    %3452 = vmatpush2.msra.mxu0 0.0
    %3453 = vmatprep.subr.mxu0 0.0
    %3454 = vmatpush2.msra.mxu0 0.0
    %3455 = vmatprep.subr.mxu0 0.0
    %3456 = vmatpush2.msra.mxu0 0.0
    %3457 = vmatprep.subr.mxu0 0.0
    %3458 = vmatpush2.msra.mxu0 0.0
    %3459 = vmatprep.subr.mxu0 0.0
    %3460 = vmatpush2.msra.mxu0 0.0
    %3461 = vmatprep.subr.mxu0 0.0
    %3462 = vmatpush2.msra.mxu0 0.0
    %3463 = vmatprep.subr.mxu0 0.0
    %3464 = vmatpush2.msra.mxu0 0.0
    %3465 = vmatprep.subr.mxu0 0.0
    %3466 = vmatpush2.msra.mxu0 0.0
    %3467 = vmatprep.mubr.f32.mxu0 0.0
    %v3468 = vand.u32 %v3014, 4294901760
    %3469 = vmatmul.mubr.f32.gmra.mxu0 %v3468
    %v3470 = vpop.f32.mrf.mxu0
    %v3471 = vadd.f32 %v3376, %v3470
    %v3472 = vpop.f32.mrf.mxu0
    %3473 = vdwg.mxu0
    %3474 = vmatprep.subr.mxu0 0.0
    %3475 = vmatpush1.msra.mxu0 0.0
    %3476 = vmatprep.subr.mxu0 0.0
    %3477 = vmatpush1.msra.mxu0 0.0
    %3478 = vmatprep.subr.mxu0 0.0
    %3479 = vmatpush1.msra.mxu0 0.0
    %3480 = vmatprep.subr.mxu0 0.0
    %3481 = vmatpush1.msra.mxu0 0.0
    %3482 = vmatprep.subr.mxu0 0.0
    %3483 = vmatpush1.msra.mxu0 0.0
    %3484 = vmatprep.subr.mxu0 0.0
    %3485 = vmatpush1.msra.mxu0 0.0
    %3486 = vmatprep.subr.mxu0 0.0
    %3487 = vmatpush1.msra.mxu0 0.0
    %3488 = vmatprep.subr.mxu0 0.0
    %3489 = vmatpush1.msra.mxu0 0.0
    %3490 = vmatprep.subr.mxu0 0.0
    %v3491 = vand.u32 %v830, 4294901760
    %3492 = vmatpush1.msra.mxu0 %v3491
    %3493 = vmatprep.subr.mxu0 0.0
    %v3494 = vand.u32 %v829, 4294901760
    %3495 = vmatpush1.msra.mxu0 %v3494
    %3496 = vmatprep.subr.mxu0 0.0
    %v3497 = vand.u32 %v828, 4294901760
    %3498 = vmatpush1.msra.mxu0 %v3497
    %3499 = vmatprep.subr.mxu0 0.0
    %v3500 = vand.u32 %v827, 4294901760
    %3501 = vmatpush1.msra.mxu0 %v3500
    %3502 = vmatprep.subr.mxu0 0.0
    %v3503 = vand.u32 %v826, 4294901760
    %3504 = vmatpush1.msra.mxu0 %v3503
    %3505 = vmatprep.subr.mxu0 0.0
    %v3506 = vand.u32 %v825, 4294901760
    %3507 = vmatpush1.msra.mxu0 %v3506
    %3508 = vmatprep.subr.mxu0 0.0
    %v3509 = vand.u32 %v824, 4294901760
    %3510 = vmatpush1.msra.mxu0 %v3509
    %3511 = vmatprep.subr.mxu0 0.0
    %v3512 = vand.u32 %v823, 4294901760
    %3513 = vmatpush1.msra.mxu0 %v3512
    %3514 = vmatprep.subr.mxu0 0.0
    %3515 = vmatpush2.msra.mxu0 0.0
    %3516 = vmatprep.subr.mxu0 0.0
    %3517 = vmatpush2.msra.mxu0 0.0
    %3518 = vmatprep.subr.mxu0 0.0
    %3519 = vmatpush2.msra.mxu0 0.0
    %3520 = vmatprep.subr.mxu0 0.0
    %3521 = vmatpush2.msra.mxu0 0.0
    %3522 = vmatprep.subr.mxu0 0.0
    %3523 = vmatpush2.msra.mxu0 0.0
    %3524 = vmatprep.subr.mxu0 0.0
    %3525 = vmatpush2.msra.mxu0 0.0
    %3526 = vmatprep.subr.mxu0 0.0
    %3527 = vmatpush2.msra.mxu0 0.0
    %3528 = vmatprep.subr.mxu0 0.0
    %3529 = vmatpush2.msra.mxu0 0.0
    %3530 = vmatprep.subr.mxu0 0.0
    %3531 = vmatpush2.msra.mxu0 0.0
    %3532 = vmatprep.subr.mxu0 0.0
    %3533 = vmatpush2.msra.mxu0 0.0
    %3534 = vmatprep.subr.mxu0 0.0
    %3535 = vmatpush2.msra.mxu0 0.0
    %3536 = vmatprep.subr.mxu0 0.0
    %3537 = vmatpush2.msra.mxu0 0.0
    %3538 = vmatprep.subr.mxu0 0.0
    %3539 = vmatpush2.msra.mxu0 0.0
    %3540 = vmatprep.subr.mxu0 0.0
    %3541 = vmatpush2.msra.mxu0 0.0
    %3542 = vmatprep.subr.mxu0 0.0
    %3543 = vmatpush2.msra.mxu0 0.0
    %3544 = vmatprep.subr.mxu0 0.0
    %3545 = vmatpush2.msra.mxu0 0.0
    %3546 = vmatprep.mubr.f32.mxu0 0.0
    %v3547 = vand.u32 %v3014, 4294901760
    %3548 = vmatmul.mubr.f32.gmra.mxu0 %v3547
    %v3549 = vpop.f32.mrf.mxu0
    %v3550 = vadd.f32 %v3471, %v3549
    %v3551 = vpop.f32.mrf.mxu0
    %3552 = vdwg.mxu0
    %v3553 = vadd.f32 %v3550, %v802
    %v3554 = vtanh.pop %v3553
    %v3556 = vsel %vm840, %v3554, 0
    %3558 = vmatprep.subr.mxu0 0.0
    %3559 = vmatpush1.msra.mxu0 0.0
    %3560 = vmatprep.subr.mxu0 0.0
    %3561 = vmatpush1.msra.mxu0 0.0
    %3562 = vmatprep.subr.mxu0 0.0
    %3563 = vmatpush1.msra.mxu0 0.0
    %3564 = vmatprep.subr.mxu0 0.0
    %3565 = vmatpush1.msra.mxu0 0.0
    %3566 = vmatprep.subr.mxu0 0.0
    %3567 = vmatpush1.msra.mxu0 0.0
    %3568 = vmatprep.subr.mxu0 0.0
    %3569 = vmatpush1.msra.mxu0 0.0
    %3570 = vmatprep.subr.mxu0 0.0
    %3571 = vmatpush1.msra.mxu0 0.0
    %3572 = vmatprep.subr.mxu0 0.0
    %3573 = vmatpush1.msra.mxu0 0.0
    %3574 = vmatprep.subr.mxu0 0.0
    %v3575 = vand.u32 %v830, 4294901760
    %3576 = vmatpush1.msra.mxu0 %v3575
    %3577 = vmatprep.subr.mxu0 0.0
    %v3578 = vand.u32 %v829, 4294901760
    %3579 = vmatpush1.msra.mxu0 %v3578
    %3580 = vmatprep.subr.mxu0 0.0
    %v3581 = vand.u32 %v828, 4294901760
    %3582 = vmatpush1.msra.mxu0 %v3581
    %3583 = vmatprep.subr.mxu0 0.0
    %v3584 = vand.u32 %v827, 4294901760
    %3585 = vmatpush1.msra.mxu0 %v3584
    %3586 = vmatprep.subr.mxu0 0.0
    %v3587 = vand.u32 %v826, 4294901760
    %3588 = vmatpush1.msra.mxu0 %v3587
    %3589 = vmatprep.subr.mxu0 0.0
    %v3590 = vand.u32 %v825, 4294901760
    %3591 = vmatpush1.msra.mxu0 %v3590
    %3592 = vmatprep.subr.mxu0 0.0
    %v3593 = vand.u32 %v824, 4294901760
    %3594 = vmatpush1.msra.mxu0 %v3593
    %3595 = vmatprep.subr.mxu0 0.0
    %v3596 = vand.u32 %v823, 4294901760
    %3597 = vmatpush1.msra.mxu0 %v3596
    %3598 = vmatprep.subr.mxu0 0.0
    %3599 = vmatpush2.msra.mxu0 0.0
    %3600 = vmatprep.subr.mxu0 0.0
    %3601 = vmatpush2.msra.mxu0 0.0
    %3602 = vmatprep.subr.mxu0 0.0
    %3603 = vmatpush2.msra.mxu0 0.0
    %3604 = vmatprep.subr.mxu0 0.0
    %3605 = vmatpush2.msra.mxu0 0.0
    %3606 = vmatprep.subr.mxu0 0.0
    %3607 = vmatpush2.msra.mxu0 0.0
    %3608 = vmatprep.subr.mxu0 0.0
    %3609 = vmatpush2.msra.mxu0 0.0
    %3610 = vmatprep.subr.mxu0 0.0
    %3611 = vmatpush2.msra.mxu0 0.0
    %3612 = vmatprep.subr.mxu0 0.0
    %3613 = vmatpush2.msra.mxu0 0.0
    %3614 = vmatprep.subr.mxu0 0.0
    %3615 = vmatpush2.msra.mxu0 0.0
    %3616 = vmatprep.subr.mxu0 0.0
    %3617 = vmatpush2.msra.mxu0 0.0
    %3618 = vmatprep.subr.mxu0 0.0
    %3619 = vmatpush2.msra.mxu0 0.0
    %3620 = vmatprep.subr.mxu0 0.0
    %3621 = vmatpush2.msra.mxu0 0.0
    %3622 = vmatprep.subr.mxu0 0.0
    %3623 = vmatpush2.msra.mxu0 0.0
    %3624 = vmatprep.subr.mxu0 0.0
    %3625 = vmatpush2.msra.mxu0 0.0
    %3626 = vmatprep.subr.mxu0 0.0
    %3627 = vmatpush2.msra.mxu0 0.0
    %3628 = vmatprep.subr.mxu0 0.0
    %3629 = vmatpush2.msra.mxu0 0.0
    %3630 = vmatprep.mubr.f32.mxu0 0.0
    %v3631 = vand.u32 %v3556, 4294901760
    %v3632 = vsub.f32 %v3556, %v3631
    %v3633 = vand.u32 %v3632, 4294901760
    %v3634 = vsub.f32 %v3632, %v3633
    %v3635 = vand.u32 %v3634, 4294901760
    %3636 = vmatmul.mubr.f32.gmra.mxu0 %v3635
    %v3637 = vpop.f32.mrf.mxu0
    %v3638 = vadd.f32 %v838, %v3637
    %v3639 = vpop.f32.mrf.mxu0
    %3640 = vdwg.mxu0
    %3641 = vmatprep.subr.mxu0 0.0
    %3642 = vmatpush1.msra.mxu0 0.0
    %3643 = vmatprep.subr.mxu0 0.0
    %3644 = vmatpush1.msra.mxu0 0.0
    %3645 = vmatprep.subr.mxu0 0.0
    %3646 = vmatpush1.msra.mxu0 0.0
    %3647 = vmatprep.subr.mxu0 0.0
    %3648 = vmatpush1.msra.mxu0 0.0
    %3649 = vmatprep.subr.mxu0 0.0
    %3650 = vmatpush1.msra.mxu0 0.0
    %3651 = vmatprep.subr.mxu0 0.0
    %3652 = vmatpush1.msra.mxu0 0.0
    %3653 = vmatprep.subr.mxu0 0.0
    %3654 = vmatpush1.msra.mxu0 0.0
    %3655 = vmatprep.subr.mxu0 0.0
    %3656 = vmatpush1.msra.mxu0 0.0
    %3657 = vmatprep.subr.mxu0 0.0
    %v3658 = vand.u32 %v830, 4294901760
    %v3659 = vsub.f32 %v830, %v3658
    %v3660 = vand.u32 %v3659, 4294901760
    %v3661 = vsub.f32 %v3659, %v3660
    %v3662 = vand.u32 %v3661, 4294901760
    %3663 = vmatpush1.msra.mxu0 %v3662
    %3664 = vmatprep.subr.mxu0 0.0
    %v3665 = vand.u32 %v829, 4294901760
    %v3666 = vsub.f32 %v829, %v3665
    %v3667 = vand.u32 %v3666, 4294901760
    %v3668 = vsub.f32 %v3666, %v3667
    %v3669 = vand.u32 %v3668, 4294901760
    %3670 = vmatpush1.msra.mxu0 %v3669
    %3671 = vmatprep.subr.mxu0 0.0
    %v3672 = vand.u32 %v828, 4294901760
    %v3673 = vsub.f32 %v828, %v3672
    %v3674 = vand.u32 %v3673, 4294901760
    %v3675 = vsub.f32 %v3673, %v3674
    %v3676 = vand.u32 %v3675, 4294901760
    %3677 = vmatpush1.msra.mxu0 %v3676
    %3678 = vmatprep.subr.mxu0 0.0
    %v3679 = vand.u32 %v827, 4294901760
    %v3680 = vsub.f32 %v827, %v3679
    %v3681 = vand.u32 %v3680, 4294901760
    %v3682 = vsub.f32 %v3680, %v3681
    %v3683 = vand.u32 %v3682, 4294901760
    %3684 = vmatpush1.msra.mxu0 %v3683
    %3685 = vmatprep.subr.mxu0 0.0
    %v3686 = vand.u32 %v826, 4294901760
    %v3687 = vsub.f32 %v826, %v3686
    %v3688 = vand.u32 %v3687, 4294901760
    %v3689 = vsub.f32 %v3687, %v3688
    %v3690 = vand.u32 %v3689, 4294901760
    %3691 = vmatpush1.msra.mxu0 %v3690
    %3692 = vmatprep.subr.mxu0 0.0
    %v3693 = vand.u32 %v825, 4294901760
    %v3694 = vsub.f32 %v825, %v3693
    %v3695 = vand.u32 %v3694, 4294901760
    %v3696 = vsub.f32 %v3694, %v3695
    %v3697 = vand.u32 %v3696, 4294901760
    %3698 = vmatpush1.msra.mxu0 %v3697
    %3699 = vmatprep.subr.mxu0 0.0
    %v3700 = vand.u32 %v824, 4294901760
    %v3701 = vsub.f32 %v824, %v3700
    %v3702 = vand.u32 %v3701, 4294901760
    %v3703 = vsub.f32 %v3701, %v3702
    %v3704 = vand.u32 %v3703, 4294901760
    %3705 = vmatpush1.msra.mxu0 %v3704
    %3706 = vmatprep.subr.mxu0 0.0
    %v3707 = vand.u32 %v823, 4294901760
    %v3708 = vsub.f32 %v823, %v3707
    %v3709 = vand.u32 %v3708, 4294901760
    %v3710 = vsub.f32 %v3708, %v3709
    %v3711 = vand.u32 %v3710, 4294901760
    %3712 = vmatpush1.msra.mxu0 %v3711
    %3713 = vmatprep.subr.mxu0 0.0
    %3714 = vmatpush2.msra.mxu0 0.0
    %3715 = vmatprep.subr.mxu0 0.0
    %3716 = vmatpush2.msra.mxu0 0.0
    %3717 = vmatprep.subr.mxu0 0.0
    %3718 = vmatpush2.msra.mxu0 0.0
    %3719 = vmatprep.subr.mxu0 0.0
    %3720 = vmatpush2.msra.mxu0 0.0
    %3721 = vmatprep.subr.mxu0 0.0
    %3722 = vmatpush2.msra.mxu0 0.0
    %3723 = vmatprep.subr.mxu0 0.0
    %3724 = vmatpush2.msra.mxu0 0.0
    %3725 = vmatprep.subr.mxu0 0.0
    %3726 = vmatpush2.msra.mxu0 0.0
    %3727 = vmatprep.subr.mxu0 0.0
    %3728 = vmatpush2.msra.mxu0 0.0
    %3729 = vmatprep.subr.mxu0 0.0
    %3730 = vmatpush2.msra.mxu0 0.0
    %3731 = vmatprep.subr.mxu0 0.0
    %3732 = vmatpush2.msra.mxu0 0.0
    %3733 = vmatprep.subr.mxu0 0.0
    %3734 = vmatpush2.msra.mxu0 0.0
    %3735 = vmatprep.subr.mxu0 0.0
    %3736 = vmatpush2.msra.mxu0 0.0
    %3737 = vmatprep.subr.mxu0 0.0
    %3738 = vmatpush2.msra.mxu0 0.0
    %3739 = vmatprep.subr.mxu0 0.0
    %3740 = vmatpush2.msra.mxu0 0.0
    %3741 = vmatprep.subr.mxu0 0.0
    %3742 = vmatpush2.msra.mxu0 0.0
    %3743 = vmatprep.subr.mxu0 0.0
    %3744 = vmatpush2.msra.mxu0 0.0
    %3745 = vmatprep.mubr.f32.mxu0 0.0
    %v3746 = vand.u32 %v3556, 4294901760
    %3747 = vmatmul.mubr.f32.gmra.mxu0 %v3746
    %v3748 = vpop.f32.mrf.mxu0
    %v3749 = vadd.f32 %v3638, %v3748
    %v3750 = vpop.f32.mrf.mxu0
    %3751 = vdwg.mxu0
    %3752 = vmatprep.subr.mxu0 0.0
    %3753 = vmatpush1.msra.mxu0 0.0
    %3754 = vmatprep.subr.mxu0 0.0
    %3755 = vmatpush1.msra.mxu0 0.0
    %3756 = vmatprep.subr.mxu0 0.0
    %3757 = vmatpush1.msra.mxu0 0.0
    %3758 = vmatprep.subr.mxu0 0.0
    %3759 = vmatpush1.msra.mxu0 0.0
    %3760 = vmatprep.subr.mxu0 0.0
    %3761 = vmatpush1.msra.mxu0 0.0
    %3762 = vmatprep.subr.mxu0 0.0
    %3763 = vmatpush1.msra.mxu0 0.0
    %3764 = vmatprep.subr.mxu0 0.0
    %3765 = vmatpush1.msra.mxu0 0.0
    %3766 = vmatprep.subr.mxu0 0.0
    %3767 = vmatpush1.msra.mxu0 0.0
    %3768 = vmatprep.subr.mxu0 0.0
    %v3769 = vand.u32 %v830, 4294901760
    %v3770 = vsub.f32 %v830, %v3769
    %3771 = vmatpush1.msra.mxu0 %v3770
    %3772 = vmatprep.subr.mxu0 0.0
    %v3773 = vand.u32 %v829, 4294901760
    %v3774 = vsub.f32 %v829, %v3773
    %3775 = vmatpush1.msra.mxu0 %v3774
    %3776 = vmatprep.subr.mxu0 0.0
    %v3777 = vand.u32 %v828, 4294901760
    %v3778 = vsub.f32 %v828, %v3777
    %3779 = vmatpush1.msra.mxu0 %v3778
    %3780 = vmatprep.subr.mxu0 0.0
    %v3781 = vand.u32 %v827, 4294901760
    %v3782 = vsub.f32 %v827, %v3781
    %3783 = vmatpush1.msra.mxu0 %v3782
    %3784 = vmatprep.subr.mxu0 0.0
    %v3785 = vand.u32 %v826, 4294901760
    %v3786 = vsub.f32 %v826, %v3785
    %3787 = vmatpush1.msra.mxu0 %v3786
    %3788 = vmatprep.subr.mxu0 0.0
    %v3789 = vand.u32 %v825, 4294901760
    %v3790 = vsub.f32 %v825, %v3789
    %3791 = vmatpush1.msra.mxu0 %v3790
    %3792 = vmatprep.subr.mxu0 0.0
    %v3793 = vand.u32 %v824, 4294901760
    %v3794 = vsub.f32 %v824, %v3793
    %3795 = vmatpush1.msra.mxu0 %v3794
    %3796 = vmatprep.subr.mxu0 0.0
    %v3797 = vand.u32 %v823, 4294901760
    %v3798 = vsub.f32 %v823, %v3797
    %3799 = vmatpush1.msra.mxu0 %v3798
    %3800 = vmatprep.subr.mxu0 0.0
    %3801 = vmatpush2.msra.mxu0 0.0
    %3802 = vmatprep.subr.mxu0 0.0
    %3803 = vmatpush2.msra.mxu0 0.0
    %3804 = vmatprep.subr.mxu0 0.0
    %3805 = vmatpush2.msra.mxu0 0.0
    %3806 = vmatprep.subr.mxu0 0.0
    %3807 = vmatpush2.msra.mxu0 0.0
    %3808 = vmatprep.subr.mxu0 0.0
    %3809 = vmatpush2.msra.mxu0 0.0
    %3810 = vmatprep.subr.mxu0 0.0
    %3811 = vmatpush2.msra.mxu0 0.0
    %3812 = vmatprep.subr.mxu0 0.0
    %3813 = vmatpush2.msra.mxu0 0.0
    %3814 = vmatprep.subr.mxu0 0.0
    %3815 = vmatpush2.msra.mxu0 0.0
    %3816 = vmatprep.subr.mxu0 0.0
    %3817 = vmatpush2.msra.mxu0 0.0
    %3818 = vmatprep.subr.mxu0 0.0
    %3819 = vmatpush2.msra.mxu0 0.0
    %3820 = vmatprep.subr.mxu0 0.0
    %3821 = vmatpush2.msra.mxu0 0.0
    %3822 = vmatprep.subr.mxu0 0.0
    %3823 = vmatpush2.msra.mxu0 0.0
    %3824 = vmatprep.subr.mxu0 0.0
    %3825 = vmatpush2.msra.mxu0 0.0
    %3826 = vmatprep.subr.mxu0 0.0
    %3827 = vmatpush2.msra.mxu0 0.0
    %3828 = vmatprep.subr.mxu0 0.0
    %3829 = vmatpush2.msra.mxu0 0.0
    %3830 = vmatprep.subr.mxu0 0.0
    %3831 = vmatpush2.msra.mxu0 0.0
    %3832 = vmatprep.mubr.f32.mxu0 0.0
    %v3833 = vand.u32 %v3556, 4294901760
    %v3834 = vsub.f32 %v3556, %v3833
    %3835 = vmatmul.mubr.f32.gmra.mxu0 %v3834
    %v3836 = vpop.f32.mrf.mxu0
    %v3837 = vadd.f32 %v3749, %v3836
    %v3838 = vpop.f32.mrf.mxu0
    %3839 = vdwg.mxu0
    %3840 = vmatprep.subr.mxu0 0.0
    %3841 = vmatpush1.msra.mxu0 0.0
    %3842 = vmatprep.subr.mxu0 0.0
    %3843 = vmatpush1.msra.mxu0 0.0
    %3844 = vmatprep.subr.mxu0 0.0
    %3845 = vmatpush1.msra.mxu0 0.0
    %3846 = vmatprep.subr.mxu0 0.0
    %3847 = vmatpush1.msra.mxu0 0.0
    %3848 = vmatprep.subr.mxu0 0.0
    %3849 = vmatpush1.msra.mxu0 0.0
    %3850 = vmatprep.subr.mxu0 0.0
    %3851 = vmatpush1.msra.mxu0 0.0
    %3852 = vmatprep.subr.mxu0 0.0
    %3853 = vmatpush1.msra.mxu0 0.0
    %3854 = vmatprep.subr.mxu0 0.0
    %3855 = vmatpush1.msra.mxu0 0.0
    %3856 = vmatprep.subr.mxu0 0.0
    %v3857 = vand.u32 %v830, 4294901760
    %3858 = vmatpush1.msra.mxu0 %v3857
    %3859 = vmatprep.subr.mxu0 0.0
    %v3860 = vand.u32 %v829, 4294901760
    %3861 = vmatpush1.msra.mxu0 %v3860
    %3862 = vmatprep.subr.mxu0 0.0
    %v3863 = vand.u32 %v828, 4294901760
    %3864 = vmatpush1.msra.mxu0 %v3863
    %3865 = vmatprep.subr.mxu0 0.0
    %v3866 = vand.u32 %v827, 4294901760
    %3867 = vmatpush1.msra.mxu0 %v3866
    %3868 = vmatprep.subr.mxu0 0.0
    %v3869 = vand.u32 %v826, 4294901760
    %3870 = vmatpush1.msra.mxu0 %v3869
    %3871 = vmatprep.subr.mxu0 0.0
    %v3872 = vand.u32 %v825, 4294901760
    %3873 = vmatpush1.msra.mxu0 %v3872
    %3874 = vmatprep.subr.mxu0 0.0
    %v3875 = vand.u32 %v824, 4294901760
    %3876 = vmatpush1.msra.mxu0 %v3875
    %3877 = vmatprep.subr.mxu0 0.0
    %v3878 = vand.u32 %v823, 4294901760
    %3879 = vmatpush1.msra.mxu0 %v3878
    %3880 = vmatprep.subr.mxu0 0.0
    %3881 = vmatpush2.msra.mxu0 0.0
    %3882 = vmatprep.subr.mxu0 0.0
    %3883 = vmatpush2.msra.mxu0 0.0
    %3884 = vmatprep.subr.mxu0 0.0
    %3885 = vmatpush2.msra.mxu0 0.0
    %3886 = vmatprep.subr.mxu0 0.0
    %3887 = vmatpush2.msra.mxu0 0.0
    %3888 = vmatprep.subr.mxu0 0.0
    %3889 = vmatpush2.msra.mxu0 0.0
    %3890 = vmatprep.subr.mxu0 0.0
    %3891 = vmatpush2.msra.mxu0 0.0
    %3892 = vmatprep.subr.mxu0 0.0
    %3893 = vmatpush2.msra.mxu0 0.0
    %3894 = vmatprep.subr.mxu0 0.0
    %3895 = vmatpush2.msra.mxu0 0.0
    %3896 = vmatprep.subr.mxu0 0.0
    %3897 = vmatpush2.msra.mxu0 0.0
    %3898 = vmatprep.subr.mxu0 0.0
    %3899 = vmatpush2.msra.mxu0 0.0
    %3900 = vmatprep.subr.mxu0 0.0
    %3901 = vmatpush2.msra.mxu0 0.0
    %3902 = vmatprep.subr.mxu0 0.0
    %3903 = vmatpush2.msra.mxu0 0.0
    %3904 = vmatprep.subr.mxu0 0.0
    %3905 = vmatpush2.msra.mxu0 0.0
    %3906 = vmatprep.subr.mxu0 0.0
    %3907 = vmatpush2.msra.mxu0 0.0
    %3908 = vmatprep.subr.mxu0 0.0
    %3909 = vmatpush2.msra.mxu0 0.0
    %3910 = vmatprep.subr.mxu0 0.0
    %3911 = vmatpush2.msra.mxu0 0.0
    %3912 = vmatprep.mubr.f32.mxu0 0.0
    %v3913 = vand.u32 %v3556, 4294901760
    %v3914 = vsub.f32 %v3556, %v3913
    %v3915 = vand.u32 %v3914, 4294901760
    %3916 = vmatmul.mubr.f32.gmra.mxu0 %v3915
    %v3917 = vpop.f32.mrf.mxu0
    %v3918 = vadd.f32 %v3837, %v3917
    %v3919 = vpop.f32.mrf.mxu0
    %3920 = vdwg.mxu0
    %3921 = vmatprep.subr.mxu0 0.0
    %3922 = vmatpush1.msra.mxu0 0.0
    %3923 = vmatprep.subr.mxu0 0.0
    %3924 = vmatpush1.msra.mxu0 0.0
    %3925 = vmatprep.subr.mxu0 0.0
    %3926 = vmatpush1.msra.mxu0 0.0
    %3927 = vmatprep.subr.mxu0 0.0
    %3928 = vmatpush1.msra.mxu0 0.0
    %3929 = vmatprep.subr.mxu0 0.0
    %3930 = vmatpush1.msra.mxu0 0.0
    %3931 = vmatprep.subr.mxu0 0.0
    %3932 = vmatpush1.msra.mxu0 0.0
    %3933 = vmatprep.subr.mxu0 0.0
    %3934 = vmatpush1.msra.mxu0 0.0
    %3935 = vmatprep.subr.mxu0 0.0
    %3936 = vmatpush1.msra.mxu0 0.0
    %3937 = vmatprep.subr.mxu0 0.0
    %v3938 = vand.u32 %v830, 4294901760
    %v3939 = vsub.f32 %v830, %v3938
    %v3940 = vand.u32 %v3939, 4294901760
    %3941 = vmatpush1.msra.mxu0 %v3940
    %3942 = vmatprep.subr.mxu0 0.0
    %v3943 = vand.u32 %v829, 4294901760
    %v3944 = vsub.f32 %v829, %v3943
    %v3945 = vand.u32 %v3944, 4294901760
    %3946 = vmatpush1.msra.mxu0 %v3945
    %3947 = vmatprep.subr.mxu0 0.0
    %v3948 = vand.u32 %v828, 4294901760
    %v3949 = vsub.f32 %v828, %v3948
    %v3950 = vand.u32 %v3949, 4294901760
    %3951 = vmatpush1.msra.mxu0 %v3950
    %3952 = vmatprep.subr.mxu0 0.0
    %v3953 = vand.u32 %v827, 4294901760
    %v3954 = vsub.f32 %v827, %v3953
    %v3955 = vand.u32 %v3954, 4294901760
    %3956 = vmatpush1.msra.mxu0 %v3955
    %3957 = vmatprep.subr.mxu0 0.0
    %v3958 = vand.u32 %v826, 4294901760
    %v3959 = vsub.f32 %v826, %v3958
    %v3960 = vand.u32 %v3959, 4294901760
    %3961 = vmatpush1.msra.mxu0 %v3960
    %3962 = vmatprep.subr.mxu0 0.0
    %v3963 = vand.u32 %v825, 4294901760
    %v3964 = vsub.f32 %v825, %v3963
    %v3965 = vand.u32 %v3964, 4294901760
    %3966 = vmatpush1.msra.mxu0 %v3965
    %3967 = vmatprep.subr.mxu0 0.0
    %v3968 = vand.u32 %v824, 4294901760
    %v3969 = vsub.f32 %v824, %v3968
    %v3970 = vand.u32 %v3969, 4294901760
    %3971 = vmatpush1.msra.mxu0 %v3970
    %3972 = vmatprep.subr.mxu0 0.0
    %v3973 = vand.u32 %v823, 4294901760
    %v3974 = vsub.f32 %v823, %v3973
    %v3975 = vand.u32 %v3974, 4294901760
    %3976 = vmatpush1.msra.mxu0 %v3975
    %3977 = vmatprep.subr.mxu0 0.0
    %3978 = vmatpush2.msra.mxu0 0.0
    %3979 = vmatprep.subr.mxu0 0.0
    %3980 = vmatpush2.msra.mxu0 0.0
    %3981 = vmatprep.subr.mxu0 0.0
    %3982 = vmatpush2.msra.mxu0 0.0
    %3983 = vmatprep.subr.mxu0 0.0
    %3984 = vmatpush2.msra.mxu0 0.0
    %3985 = vmatprep.subr.mxu0 0.0
    %3986 = vmatpush2.msra.mxu0 0.0
    %3987 = vmatprep.subr.mxu0 0.0
    %3988 = vmatpush2.msra.mxu0 0.0
    %3989 = vmatprep.subr.mxu0 0.0
    %3990 = vmatpush2.msra.mxu0 0.0
    %3991 = vmatprep.subr.mxu0 0.0
    %3992 = vmatpush2.msra.mxu0 0.0
    %3993 = vmatprep.subr.mxu0 0.0
    %3994 = vmatpush2.msra.mxu0 0.0
    %3995 = vmatprep.subr.mxu0 0.0
    %3996 = vmatpush2.msra.mxu0 0.0
    %3997 = vmatprep.subr.mxu0 0.0
    %3998 = vmatpush2.msra.mxu0 0.0
    %3999 = vmatprep.subr.mxu0 0.0
    %4000 = vmatpush2.msra.mxu0 0.0
    %4001 = vmatprep.subr.mxu0 0.0
    %4002 = vmatpush2.msra.mxu0 0.0
    %4003 = vmatprep.subr.mxu0 0.0
    %4004 = vmatpush2.msra.mxu0 0.0
    %4005 = vmatprep.subr.mxu0 0.0
    %4006 = vmatpush2.msra.mxu0 0.0
    %4007 = vmatprep.subr.mxu0 0.0
    %4008 = vmatpush2.msra.mxu0 0.0
    %4009 = vmatprep.mubr.f32.mxu0 0.0
    %v4010 = vand.u32 %v3556, 4294901760
    %4011 = vmatmul.mubr.f32.gmra.mxu0 %v4010
    %v4012 = vpop.f32.mrf.mxu0
    %v4013 = vadd.f32 %v3918, %v4012
    %v4014 = vpop.f32.mrf.mxu0
    %4015 = vdwg.mxu0
    %4016 = vmatprep.subr.mxu0 0.0
    %4017 = vmatpush1.msra.mxu0 0.0
    %4018 = vmatprep.subr.mxu0 0.0
    %4019 = vmatpush1.msra.mxu0 0.0
    %4020 = vmatprep.subr.mxu0 0.0
    %4021 = vmatpush1.msra.mxu0 0.0
    %4022 = vmatprep.subr.mxu0 0.0
    %4023 = vmatpush1.msra.mxu0 0.0
    %4024 = vmatprep.subr.mxu0 0.0
    %4025 = vmatpush1.msra.mxu0 0.0
    %4026 = vmatprep.subr.mxu0 0.0
    %4027 = vmatpush1.msra.mxu0 0.0
    %4028 = vmatprep.subr.mxu0 0.0
    %4029 = vmatpush1.msra.mxu0 0.0
    %4030 = vmatprep.subr.mxu0 0.0
    %4031 = vmatpush1.msra.mxu0 0.0
    %4032 = vmatprep.subr.mxu0 0.0
    %v4033 = vand.u32 %v830, 4294901760
    %4034 = vmatpush1.msra.mxu0 %v4033
    %4035 = vmatprep.subr.mxu0 0.0
    %v4036 = vand.u32 %v829, 4294901760
    %4037 = vmatpush1.msra.mxu0 %v4036
    %4038 = vmatprep.subr.mxu0 0.0
    %v4039 = vand.u32 %v828, 4294901760
    %4040 = vmatpush1.msra.mxu0 %v4039
    %4041 = vmatprep.subr.mxu0 0.0
    %v4042 = vand.u32 %v827, 4294901760
    %4043 = vmatpush1.msra.mxu0 %v4042
    %4044 = vmatprep.subr.mxu0 0.0
    %v4045 = vand.u32 %v826, 4294901760
    %4046 = vmatpush1.msra.mxu0 %v4045
    %4047 = vmatprep.subr.mxu0 0.0
    %v4048 = vand.u32 %v825, 4294901760
    %4049 = vmatpush1.msra.mxu0 %v4048
    %4050 = vmatprep.subr.mxu0 0.0
    %v4051 = vand.u32 %v824, 4294901760
    %4052 = vmatpush1.msra.mxu0 %v4051
    %4053 = vmatprep.subr.mxu0 0.0
    %v4054 = vand.u32 %v823, 4294901760
    %4055 = vmatpush1.msra.mxu0 %v4054
    %4056 = vmatprep.subr.mxu0 0.0
    %4057 = vmatpush2.msra.mxu0 0.0
    %4058 = vmatprep.subr.mxu0 0.0
    %4059 = vmatpush2.msra.mxu0 0.0
    %4060 = vmatprep.subr.mxu0 0.0
    %4061 = vmatpush2.msra.mxu0 0.0
    %4062 = vmatprep.subr.mxu0 0.0
    %4063 = vmatpush2.msra.mxu0 0.0
    %4064 = vmatprep.subr.mxu0 0.0
    %4065 = vmatpush2.msra.mxu0 0.0
    %4066 = vmatprep.subr.mxu0 0.0
    %4067 = vmatpush2.msra.mxu0 0.0
    %4068 = vmatprep.subr.mxu0 0.0
    %4069 = vmatpush2.msra.mxu0 0.0
    %4070 = vmatprep.subr.mxu0 0.0
    %4071 = vmatpush2.msra.mxu0 0.0
    %4072 = vmatprep.subr.mxu0 0.0
    %4073 = vmatpush2.msra.mxu0 0.0
    %4074 = vmatprep.subr.mxu0 0.0
    %4075 = vmatpush2.msra.mxu0 0.0
    %4076 = vmatprep.subr.mxu0 0.0
    %4077 = vmatpush2.msra.mxu0 0.0
    %4078 = vmatprep.subr.mxu0 0.0
    %4079 = vmatpush2.msra.mxu0 0.0
    %4080 = vmatprep.subr.mxu0 0.0
    %4081 = vmatpush2.msra.mxu0 0.0
    %4082 = vmatprep.subr.mxu0 0.0
    %4083 = vmatpush2.msra.mxu0 0.0
    %4084 = vmatprep.subr.mxu0 0.0
    %4085 = vmatpush2.msra.mxu0 0.0
    %4086 = vmatprep.subr.mxu0 0.0
    %4087 = vmatpush2.msra.mxu0 0.0
    %4088 = vmatprep.mubr.f32.mxu0 0.0
    %v4089 = vand.u32 %v3556, 4294901760
    %4090 = vmatmul.mubr.f32.gmra.mxu0 %v4089
    %v4091 = vpop.f32.mrf.mxu0
    %v4092 = vadd.f32 %v4013, %v4091
    %v4093 = vpop.f32.mrf.mxu0
    %4094 = vdwg.mxu0
    %v4095 = vadd.f32 %v4092, %v808
    %v4096 = vtanh.pop %v4095
    %v4098 = vsel %vm840, %v4096, 0
    %4100 = vmatprep.subr.mxu0 0.0
    %4101 = vmatpush1.msra.mxu0 0.0
    %4102 = vmatprep.subr.mxu0 0.0
    %4103 = vmatpush1.msra.mxu0 0.0
    %4104 = vmatprep.subr.mxu0 0.0
    %4105 = vmatpush1.msra.mxu0 0.0
    %4106 = vmatprep.subr.mxu0 0.0
    %4107 = vmatpush1.msra.mxu0 0.0
    %4108 = vmatprep.subr.mxu0 0.0
    %4109 = vmatpush1.msra.mxu0 0.0
    %4110 = vmatprep.subr.mxu0 0.0
    %4111 = vmatpush1.msra.mxu0 0.0
    %4112 = vmatprep.subr.mxu0 0.0
    %4113 = vmatpush1.msra.mxu0 0.0
    %4114 = vmatprep.subr.mxu0 0.0
    %4115 = vmatpush1.msra.mxu0 0.0
    %4116 = vmatprep.subr.mxu0 0.0
    %v4117 = vand.u32 %v830, 4294901760
    %4118 = vmatpush1.msra.mxu0 %v4117
    %4119 = vmatprep.subr.mxu0 0.0
    %v4120 = vand.u32 %v829, 4294901760
    %4121 = vmatpush1.msra.mxu0 %v4120
    %4122 = vmatprep.subr.mxu0 0.0
    %v4123 = vand.u32 %v828, 4294901760
    %4124 = vmatpush1.msra.mxu0 %v4123
    %4125 = vmatprep.subr.mxu0 0.0
    %v4126 = vand.u32 %v827, 4294901760
    %4127 = vmatpush1.msra.mxu0 %v4126
    %4128 = vmatprep.subr.mxu0 0.0
    %v4129 = vand.u32 %v826, 4294901760
    %4130 = vmatpush1.msra.mxu0 %v4129
    %4131 = vmatprep.subr.mxu0 0.0
    %v4132 = vand.u32 %v825, 4294901760
    %4133 = vmatpush1.msra.mxu0 %v4132
    %4134 = vmatprep.subr.mxu0 0.0
    %v4135 = vand.u32 %v824, 4294901760
    %4136 = vmatpush1.msra.mxu0 %v4135
    %4137 = vmatprep.subr.mxu0 0.0
    %v4138 = vand.u32 %v823, 4294901760
    %4139 = vmatpush1.msra.mxu0 %v4138
    %4140 = vmatprep.subr.mxu0 0.0
    %4141 = vmatpush2.msra.mxu0 0.0
    %4142 = vmatprep.subr.mxu0 0.0
    %4143 = vmatpush2.msra.mxu0 0.0
    %4144 = vmatprep.subr.mxu0 0.0
    %4145 = vmatpush2.msra.mxu0 0.0
    %4146 = vmatprep.subr.mxu0 0.0
    %4147 = vmatpush2.msra.mxu0 0.0
    %4148 = vmatprep.subr.mxu0 0.0
    %4149 = vmatpush2.msra.mxu0 0.0
    %4150 = vmatprep.subr.mxu0 0.0
    %4151 = vmatpush2.msra.mxu0 0.0
    %4152 = vmatprep.subr.mxu0 0.0
    %4153 = vmatpush2.msra.mxu0 0.0
    %4154 = vmatprep.subr.mxu0 0.0
    %4155 = vmatpush2.msra.mxu0 0.0
    %4156 = vmatprep.subr.mxu0 0.0
    %4157 = vmatpush2.msra.mxu0 0.0
    %4158 = vmatprep.subr.mxu0 0.0
    %4159 = vmatpush2.msra.mxu0 0.0
    %4160 = vmatprep.subr.mxu0 0.0
    %4161 = vmatpush2.msra.mxu0 0.0
    %4162 = vmatprep.subr.mxu0 0.0
    %4163 = vmatpush2.msra.mxu0 0.0
    %4164 = vmatprep.subr.mxu0 0.0
    %4165 = vmatpush2.msra.mxu0 0.0
    %4166 = vmatprep.subr.mxu0 0.0
    %4167 = vmatpush2.msra.mxu0 0.0
    %4168 = vmatprep.subr.mxu0 0.0
    %4169 = vmatpush2.msra.mxu0 0.0
    %4170 = vmatprep.subr.mxu0 0.0
    %4171 = vmatpush2.msra.mxu0 0.0
    %4172 = vmatprep.mubr.f32.mxu0 0.0
    %v4173 = vand.u32 %v4098, 4294901760
    %v4174 = vsub.f32 %v4098, %v4173
    %v4175 = vand.u32 %v4174, 4294901760
    %v4176 = vsub.f32 %v4174, %v4175
    %v4177 = vand.u32 %v4176, 4294901760
    %4178 = vmatmul.mubr.f32.gmra.mxu0 %v4177
    %v4179 = vpop.f32.mrf.mxu0
    %v4180 = vadd.f32 %v838, %v4179
    %v4181 = vpop.f32.mrf.mxu0
    %4182 = vdwg.mxu0
    %4183 = vmatprep.subr.mxu0 0.0
    %4184 = vmatpush1.msra.mxu0 0.0
    %4185 = vmatprep.subr.mxu0 0.0
    %4186 = vmatpush1.msra.mxu0 0.0
    %4187 = vmatprep.subr.mxu0 0.0
    %4188 = vmatpush1.msra.mxu0 0.0
    %4189 = vmatprep.subr.mxu0 0.0
    %4190 = vmatpush1.msra.mxu0 0.0
    %4191 = vmatprep.subr.mxu0 0.0
    %4192 = vmatpush1.msra.mxu0 0.0
    %4193 = vmatprep.subr.mxu0 0.0
    %4194 = vmatpush1.msra.mxu0 0.0
    %4195 = vmatprep.subr.mxu0 0.0
    %4196 = vmatpush1.msra.mxu0 0.0
    %4197 = vmatprep.subr.mxu0 0.0
    %4198 = vmatpush1.msra.mxu0 0.0
    %4199 = vmatprep.subr.mxu0 0.0
    %v4200 = vand.u32 %v830, 4294901760
    %v4201 = vsub.f32 %v830, %v4200
    %v4202 = vand.u32 %v4201, 4294901760
    %v4203 = vsub.f32 %v4201, %v4202
    %v4204 = vand.u32 %v4203, 4294901760
    %4205 = vmatpush1.msra.mxu0 %v4204
    %4206 = vmatprep.subr.mxu0 0.0
    %v4207 = vand.u32 %v829, 4294901760
    %v4208 = vsub.f32 %v829, %v4207
    %v4209 = vand.u32 %v4208, 4294901760
    %v4210 = vsub.f32 %v4208, %v4209
    %v4211 = vand.u32 %v4210, 4294901760
    %4212 = vmatpush1.msra.mxu0 %v4211
    %4213 = vmatprep.subr.mxu0 0.0
    %v4214 = vand.u32 %v828, 4294901760
    %v4215 = vsub.f32 %v828, %v4214
    %v4216 = vand.u32 %v4215, 4294901760
    %v4217 = vsub.f32 %v4215, %v4216
    %v4218 = vand.u32 %v4217, 4294901760
    %4219 = vmatpush1.msra.mxu0 %v4218
    %4220 = vmatprep.subr.mxu0 0.0
    %v4221 = vand.u32 %v827, 4294901760
    %v4222 = vsub.f32 %v827, %v4221
    %v4223 = vand.u32 %v4222, 4294901760
    %v4224 = vsub.f32 %v4222, %v4223
    %v4225 = vand.u32 %v4224, 4294901760
    %4226 = vmatpush1.msra.mxu0 %v4225
    %4227 = vmatprep.subr.mxu0 0.0
    %v4228 = vand.u32 %v826, 4294901760
    %v4229 = vsub.f32 %v826, %v4228
    %v4230 = vand.u32 %v4229, 4294901760
    %v4231 = vsub.f32 %v4229, %v4230
    %v4232 = vand.u32 %v4231, 4294901760
    %4233 = vmatpush1.msra.mxu0 %v4232
    %4234 = vmatprep.subr.mxu0 0.0
    %v4235 = vand.u32 %v825, 4294901760
    %v4236 = vsub.f32 %v825, %v4235
    %v4237 = vand.u32 %v4236, 4294901760
    %v4238 = vsub.f32 %v4236, %v4237
    %v4239 = vand.u32 %v4238, 4294901760
    %4240 = vmatpush1.msra.mxu0 %v4239
    %4241 = vmatprep.subr.mxu0 0.0
    %v4242 = vand.u32 %v824, 4294901760
    %v4243 = vsub.f32 %v824, %v4242
    %v4244 = vand.u32 %v4243, 4294901760
    %v4245 = vsub.f32 %v4243, %v4244
    %v4246 = vand.u32 %v4245, 4294901760
    %4247 = vmatpush1.msra.mxu0 %v4246
    %4248 = vmatprep.subr.mxu0 0.0
    %v4249 = vand.u32 %v823, 4294901760
    %v4250 = vsub.f32 %v823, %v4249
    %v4251 = vand.u32 %v4250, 4294901760
    %v4252 = vsub.f32 %v4250, %v4251
    %v4253 = vand.u32 %v4252, 4294901760
    %4254 = vmatpush1.msra.mxu0 %v4253
    %4255 = vmatprep.subr.mxu0 0.0
    %4256 = vmatpush2.msra.mxu0 0.0
    %4257 = vmatprep.subr.mxu0 0.0
    %4258 = vmatpush2.msra.mxu0 0.0
    %4259 = vmatprep.subr.mxu0 0.0
    %4260 = vmatpush2.msra.mxu0 0.0
    %4261 = vmatprep.subr.mxu0 0.0
    %4262 = vmatpush2.msra.mxu0 0.0
    %4263 = vmatprep.subr.mxu0 0.0
    %4264 = vmatpush2.msra.mxu0 0.0
    %4265 = vmatprep.subr.mxu0 0.0
    %4266 = vmatpush2.msra.mxu0 0.0
    %4267 = vmatprep.subr.mxu0 0.0
    %4268 = vmatpush2.msra.mxu0 0.0
    %4269 = vmatprep.subr.mxu0 0.0
    %4270 = vmatpush2.msra.mxu0 0.0
    %4271 = vmatprep.subr.mxu0 0.0
    %4272 = vmatpush2.msra.mxu0 0.0
    %4273 = vmatprep.subr.mxu0 0.0
    %4274 = vmatpush2.msra.mxu0 0.0
    %4275 = vmatprep.subr.mxu0 0.0
    %4276 = vmatpush2.msra.mxu0 0.0
    %4277 = vmatprep.subr.mxu0 0.0
    %4278 = vmatpush2.msra.mxu0 0.0
    %4279 = vmatprep.subr.mxu0 0.0
    %4280 = vmatpush2.msra.mxu0 0.0
    %4281 = vmatprep.subr.mxu0 0.0
    %4282 = vmatpush2.msra.mxu0 0.0
    %4283 = vmatprep.subr.mxu0 0.0
    %4284 = vmatpush2.msra.mxu0 0.0
    %4285 = vmatprep.subr.mxu0 0.0
    %4286 = vmatpush2.msra.mxu0 0.0
    %4287 = vmatprep.mubr.f32.mxu0 0.0
    %v4288 = vand.u32 %v4098, 4294901760
    %4289 = vmatmul.mubr.f32.gmra.mxu0 %v4288
    %v4290 = vpop.f32.mrf.mxu0
    %v4291 = vadd.f32 %v4180, %v4290
    %v4292 = vpop.f32.mrf.mxu0
    %4293 = vdwg.mxu0
    %4294 = vmatprep.subr.mxu0 0.0
    %4295 = vmatpush1.msra.mxu0 0.0
    %4296 = vmatprep.subr.mxu0 0.0
    %4297 = vmatpush1.msra.mxu0 0.0
    %4298 = vmatprep.subr.mxu0 0.0
    %4299 = vmatpush1.msra.mxu0 0.0
    %4300 = vmatprep.subr.mxu0 0.0
    %4301 = vmatpush1.msra.mxu0 0.0
    %4302 = vmatprep.subr.mxu0 0.0
    %4303 = vmatpush1.msra.mxu0 0.0
    %4304 = vmatprep.subr.mxu0 0.0
    %4305 = vmatpush1.msra.mxu0 0.0
    %4306 = vmatprep.subr.mxu0 0.0
    %4307 = vmatpush1.msra.mxu0 0.0
    %4308 = vmatprep.subr.mxu0 0.0
    %4309 = vmatpush1.msra.mxu0 0.0
    %4310 = vmatprep.subr.mxu0 0.0
    %v4311 = vand.u32 %v830, 4294901760
    %v4312 = vsub.f32 %v830, %v4311
    %4313 = vmatpush1.msra.mxu0 %v4312
    %4314 = vmatprep.subr.mxu0 0.0
    %v4315 = vand.u32 %v829, 4294901760
    %v4316 = vsub.f32 %v829, %v4315
    %4317 = vmatpush1.msra.mxu0 %v4316
    %4318 = vmatprep.subr.mxu0 0.0
    %v4319 = vand.u32 %v828, 4294901760
    %v4320 = vsub.f32 %v828, %v4319
    %4321 = vmatpush1.msra.mxu0 %v4320
    %4322 = vmatprep.subr.mxu0 0.0
    %v4323 = vand.u32 %v827, 4294901760
    %v4324 = vsub.f32 %v827, %v4323
    %4325 = vmatpush1.msra.mxu0 %v4324
    %4326 = vmatprep.subr.mxu0 0.0
    %v4327 = vand.u32 %v826, 4294901760
    %v4328 = vsub.f32 %v826, %v4327
    %4329 = vmatpush1.msra.mxu0 %v4328
    %4330 = vmatprep.subr.mxu0 0.0
    %v4331 = vand.u32 %v825, 4294901760
    %v4332 = vsub.f32 %v825, %v4331
    %4333 = vmatpush1.msra.mxu0 %v4332
    %4334 = vmatprep.subr.mxu0 0.0
    %v4335 = vand.u32 %v824, 4294901760
    %v4336 = vsub.f32 %v824, %v4335
    %4337 = vmatpush1.msra.mxu0 %v4336
    %4338 = vmatprep.subr.mxu0 0.0
    %v4339 = vand.u32 %v823, 4294901760
    %v4340 = vsub.f32 %v823, %v4339
    %4341 = vmatpush1.msra.mxu0 %v4340
    %4342 = vmatprep.subr.mxu0 0.0
    %4343 = vmatpush2.msra.mxu0 0.0
    %4344 = vmatprep.subr.mxu0 0.0
    %4345 = vmatpush2.msra.mxu0 0.0
    %4346 = vmatprep.subr.mxu0 0.0
    %4347 = vmatpush2.msra.mxu0 0.0
    %4348 = vmatprep.subr.mxu0 0.0
    %4349 = vmatpush2.msra.mxu0 0.0
    %4350 = vmatprep.subr.mxu0 0.0
    %4351 = vmatpush2.msra.mxu0 0.0
    %4352 = vmatprep.subr.mxu0 0.0
    %4353 = vmatpush2.msra.mxu0 0.0
    %4354 = vmatprep.subr.mxu0 0.0
    %4355 = vmatpush2.msra.mxu0 0.0
    %4356 = vmatprep.subr.mxu0 0.0
    %4357 = vmatpush2.msra.mxu0 0.0
    %4358 = vmatprep.subr.mxu0 0.0
    %4359 = vmatpush2.msra.mxu0 0.0
    %4360 = vmatprep.subr.mxu0 0.0
    %4361 = vmatpush2.msra.mxu0 0.0
    %4362 = vmatprep.subr.mxu0 0.0
    %4363 = vmatpush2.msra.mxu0 0.0
    %4364 = vmatprep.subr.mxu0 0.0
    %4365 = vmatpush2.msra.mxu0 0.0
    %4366 = vmatprep.subr.mxu0 0.0
    %4367 = vmatpush2.msra.mxu0 0.0
    %4368 = vmatprep.subr.mxu0 0.0
    %4369 = vmatpush2.msra.mxu0 0.0
    %4370 = vmatprep.subr.mxu0 0.0
    %4371 = vmatpush2.msra.mxu0 0.0
    %4372 = vmatprep.subr.mxu0 0.0
    %4373 = vmatpush2.msra.mxu0 0.0
    %4374 = vmatprep.mubr.f32.mxu0 0.0
    %v4375 = vand.u32 %v4098, 4294901760
    %v4376 = vsub.f32 %v4098, %v4375
    %4377 = vmatmul.mubr.f32.gmra.mxu0 %v4376
    %v4378 = vpop.f32.mrf.mxu0
    %v4379 = vadd.f32 %v4291, %v4378
    %v4380 = vpop.f32.mrf.mxu0
    %4381 = vdwg.mxu0
    %4382 = vmatprep.subr.mxu0 0.0
    %4383 = vmatpush1.msra.mxu0 0.0
    %4384 = vmatprep.subr.mxu0 0.0
    %4385 = vmatpush1.msra.mxu0 0.0
    %4386 = vmatprep.subr.mxu0 0.0
    %4387 = vmatpush1.msra.mxu0 0.0
    %4388 = vmatprep.subr.mxu0 0.0
    %4389 = vmatpush1.msra.mxu0 0.0
    %4390 = vmatprep.subr.mxu0 0.0
    %4391 = vmatpush1.msra.mxu0 0.0
    %4392 = vmatprep.subr.mxu0 0.0
    %4393 = vmatpush1.msra.mxu0 0.0
    %4394 = vmatprep.subr.mxu0 0.0
    %4395 = vmatpush1.msra.mxu0 0.0
    %4396 = vmatprep.subr.mxu0 0.0
    %4397 = vmatpush1.msra.mxu0 0.0
    %4398 = vmatprep.subr.mxu0 0.0
    %v4399 = vand.u32 %v830, 4294901760
    %4400 = vmatpush1.msra.mxu0 %v4399
    %4401 = vmatprep.subr.mxu0 0.0
    %v4402 = vand.u32 %v829, 4294901760
    %4403 = vmatpush1.msra.mxu0 %v4402
    %4404 = vmatprep.subr.mxu0 0.0
    %v4405 = vand.u32 %v828, 4294901760
    %4406 = vmatpush1.msra.mxu0 %v4405
    %4407 = vmatprep.subr.mxu0 0.0
    %v4408 = vand.u32 %v827, 4294901760
    %4409 = vmatpush1.msra.mxu0 %v4408
    %4410 = vmatprep.subr.mxu0 0.0
    %v4411 = vand.u32 %v826, 4294901760
    %4412 = vmatpush1.msra.mxu0 %v4411
    %4413 = vmatprep.subr.mxu0 0.0
    %v4414 = vand.u32 %v825, 4294901760
    %4415 = vmatpush1.msra.mxu0 %v4414
    %4416 = vmatprep.subr.mxu0 0.0
    %v4417 = vand.u32 %v824, 4294901760
    %4418 = vmatpush1.msra.mxu0 %v4417
    %4419 = vmatprep.subr.mxu0 0.0
    %v4420 = vand.u32 %v823, 4294901760
    %4421 = vmatpush1.msra.mxu0 %v4420
    %4422 = vmatprep.subr.mxu0 0.0
    %4423 = vmatpush2.msra.mxu0 0.0
    %4424 = vmatprep.subr.mxu0 0.0
    %4425 = vmatpush2.msra.mxu0 0.0
    %4426 = vmatprep.subr.mxu0 0.0
    %4427 = vmatpush2.msra.mxu0 0.0
    %4428 = vmatprep.subr.mxu0 0.0
    %4429 = vmatpush2.msra.mxu0 0.0
    %4430 = vmatprep.subr.mxu0 0.0
    %4431 = vmatpush2.msra.mxu0 0.0
    %4432 = vmatprep.subr.mxu0 0.0
    %4433 = vmatpush2.msra.mxu0 0.0
    %4434 = vmatprep.subr.mxu0 0.0
    %4435 = vmatpush2.msra.mxu0 0.0
    %4436 = vmatprep.subr.mxu0 0.0
    %4437 = vmatpush2.msra.mxu0 0.0
    %4438 = vmatprep.subr.mxu0 0.0
    %4439 = vmatpush2.msra.mxu0 0.0
    %4440 = vmatprep.subr.mxu0 0.0
    %4441 = vmatpush2.msra.mxu0 0.0
    %4442 = vmatprep.subr.mxu0 0.0
    %4443 = vmatpush2.msra.mxu0 0.0
    %4444 = vmatprep.subr.mxu0 0.0
    %4445 = vmatpush2.msra.mxu0 0.0
    %4446 = vmatprep.subr.mxu0 0.0
    %4447 = vmatpush2.msra.mxu0 0.0
    %4448 = vmatprep.subr.mxu0 0.0
    %4449 = vmatpush2.msra.mxu0 0.0
    %4450 = vmatprep.subr.mxu0 0.0
    %4451 = vmatpush2.msra.mxu0 0.0
    %4452 = vmatprep.subr.mxu0 0.0
    %4453 = vmatpush2.msra.mxu0 0.0
    %4454 = vmatprep.mubr.f32.mxu0 0.0
    %v4455 = vand.u32 %v4098, 4294901760
    %v4456 = vsub.f32 %v4098, %v4455
    %v4457 = vand.u32 %v4456, 4294901760
    %4458 = vmatmul.mubr.f32.gmra.mxu0 %v4457
    %v4459 = vpop.f32.mrf.mxu0
    %v4460 = vadd.f32 %v4379, %v4459
    %v4461 = vpop.f32.mrf.mxu0
    %4462 = vdwg.mxu0
    %4463 = vmatprep.subr.mxu0 0.0
    %4464 = vmatpush1.msra.mxu0 0.0
    %4465 = vmatprep.subr.mxu0 0.0
    %4466 = vmatpush1.msra.mxu0 0.0
    %4467 = vmatprep.subr.mxu0 0.0
    %4468 = vmatpush1.msra.mxu0 0.0
    %4469 = vmatprep.subr.mxu0 0.0
    %4470 = vmatpush1.msra.mxu0 0.0
    %4471 = vmatprep.subr.mxu0 0.0
    %4472 = vmatpush1.msra.mxu0 0.0
    %4473 = vmatprep.subr.mxu0 0.0
    %4474 = vmatpush1.msra.mxu0 0.0
    %4475 = vmatprep.subr.mxu0 0.0
    %4476 = vmatpush1.msra.mxu0 0.0
    %4477 = vmatprep.subr.mxu0 0.0
    %4478 = vmatpush1.msra.mxu0 0.0
    %4479 = vmatprep.subr.mxu0 0.0
    %v4480 = vand.u32 %v830, 4294901760
    %v4481 = vsub.f32 %v830, %v4480
    %v4482 = vand.u32 %v4481, 4294901760
    %4483 = vmatpush1.msra.mxu0 %v4482
    %4484 = vmatprep.subr.mxu0 0.0
    %v4485 = vand.u32 %v829, 4294901760
    %v4486 = vsub.f32 %v829, %v4485
    %v4487 = vand.u32 %v4486, 4294901760
    %4488 = vmatpush1.msra.mxu0 %v4487
    %4489 = vmatprep.subr.mxu0 0.0
    %v4490 = vand.u32 %v828, 4294901760
    %v4491 = vsub.f32 %v828, %v4490
    %v4492 = vand.u32 %v4491, 4294901760
    %4493 = vmatpush1.msra.mxu0 %v4492
    %4494 = vmatprep.subr.mxu0 0.0
    %v4495 = vand.u32 %v827, 4294901760
    %v4496 = vsub.f32 %v827, %v4495
    %v4497 = vand.u32 %v4496, 4294901760
    %4498 = vmatpush1.msra.mxu0 %v4497
    %4499 = vmatprep.subr.mxu0 0.0
    %v4500 = vand.u32 %v826, 4294901760
    %v4501 = vsub.f32 %v826, %v4500
    %v4502 = vand.u32 %v4501, 4294901760
    %4503 = vmatpush1.msra.mxu0 %v4502
    %4504 = vmatprep.subr.mxu0 0.0
    %v4505 = vand.u32 %v825, 4294901760
    %v4506 = vsub.f32 %v825, %v4505
    %v4507 = vand.u32 %v4506, 4294901760
    %4508 = vmatpush1.msra.mxu0 %v4507
    %4509 = vmatprep.subr.mxu0 0.0
    %v4510 = vand.u32 %v824, 4294901760
    %v4511 = vsub.f32 %v824, %v4510
    %v4512 = vand.u32 %v4511, 4294901760
    %4513 = vmatpush1.msra.mxu0 %v4512
    %4514 = vmatprep.subr.mxu0 0.0
    %v4515 = vand.u32 %v823, 4294901760
    %v4516 = vsub.f32 %v823, %v4515
    %v4517 = vand.u32 %v4516, 4294901760
    %4518 = vmatpush1.msra.mxu0 %v4517
    %4519 = vmatprep.subr.mxu0 0.0
    %4520 = vmatpush2.msra.mxu0 0.0
    %4521 = vmatprep.subr.mxu0 0.0
    %4522 = vmatpush2.msra.mxu0 0.0
    %4523 = vmatprep.subr.mxu0 0.0
    %4524 = vmatpush2.msra.mxu0 0.0
    %4525 = vmatprep.subr.mxu0 0.0
    %4526 = vmatpush2.msra.mxu0 0.0
    %4527 = vmatprep.subr.mxu0 0.0
    %4528 = vmatpush2.msra.mxu0 0.0
    %4529 = vmatprep.subr.mxu0 0.0
    %4530 = vmatpush2.msra.mxu0 0.0
    %4531 = vmatprep.subr.mxu0 0.0
    %4532 = vmatpush2.msra.mxu0 0.0
    %4533 = vmatprep.subr.mxu0 0.0
    %4534 = vmatpush2.msra.mxu0 0.0
    %4535 = vmatprep.subr.mxu0 0.0
    %4536 = vmatpush2.msra.mxu0 0.0
    %4537 = vmatprep.subr.mxu0 0.0
    %4538 = vmatpush2.msra.mxu0 0.0
    %4539 = vmatprep.subr.mxu0 0.0
    %4540 = vmatpush2.msra.mxu0 0.0
    %4541 = vmatprep.subr.mxu0 0.0
    %4542 = vmatpush2.msra.mxu0 0.0
    %4543 = vmatprep.subr.mxu0 0.0
    %4544 = vmatpush2.msra.mxu0 0.0
    %4545 = vmatprep.subr.mxu0 0.0
    %4546 = vmatpush2.msra.mxu0 0.0
    %4547 = vmatprep.subr.mxu0 0.0
    %4548 = vmatpush2.msra.mxu0 0.0
    %4549 = vmatprep.subr.mxu0 0.0
    %4550 = vmatpush2.msra.mxu0 0.0
    %4551 = vmatprep.mubr.f32.mxu0 0.0
    %v4552 = vand.u32 %v4098, 4294901760
    %4553 = vmatmul.mubr.f32.gmra.mxu0 %v4552
    %v4554 = vpop.f32.mrf.mxu0
    %v4555 = vadd.f32 %v4460, %v4554
    %v4556 = vpop.f32.mrf.mxu0
    %4557 = vdwg.mxu0
    %4558 = vmatprep.subr.mxu0 0.0
    %4559 = vmatpush1.msra.mxu0 0.0
    %4560 = vmatprep.subr.mxu0 0.0
    %4561 = vmatpush1.msra.mxu0 0.0
    %4562 = vmatprep.subr.mxu0 0.0
    %4563 = vmatpush1.msra.mxu0 0.0
    %4564 = vmatprep.subr.mxu0 0.0
    %4565 = vmatpush1.msra.mxu0 0.0
    %4566 = vmatprep.subr.mxu0 0.0
    %4567 = vmatpush1.msra.mxu0 0.0
    %4568 = vmatprep.subr.mxu0 0.0
    %4569 = vmatpush1.msra.mxu0 0.0
    %4570 = vmatprep.subr.mxu0 0.0
    %4571 = vmatpush1.msra.mxu0 0.0
    %4572 = vmatprep.subr.mxu0 0.0
    %4573 = vmatpush1.msra.mxu0 0.0
    %4574 = vmatprep.subr.mxu0 0.0
    %v4575 = vand.u32 %v830, 4294901760
    %4576 = vmatpush1.msra.mxu0 %v4575
    %4577 = vmatprep.subr.mxu0 0.0
    %v4578 = vand.u32 %v829, 4294901760
    %4579 = vmatpush1.msra.mxu0 %v4578
    %4580 = vmatprep.subr.mxu0 0.0
    %v4581 = vand.u32 %v828, 4294901760
    %4582 = vmatpush1.msra.mxu0 %v4581
    %4583 = vmatprep.subr.mxu0 0.0
    %v4584 = vand.u32 %v827, 4294901760
    %4585 = vmatpush1.msra.mxu0 %v4584
    %4586 = vmatprep.subr.mxu0 0.0
    %v4587 = vand.u32 %v826, 4294901760
    %4588 = vmatpush1.msra.mxu0 %v4587
    %4589 = vmatprep.subr.mxu0 0.0
    %v4590 = vand.u32 %v825, 4294901760
    %4591 = vmatpush1.msra.mxu0 %v4590
    %4592 = vmatprep.subr.mxu0 0.0
    %v4593 = vand.u32 %v824, 4294901760
    %4594 = vmatpush1.msra.mxu0 %v4593
    %4595 = vmatprep.subr.mxu0 0.0
    %v4596 = vand.u32 %v823, 4294901760
    %4597 = vmatpush1.msra.mxu0 %v4596
    %4598 = vmatprep.subr.mxu0 0.0
    %4599 = vmatpush2.msra.mxu0 0.0
    %4600 = vmatprep.subr.mxu0 0.0
    %4601 = vmatpush2.msra.mxu0 0.0
    %4602 = vmatprep.subr.mxu0 0.0
    %4603 = vmatpush2.msra.mxu0 0.0
    %4604 = vmatprep.subr.mxu0 0.0
    %4605 = vmatpush2.msra.mxu0 0.0
    %4606 = vmatprep.subr.mxu0 0.0
    %4607 = vmatpush2.msra.mxu0 0.0
    %4608 = vmatprep.subr.mxu0 0.0
    %4609 = vmatpush2.msra.mxu0 0.0
    %4610 = vmatprep.subr.mxu0 0.0
    %4611 = vmatpush2.msra.mxu0 0.0
    %4612 = vmatprep.subr.mxu0 0.0
    %4613 = vmatpush2.msra.mxu0 0.0
    %4614 = vmatprep.subr.mxu0 0.0
    %4615 = vmatpush2.msra.mxu0 0.0
    %4616 = vmatprep.subr.mxu0 0.0
    %4617 = vmatpush2.msra.mxu0 0.0
    %4618 = vmatprep.subr.mxu0 0.0
    %4619 = vmatpush2.msra.mxu0 0.0
    %4620 = vmatprep.subr.mxu0 0.0
    %4621 = vmatpush2.msra.mxu0 0.0
    %4622 = vmatprep.subr.mxu0 0.0
    %4623 = vmatpush2.msra.mxu0 0.0
    %4624 = vmatprep.subr.mxu0 0.0
    %4625 = vmatpush2.msra.mxu0 0.0
    %4626 = vmatprep.subr.mxu0 0.0
    %4627 = vmatpush2.msra.mxu0 0.0
    %4628 = vmatprep.subr.mxu0 0.0
    %4629 = vmatpush2.msra.mxu0 0.0
    %4630 = vmatprep.mubr.f32.mxu0 0.0
    %v4631 = vand.u32 %v4098, 4294901760
    %4632 = vmatmul.mubr.f32.gmra.mxu0 %v4631
    %v4633 = vpop.f32.mrf.mxu0
    %v4634 = vadd.f32 %v4555, %v4633
    %v4635 = vpop.f32.mrf.mxu0
    %4636 = vdwg.mxu0
    %v4637 = vadd.f32 %v4634, %v814
    %v4638 = vtanh.pop %v4637
    %v4640 = vsel %vm840, %v4638, 0
    %4642 = vmatprep.subr.mxu0 0.0
    %4643 = vmatpush1.msra.mxu0 0.0
    %4644 = vmatprep.subr.mxu0 0.0
    %4645 = vmatpush1.msra.mxu0 0.0
    %4646 = vmatprep.subr.mxu0 0.0
    %4647 = vmatpush1.msra.mxu0 0.0
    %4648 = vmatprep.subr.mxu0 0.0
    %4649 = vmatpush1.msra.mxu0 0.0
    %4650 = vmatprep.subr.mxu0 0.0
    %4651 = vmatpush1.msra.mxu0 0.0
    %4652 = vmatprep.subr.mxu0 0.0
    %4653 = vmatpush1.msra.mxu0 0.0
    %4654 = vmatprep.subr.mxu0 0.0
    %4655 = vmatpush1.msra.mxu0 0.0
    %4656 = vmatprep.subr.mxu0 0.0
    %4657 = vmatpush1.msra.mxu0 0.0
    %4658 = vmatprep.subr.mxu0 0.0
    %v4659 = vand.u32 %v830, 4294901760
    %4660 = vmatpush1.msra.mxu0 %v4659
    %4661 = vmatprep.subr.mxu0 0.0
    %v4662 = vand.u32 %v829, 4294901760
    %4663 = vmatpush1.msra.mxu0 %v4662
    %4664 = vmatprep.subr.mxu0 0.0
    %v4665 = vand.u32 %v828, 4294901760
    %4666 = vmatpush1.msra.mxu0 %v4665
    %4667 = vmatprep.subr.mxu0 0.0
    %v4668 = vand.u32 %v827, 4294901760
    %4669 = vmatpush1.msra.mxu0 %v4668
    %4670 = vmatprep.subr.mxu0 0.0
    %v4671 = vand.u32 %v826, 4294901760
    %4672 = vmatpush1.msra.mxu0 %v4671
    %4673 = vmatprep.subr.mxu0 0.0
    %v4674 = vand.u32 %v825, 4294901760
    %4675 = vmatpush1.msra.mxu0 %v4674
    %4676 = vmatprep.subr.mxu0 0.0
    %v4677 = vand.u32 %v824, 4294901760
    %4678 = vmatpush1.msra.mxu0 %v4677
    %4679 = vmatprep.subr.mxu0 0.0
    %v4680 = vand.u32 %v823, 4294901760
    %4681 = vmatpush1.msra.mxu0 %v4680
    %4682 = vmatprep.subr.mxu0 0.0
    %4683 = vmatpush2.msra.mxu0 0.0
    %4684 = vmatprep.subr.mxu0 0.0
    %4685 = vmatpush2.msra.mxu0 0.0
    %4686 = vmatprep.subr.mxu0 0.0
    %4687 = vmatpush2.msra.mxu0 0.0
    %4688 = vmatprep.subr.mxu0 0.0
    %4689 = vmatpush2.msra.mxu0 0.0
    %4690 = vmatprep.subr.mxu0 0.0
    %4691 = vmatpush2.msra.mxu0 0.0
    %4692 = vmatprep.subr.mxu0 0.0
    %4693 = vmatpush2.msra.mxu0 0.0
    %4694 = vmatprep.subr.mxu0 0.0
    %4695 = vmatpush2.msra.mxu0 0.0
    %4696 = vmatprep.subr.mxu0 0.0
    %4697 = vmatpush2.msra.mxu0 0.0
    %4698 = vmatprep.subr.mxu0 0.0
    %4699 = vmatpush2.msra.mxu0 0.0
    %4700 = vmatprep.subr.mxu0 0.0
    %4701 = vmatpush2.msra.mxu0 0.0
    %4702 = vmatprep.subr.mxu0 0.0
    %4703 = vmatpush2.msra.mxu0 0.0
    %4704 = vmatprep.subr.mxu0 0.0
    %4705 = vmatpush2.msra.mxu0 0.0
    %4706 = vmatprep.subr.mxu0 0.0
    %4707 = vmatpush2.msra.mxu0 0.0
    %4708 = vmatprep.subr.mxu0 0.0
    %4709 = vmatpush2.msra.mxu0 0.0
    %4710 = vmatprep.subr.mxu0 0.0
    %4711 = vmatpush2.msra.mxu0 0.0
    %4712 = vmatprep.subr.mxu0 0.0
    %4713 = vmatpush2.msra.mxu0 0.0
    %4714 = vmatprep.mubr.f32.mxu0 0.0
    %v4715 = vand.u32 %v4640, 4294901760
    %v4716 = vsub.f32 %v4640, %v4715
    %v4717 = vand.u32 %v4716, 4294901760
    %v4718 = vsub.f32 %v4716, %v4717
    %v4719 = vand.u32 %v4718, 4294901760
    %4720 = vmatmul.mubr.f32.gmra.mxu0 %v4719
    %v4721 = vpop.f32.mrf.mxu0
    %v4722 = vadd.f32 %v838, %v4721
    %v4723 = vpop.f32.mrf.mxu0
    %4724 = vdwg.mxu0
    %4725 = vmatprep.subr.mxu0 0.0
    %4726 = vmatpush1.msra.mxu0 0.0
    %4727 = vmatprep.subr.mxu0 0.0
    %4728 = vmatpush1.msra.mxu0 0.0
    %4729 = vmatprep.subr.mxu0 0.0
    %4730 = vmatpush1.msra.mxu0 0.0
    %4731 = vmatprep.subr.mxu0 0.0
    %4732 = vmatpush1.msra.mxu0 0.0
    %4733 = vmatprep.subr.mxu0 0.0
    %4734 = vmatpush1.msra.mxu0 0.0
    %4735 = vmatprep.subr.mxu0 0.0
    %4736 = vmatpush1.msra.mxu0 0.0
    %4737 = vmatprep.subr.mxu0 0.0
    %4738 = vmatpush1.msra.mxu0 0.0
    %4739 = vmatprep.subr.mxu0 0.0
    %4740 = vmatpush1.msra.mxu0 0.0
    %4741 = vmatprep.subr.mxu0 0.0
    %v4742 = vand.u32 %v830, 4294901760
    %v4743 = vsub.f32 %v830, %v4742
    %v4744 = vand.u32 %v4743, 4294901760
    %v4745 = vsub.f32 %v4743, %v4744
    %v4746 = vand.u32 %v4745, 4294901760
    %4747 = vmatpush1.msra.mxu0 %v4746
    %4748 = vmatprep.subr.mxu0 0.0
    %v4749 = vand.u32 %v829, 4294901760
    %v4750 = vsub.f32 %v829, %v4749
    %v4751 = vand.u32 %v4750, 4294901760
    %v4752 = vsub.f32 %v4750, %v4751
    %v4753 = vand.u32 %v4752, 4294901760
    %4754 = vmatpush1.msra.mxu0 %v4753
    %4755 = vmatprep.subr.mxu0 0.0
    %v4756 = vand.u32 %v828, 4294901760
    %v4757 = vsub.f32 %v828, %v4756
    %v4758 = vand.u32 %v4757, 4294901760
    %v4759 = vsub.f32 %v4757, %v4758
    %v4760 = vand.u32 %v4759, 4294901760
    %4761 = vmatpush1.msra.mxu0 %v4760
    %4762 = vmatprep.subr.mxu0 0.0
    %v4763 = vand.u32 %v827, 4294901760
    %v4764 = vsub.f32 %v827, %v4763
    %v4765 = vand.u32 %v4764, 4294901760
    %v4766 = vsub.f32 %v4764, %v4765
    %v4767 = vand.u32 %v4766, 4294901760
    %4768 = vmatpush1.msra.mxu0 %v4767
    %4769 = vmatprep.subr.mxu0 0.0
    %v4770 = vand.u32 %v826, 4294901760
    %v4771 = vsub.f32 %v826, %v4770
    %v4772 = vand.u32 %v4771, 4294901760
    %v4773 = vsub.f32 %v4771, %v4772
    %v4774 = vand.u32 %v4773, 4294901760
    %4775 = vmatpush1.msra.mxu0 %v4774
    %4776 = vmatprep.subr.mxu0 0.0
    %v4777 = vand.u32 %v825, 4294901760
    %v4778 = vsub.f32 %v825, %v4777
    %v4779 = vand.u32 %v4778, 4294901760
    %v4780 = vsub.f32 %v4778, %v4779
    %v4781 = vand.u32 %v4780, 4294901760
    %4782 = vmatpush1.msra.mxu0 %v4781
    %4783 = vmatprep.subr.mxu0 0.0
    %v4784 = vand.u32 %v824, 4294901760
    %v4785 = vsub.f32 %v824, %v4784
    %v4786 = vand.u32 %v4785, 4294901760
    %v4787 = vsub.f32 %v4785, %v4786
    %v4788 = vand.u32 %v4787, 4294901760
    %4789 = vmatpush1.msra.mxu0 %v4788
    %4790 = vmatprep.subr.mxu0 0.0
    %v4791 = vand.u32 %v823, 4294901760
    %v4792 = vsub.f32 %v823, %v4791
    %v4793 = vand.u32 %v4792, 4294901760
    %v4794 = vsub.f32 %v4792, %v4793
    %v4795 = vand.u32 %v4794, 4294901760
    %4796 = vmatpush1.msra.mxu0 %v4795
    %4797 = vmatprep.subr.mxu0 0.0
    %4798 = vmatpush2.msra.mxu0 0.0
    %4799 = vmatprep.subr.mxu0 0.0
    %4800 = vmatpush2.msra.mxu0 0.0
    %4801 = vmatprep.subr.mxu0 0.0
    %4802 = vmatpush2.msra.mxu0 0.0
    %4803 = vmatprep.subr.mxu0 0.0
    %4804 = vmatpush2.msra.mxu0 0.0
    %4805 = vmatprep.subr.mxu0 0.0
    %4806 = vmatpush2.msra.mxu0 0.0
    %4807 = vmatprep.subr.mxu0 0.0
    %4808 = vmatpush2.msra.mxu0 0.0
    %4809 = vmatprep.subr.mxu0 0.0
    %4810 = vmatpush2.msra.mxu0 0.0
    %4811 = vmatprep.subr.mxu0 0.0
    %4812 = vmatpush2.msra.mxu0 0.0
    %4813 = vmatprep.subr.mxu0 0.0
    %4814 = vmatpush2.msra.mxu0 0.0
    %4815 = vmatprep.subr.mxu0 0.0
    %4816 = vmatpush2.msra.mxu0 0.0
    %4817 = vmatprep.subr.mxu0 0.0
    %4818 = vmatpush2.msra.mxu0 0.0
    %4819 = vmatprep.subr.mxu0 0.0
    %4820 = vmatpush2.msra.mxu0 0.0
    %4821 = vmatprep.subr.mxu0 0.0
    %4822 = vmatpush2.msra.mxu0 0.0
    %4823 = vmatprep.subr.mxu0 0.0
    %4824 = vmatpush2.msra.mxu0 0.0
    %4825 = vmatprep.subr.mxu0 0.0
    %4826 = vmatpush2.msra.mxu0 0.0
    %4827 = vmatprep.subr.mxu0 0.0
    %4828 = vmatpush2.msra.mxu0 0.0
    %4829 = vmatprep.mubr.f32.mxu0 0.0
    %v4830 = vand.u32 %v4640, 4294901760
    %4831 = vmatmul.mubr.f32.gmra.mxu0 %v4830
    %v4832 = vpop.f32.mrf.mxu0
    %v4833 = vadd.f32 %v4722, %v4832
    %v4834 = vpop.f32.mrf.mxu0
    %4835 = vdwg.mxu0
    %4836 = vmatprep.subr.mxu0 0.0
    %4837 = vmatpush1.msra.mxu0 0.0
    %4838 = vmatprep.subr.mxu0 0.0
    %4839 = vmatpush1.msra.mxu0 0.0
    %4840 = vmatprep.subr.mxu0 0.0
    %4841 = vmatpush1.msra.mxu0 0.0
    %4842 = vmatprep.subr.mxu0 0.0
    %4843 = vmatpush1.msra.mxu0 0.0
    %4844 = vmatprep.subr.mxu0 0.0
    %4845 = vmatpush1.msra.mxu0 0.0
    %4846 = vmatprep.subr.mxu0 0.0
    %4847 = vmatpush1.msra.mxu0 0.0
    %4848 = vmatprep.subr.mxu0 0.0
    %4849 = vmatpush1.msra.mxu0 0.0
    %4850 = vmatprep.subr.mxu0 0.0
    %4851 = vmatpush1.msra.mxu0 0.0
    %4852 = vmatprep.subr.mxu0 0.0
    %v4853 = vand.u32 %v830, 4294901760
    %v4854 = vsub.f32 %v830, %v4853
    %4855 = vmatpush1.msra.mxu0 %v4854
    %4856 = vmatprep.subr.mxu0 0.0
    %v4857 = vand.u32 %v829, 4294901760
    %v4858 = vsub.f32 %v829, %v4857
    %4859 = vmatpush1.msra.mxu0 %v4858
    %4860 = vmatprep.subr.mxu0 0.0
    %v4861 = vand.u32 %v828, 4294901760
    %v4862 = vsub.f32 %v828, %v4861
    %4863 = vmatpush1.msra.mxu0 %v4862
    %4864 = vmatprep.subr.mxu0 0.0
    %v4865 = vand.u32 %v827, 4294901760
    %v4866 = vsub.f32 %v827, %v4865
    %4867 = vmatpush1.msra.mxu0 %v4866
    %4868 = vmatprep.subr.mxu0 0.0
    %v4869 = vand.u32 %v826, 4294901760
    %v4870 = vsub.f32 %v826, %v4869
    %4871 = vmatpush1.msra.mxu0 %v4870
    %4872 = vmatprep.subr.mxu0 0.0
    %v4873 = vand.u32 %v825, 4294901760
    %v4874 = vsub.f32 %v825, %v4873
    %4875 = vmatpush1.msra.mxu0 %v4874
    %4876 = vmatprep.subr.mxu0 0.0
    %v4877 = vand.u32 %v824, 4294901760
    %v4878 = vsub.f32 %v824, %v4877
    %4879 = vmatpush1.msra.mxu0 %v4878
    %4880 = vmatprep.subr.mxu0 0.0
    %v4881 = vand.u32 %v823, 4294901760
    %v4882 = vsub.f32 %v823, %v4881
    %4883 = vmatpush1.msra.mxu0 %v4882
    %4884 = vmatprep.subr.mxu0 0.0
    %4885 = vmatpush2.msra.mxu0 0.0
    %4886 = vmatprep.subr.mxu0 0.0
    %4887 = vmatpush2.msra.mxu0 0.0
    %4888 = vmatprep.subr.mxu0 0.0
    %4889 = vmatpush2.msra.mxu0 0.0
    %4890 = vmatprep.subr.mxu0 0.0
    %4891 = vmatpush2.msra.mxu0 0.0
    %4892 = vmatprep.subr.mxu0 0.0
    %4893 = vmatpush2.msra.mxu0 0.0
    %4894 = vmatprep.subr.mxu0 0.0
    %4895 = vmatpush2.msra.mxu0 0.0
    %4896 = vmatprep.subr.mxu0 0.0
    %4897 = vmatpush2.msra.mxu0 0.0
    %4898 = vmatprep.subr.mxu0 0.0
    %4899 = vmatpush2.msra.mxu0 0.0
    %4900 = vmatprep.subr.mxu0 0.0
    %4901 = vmatpush2.msra.mxu0 0.0
    %4902 = vmatprep.subr.mxu0 0.0
    %4903 = vmatpush2.msra.mxu0 0.0
    %4904 = vmatprep.subr.mxu0 0.0
    %4905 = vmatpush2.msra.mxu0 0.0
    %4906 = vmatprep.subr.mxu0 0.0
    %4907 = vmatpush2.msra.mxu0 0.0
    %4908 = vmatprep.subr.mxu0 0.0
    %4909 = vmatpush2.msra.mxu0 0.0
    %4910 = vmatprep.subr.mxu0 0.0
    %4911 = vmatpush2.msra.mxu0 0.0
    %4912 = vmatprep.subr.mxu0 0.0
    %4913 = vmatpush2.msra.mxu0 0.0
    %4914 = vmatprep.subr.mxu0 0.0
    %4915 = vmatpush2.msra.mxu0 0.0
    %4916 = vmatprep.mubr.f32.mxu0 0.0
    %v4917 = vand.u32 %v4640, 4294901760
    %v4918 = vsub.f32 %v4640, %v4917
    %4919 = vmatmul.mubr.f32.gmra.mxu0 %v4918
    %v4920 = vpop.f32.mrf.mxu0
    %v4921 = vadd.f32 %v4833, %v4920
    %v4922 = vpop.f32.mrf.mxu0
    %4923 = vdwg.mxu0
    %4924 = vmatprep.subr.mxu0 0.0
    %4925 = vmatpush1.msra.mxu0 0.0
    %4926 = vmatprep.subr.mxu0 0.0
    %4927 = vmatpush1.msra.mxu0 0.0
    %4928 = vmatprep.subr.mxu0 0.0
    %4929 = vmatpush1.msra.mxu0 0.0
    %4930 = vmatprep.subr.mxu0 0.0
    %4931 = vmatpush1.msra.mxu0 0.0
    %4932 = vmatprep.subr.mxu0 0.0
    %4933 = vmatpush1.msra.mxu0 0.0
    %4934 = vmatprep.subr.mxu0 0.0
    %4935 = vmatpush1.msra.mxu0 0.0
    %4936 = vmatprep.subr.mxu0 0.0
    %4937 = vmatpush1.msra.mxu0 0.0
    %4938 = vmatprep.subr.mxu0 0.0
    %4939 = vmatpush1.msra.mxu0 0.0
    %4940 = vmatprep.subr.mxu0 0.0
    %v4941 = vand.u32 %v830, 4294901760
    %4942 = vmatpush1.msra.mxu0 %v4941
    %4943 = vmatprep.subr.mxu0 0.0
    %v4944 = vand.u32 %v829, 4294901760
    %4945 = vmatpush1.msra.mxu0 %v4944
    %4946 = vmatprep.subr.mxu0 0.0
    %v4947 = vand.u32 %v828, 4294901760
    %4948 = vmatpush1.msra.mxu0 %v4947
    %4949 = vmatprep.subr.mxu0 0.0
    %v4950 = vand.u32 %v827, 4294901760
    %4951 = vmatpush1.msra.mxu0 %v4950
    %4952 = vmatprep.subr.mxu0 0.0
    %v4953 = vand.u32 %v826, 4294901760
    %4954 = vmatpush1.msra.mxu0 %v4953
    %4955 = vmatprep.subr.mxu0 0.0
    %v4956 = vand.u32 %v825, 4294901760
    %4957 = vmatpush1.msra.mxu0 %v4956
    %4958 = vmatprep.subr.mxu0 0.0
    %v4959 = vand.u32 %v824, 4294901760
    %4960 = vmatpush1.msra.mxu0 %v4959
    %4961 = vmatprep.subr.mxu0 0.0
    %v4962 = vand.u32 %v823, 4294901760
    %4963 = vmatpush1.msra.mxu0 %v4962
    %4964 = vmatprep.subr.mxu0 0.0
    %4965 = vmatpush2.msra.mxu0 0.0
    %4966 = vmatprep.subr.mxu0 0.0
    %4967 = vmatpush2.msra.mxu0 0.0
    %4968 = vmatprep.subr.mxu0 0.0
    %4969 = vmatpush2.msra.mxu0 0.0
    %4970 = vmatprep.subr.mxu0 0.0
    %4971 = vmatpush2.msra.mxu0 0.0
    %4972 = vmatprep.subr.mxu0 0.0
    %4973 = vmatpush2.msra.mxu0 0.0
    %4974 = vmatprep.subr.mxu0 0.0
    %4975 = vmatpush2.msra.mxu0 0.0
    %4976 = vmatprep.subr.mxu0 0.0
    %4977 = vmatpush2.msra.mxu0 0.0
    %4978 = vmatprep.subr.mxu0 0.0
    %4979 = vmatpush2.msra.mxu0 0.0
    %4980 = vmatprep.subr.mxu0 0.0
    %4981 = vmatpush2.msra.mxu0 0.0
    %4982 = vmatprep.subr.mxu0 0.0
    %4983 = vmatpush2.msra.mxu0 0.0
    %4984 = vmatprep.subr.mxu0 0.0
    %4985 = vmatpush2.msra.mxu0 0.0
    %4986 = vmatprep.subr.mxu0 0.0
    %4987 = vmatpush2.msra.mxu0 0.0
    %4988 = vmatprep.subr.mxu0 0.0
    %4989 = vmatpush2.msra.mxu0 0.0
    %4990 = vmatprep.subr.mxu0 0.0
    %4991 = vmatpush2.msra.mxu0 0.0
    %4992 = vmatprep.subr.mxu0 0.0
    %4993 = vmatpush2.msra.mxu0 0.0
    %4994 = vmatprep.subr.mxu0 0.0
    %4995 = vmatpush2.msra.mxu0 0.0
    %4996 = vmatprep.mubr.f32.mxu0 0.0
    %v4997 = vand.u32 %v4640, 4294901760
    %v4998 = vsub.f32 %v4640, %v4997
    %v4999 = vand.u32 %v4998, 4294901760
    %5000 = vmatmul.mubr.f32.gmra.mxu0 %v4999
    %v5001 = vpop.f32.mrf.mxu0
    %v5002 = vadd.f32 %v4921, %v5001
    %v5003 = vpop.f32.mrf.mxu0
    %5004 = vdwg.mxu0
    %5005 = vmatprep.subr.mxu0 0.0
    %5006 = vmatpush1.msra.mxu0 0.0
    %5007 = vmatprep.subr.mxu0 0.0
    %5008 = vmatpush1.msra.mxu0 0.0
    %5009 = vmatprep.subr.mxu0 0.0
    %5010 = vmatpush1.msra.mxu0 0.0
    %5011 = vmatprep.subr.mxu0 0.0
    %5012 = vmatpush1.msra.mxu0 0.0
    %5013 = vmatprep.subr.mxu0 0.0
    %5014 = vmatpush1.msra.mxu0 0.0
    %5015 = vmatprep.subr.mxu0 0.0
    %5016 = vmatpush1.msra.mxu0 0.0
    %5017 = vmatprep.subr.mxu0 0.0
    %5018 = vmatpush1.msra.mxu0 0.0
    %5019 = vmatprep.subr.mxu0 0.0
    %5020 = vmatpush1.msra.mxu0 0.0
    %5021 = vmatprep.subr.mxu0 0.0
    %v5022 = vand.u32 %v830, 4294901760
    %v5023 = vsub.f32 %v830, %v5022
    %v5024 = vand.u32 %v5023, 4294901760
    %5025 = vmatpush1.msra.mxu0 %v5024
    %5026 = vmatprep.subr.mxu0 0.0
    %v5027 = vand.u32 %v829, 4294901760
    %v5028 = vsub.f32 %v829, %v5027
    %v5029 = vand.u32 %v5028, 4294901760
    %5030 = vmatpush1.msra.mxu0 %v5029
    %5031 = vmatprep.subr.mxu0 0.0
    %v5032 = vand.u32 %v828, 4294901760
    %v5033 = vsub.f32 %v828, %v5032
    %v5034 = vand.u32 %v5033, 4294901760
    %5035 = vmatpush1.msra.mxu0 %v5034
    %5036 = vmatprep.subr.mxu0 0.0
    %v5037 = vand.u32 %v827, 4294901760
    %v5038 = vsub.f32 %v827, %v5037
    %v5039 = vand.u32 %v5038, 4294901760
    %5040 = vmatpush1.msra.mxu0 %v5039
    %5041 = vmatprep.subr.mxu0 0.0
    %v5042 = vand.u32 %v826, 4294901760
    %v5043 = vsub.f32 %v826, %v5042
    %v5044 = vand.u32 %v5043, 4294901760
    %5045 = vmatpush1.msra.mxu0 %v5044
    %5046 = vmatprep.subr.mxu0 0.0
    %v5047 = vand.u32 %v825, 4294901760
    %v5048 = vsub.f32 %v825, %v5047
    %v5049 = vand.u32 %v5048, 4294901760
    %5050 = vmatpush1.msra.mxu0 %v5049
    %5051 = vmatprep.subr.mxu0 0.0
    %v5052 = vand.u32 %v824, 4294901760
    %v5053 = vsub.f32 %v824, %v5052
    %v5054 = vand.u32 %v5053, 4294901760
    %5055 = vmatpush1.msra.mxu0 %v5054
    %5056 = vmatprep.subr.mxu0 0.0
    %v5057 = vand.u32 %v823, 4294901760
    %v5058 = vsub.f32 %v823, %v5057
    %v5059 = vand.u32 %v5058, 4294901760
    %5060 = vmatpush1.msra.mxu0 %v5059
    %5061 = vmatprep.subr.mxu0 0.0
    %5062 = vmatpush2.msra.mxu0 0.0
    %5063 = vmatprep.subr.mxu0 0.0
    %5064 = vmatpush2.msra.mxu0 0.0
    %5065 = vmatprep.subr.mxu0 0.0
    %5066 = vmatpush2.msra.mxu0 0.0
    %5067 = vmatprep.subr.mxu0 0.0
    %5068 = vmatpush2.msra.mxu0 0.0
    %5069 = vmatprep.subr.mxu0 0.0
    %5070 = vmatpush2.msra.mxu0 0.0
    %5071 = vmatprep.subr.mxu0 0.0
    %5072 = vmatpush2.msra.mxu0 0.0
    %5073 = vmatprep.subr.mxu0 0.0
    %5074 = vmatpush2.msra.mxu0 0.0
    %5075 = vmatprep.subr.mxu0 0.0
    %5076 = vmatpush2.msra.mxu0 0.0
    %5077 = vmatprep.subr.mxu0 0.0
    %5078 = vmatpush2.msra.mxu0 0.0
    %5079 = vmatprep.subr.mxu0 0.0
    %5080 = vmatpush2.msra.mxu0 0.0
    %5081 = vmatprep.subr.mxu0 0.0
    %5082 = vmatpush2.msra.mxu0 0.0
    %5083 = vmatprep.subr.mxu0 0.0
    %5084 = vmatpush2.msra.mxu0 0.0
    %5085 = vmatprep.subr.mxu0 0.0
    %5086 = vmatpush2.msra.mxu0 0.0
    %5087 = vmatprep.subr.mxu0 0.0
    %5088 = vmatpush2.msra.mxu0 0.0
    %5089 = vmatprep.subr.mxu0 0.0
    %5090 = vmatpush2.msra.mxu0 0.0
    %5091 = vmatprep.subr.mxu0 0.0
    %5092 = vmatpush2.msra.mxu0 0.0
    %5093 = vmatprep.mubr.f32.mxu0 0.0
    %v5094 = vand.u32 %v4640, 4294901760
    %5095 = vmatmul.mubr.f32.gmra.mxu0 %v5094
    %v5096 = vpop.f32.mrf.mxu0
    %v5097 = vadd.f32 %v5002, %v5096
    %v5098 = vpop.f32.mrf.mxu0
    %5099 = vdwg.mxu0
    %5100 = vmatprep.subr.mxu0 0.0
    %5101 = vmatpush1.msra.mxu0 0.0
    %5102 = vmatprep.subr.mxu0 0.0
    %5103 = vmatpush1.msra.mxu0 0.0
    %5104 = vmatprep.subr.mxu0 0.0
    %5105 = vmatpush1.msra.mxu0 0.0
    %5106 = vmatprep.subr.mxu0 0.0
    %5107 = vmatpush1.msra.mxu0 0.0
    %5108 = vmatprep.subr.mxu0 0.0
    %5109 = vmatpush1.msra.mxu0 0.0
    %5110 = vmatprep.subr.mxu0 0.0
    %5111 = vmatpush1.msra.mxu0 0.0
    %5112 = vmatprep.subr.mxu0 0.0
    %5113 = vmatpush1.msra.mxu0 0.0
    %5114 = vmatprep.subr.mxu0 0.0
    %5115 = vmatpush1.msra.mxu0 0.0
    %5116 = vmatprep.subr.mxu0 0.0
    %v5117 = vand.u32 %v830, 4294901760
    %5118 = vmatpush1.msra.mxu0 %v5117
    %5119 = vmatprep.subr.mxu0 0.0
    %v5120 = vand.u32 %v829, 4294901760
    %5121 = vmatpush1.msra.mxu0 %v5120
    %5122 = vmatprep.subr.mxu0 0.0
    %v5123 = vand.u32 %v828, 4294901760
    %5124 = vmatpush1.msra.mxu0 %v5123
    %5125 = vmatprep.subr.mxu0 0.0
    %v5126 = vand.u32 %v827, 4294901760
    %5127 = vmatpush1.msra.mxu0 %v5126
    %5128 = vmatprep.subr.mxu0 0.0
    %v5129 = vand.u32 %v826, 4294901760
    %5130 = vmatpush1.msra.mxu0 %v5129
    %5131 = vmatprep.subr.mxu0 0.0
    %v5132 = vand.u32 %v825, 4294901760
    %5133 = vmatpush1.msra.mxu0 %v5132
    %5134 = vmatprep.subr.mxu0 0.0
    %v5135 = vand.u32 %v824, 4294901760
    %5136 = vmatpush1.msra.mxu0 %v5135
    %5137 = vmatprep.subr.mxu0 0.0
    %v5138 = vand.u32 %v823, 4294901760
    %5139 = vmatpush1.msra.mxu0 %v5138
    %5140 = vmatprep.subr.mxu0 0.0
    %5141 = vmatpush2.msra.mxu0 0.0
    %5142 = vmatprep.subr.mxu0 0.0
    %5143 = vmatpush2.msra.mxu0 0.0
    %5144 = vmatprep.subr.mxu0 0.0
    %5145 = vmatpush2.msra.mxu0 0.0
    %5146 = vmatprep.subr.mxu0 0.0
    %5147 = vmatpush2.msra.mxu0 0.0
    %5148 = vmatprep.subr.mxu0 0.0
    %5149 = vmatpush2.msra.mxu0 0.0
    %5150 = vmatprep.subr.mxu0 0.0
    %5151 = vmatpush2.msra.mxu0 0.0
    %5152 = vmatprep.subr.mxu0 0.0
    %5153 = vmatpush2.msra.mxu0 0.0
    %5154 = vmatprep.subr.mxu0 0.0
    %5155 = vmatpush2.msra.mxu0 0.0
    %5156 = vmatprep.subr.mxu0 0.0
    %5157 = vmatpush2.msra.mxu0 0.0
    %5158 = vmatprep.subr.mxu0 0.0
    %5159 = vmatpush2.msra.mxu0 0.0
    %5160 = vmatprep.subr.mxu0 0.0
    %5161 = vmatpush2.msra.mxu0 0.0
    %5162 = vmatprep.subr.mxu0 0.0
    %5163 = vmatpush2.msra.mxu0 0.0
    %5164 = vmatprep.subr.mxu0 0.0
    %5165 = vmatpush2.msra.mxu0 0.0
    %5166 = vmatprep.subr.mxu0 0.0
    %5167 = vmatpush2.msra.mxu0 0.0
    %5168 = vmatprep.subr.mxu0 0.0
    %5169 = vmatpush2.msra.mxu0 0.0
    %5170 = vmatprep.subr.mxu0 0.0
    %5171 = vmatpush2.msra.mxu0 0.0
    %5172 = vmatprep.mubr.f32.mxu0 0.0
    %v5173 = vand.u32 %v4640, 4294901760
    %5174 = vmatmul.mubr.f32.gmra.mxu0 %v5173
    %v5175 = vpop.f32.mrf.mxu0
    %v5176 = vadd.f32 %v5097, %v5175
    %v5177 = vpop.f32.mrf.mxu0
    %5178 = vdwg.mxu0
    %v5179 = vadd.f32 %v5176, %v820
    %v5180 = vtanh.pop %v5179
    %v5182 = vsel %vm840, %v5180, 0
    %5184 = vmatprep.subr.mxu0 0.0
    %5185 = vmatpush1.msra.mxu0 0.0
    %5186 = vmatprep.subr.mxu0 0.0
    %5187 = vmatpush1.msra.mxu0 0.0
    %5188 = vmatprep.subr.mxu0 0.0
    %5189 = vmatpush1.msra.mxu0 0.0
    %5190 = vmatprep.subr.mxu0 0.0
    %5191 = vmatpush1.msra.mxu0 0.0
    %5192 = vmatprep.subr.mxu0 0.0
    %5193 = vmatpush1.msra.mxu0 0.0
    %5194 = vmatprep.subr.mxu0 0.0
    %5195 = vmatpush1.msra.mxu0 0.0
    %5196 = vmatprep.subr.mxu0 0.0
    %5197 = vmatpush1.msra.mxu0 0.0
    %5198 = vmatprep.subr.mxu0 0.0
    %5199 = vmatpush1.msra.mxu0 0.0
    %5200 = vmatprep.subr.mxu0 0.0
    %v5201 = vand.u32 %v830, 4294901760
    %5202 = vmatpush1.msra.mxu0 %v5201
    %5203 = vmatprep.subr.mxu0 0.0
    %v5204 = vand.u32 %v829, 4294901760
    %5205 = vmatpush1.msra.mxu0 %v5204
    %5206 = vmatprep.subr.mxu0 0.0
    %v5207 = vand.u32 %v828, 4294901760
    %5208 = vmatpush1.msra.mxu0 %v5207
    %5209 = vmatprep.subr.mxu0 0.0
    %v5210 = vand.u32 %v827, 4294901760
    %5211 = vmatpush1.msra.mxu0 %v5210
    %5212 = vmatprep.subr.mxu0 0.0
    %v5213 = vand.u32 %v826, 4294901760
    %5214 = vmatpush1.msra.mxu0 %v5213
    %5215 = vmatprep.subr.mxu0 0.0
    %v5216 = vand.u32 %v825, 4294901760
    %5217 = vmatpush1.msra.mxu0 %v5216
    %5218 = vmatprep.subr.mxu0 0.0
    %v5219 = vand.u32 %v824, 4294901760
    %5220 = vmatpush1.msra.mxu0 %v5219
    %5221 = vmatprep.subr.mxu0 0.0
    %v5222 = vand.u32 %v823, 4294901760
    %5223 = vmatpush1.msra.mxu0 %v5222
    %5224 = vmatprep.subr.mxu0 0.0
    %5225 = vmatpush2.msra.mxu0 0.0
    %5226 = vmatprep.subr.mxu0 0.0
    %5227 = vmatpush2.msra.mxu0 0.0
    %5228 = vmatprep.subr.mxu0 0.0
    %5229 = vmatpush2.msra.mxu0 0.0
    %5230 = vmatprep.subr.mxu0 0.0
    %5231 = vmatpush2.msra.mxu0 0.0
    %5232 = vmatprep.subr.mxu0 0.0
    %5233 = vmatpush2.msra.mxu0 0.0
    %5234 = vmatprep.subr.mxu0 0.0
    %5235 = vmatpush2.msra.mxu0 0.0
    %5236 = vmatprep.subr.mxu0 0.0
    %5237 = vmatpush2.msra.mxu0 0.0
    %5238 = vmatprep.subr.mxu0 0.0
    %5239 = vmatpush2.msra.mxu0 0.0
    %5240 = vmatprep.subr.mxu0 0.0
    %5241 = vmatpush2.msra.mxu0 0.0
    %5242 = vmatprep.subr.mxu0 0.0
    %5243 = vmatpush2.msra.mxu0 0.0
    %5244 = vmatprep.subr.mxu0 0.0
    %5245 = vmatpush2.msra.mxu0 0.0
    %5246 = vmatprep.subr.mxu0 0.0
    %5247 = vmatpush2.msra.mxu0 0.0
    %5248 = vmatprep.subr.mxu0 0.0
    %5249 = vmatpush2.msra.mxu0 0.0
    %5250 = vmatprep.subr.mxu0 0.0
    %5251 = vmatpush2.msra.mxu0 0.0
    %5252 = vmatprep.subr.mxu0 0.0
    %5253 = vmatpush2.msra.mxu0 0.0
    %5254 = vmatprep.subr.mxu0 0.0
    %5255 = vmatpush2.msra.mxu0 0.0
    %5256 = vmatprep.mubr.f32.mxu0 0.0
    %v5257 = vand.u32 %v5182, 4294901760
    %v5258 = vsub.f32 %v5182, %v5257
    %v5259 = vand.u32 %v5258, 4294901760
    %v5260 = vsub.f32 %v5258, %v5259
    %v5261 = vand.u32 %v5260, 4294901760
    %5262 = vmatmul.mubr.f32.gmra.mxu0 %v5261
    %v5263 = vpop.f32.mrf.mxu0
    %v5264 = vadd.f32 %v838, %v5263
    %v5265 = vpop.f32.mrf.mxu0
    %5266 = vdwg.mxu0
    %5267 = vmatprep.subr.mxu0 0.0
    %5268 = vmatpush1.msra.mxu0 0.0
    %5269 = vmatprep.subr.mxu0 0.0
    %5270 = vmatpush1.msra.mxu0 0.0
    %5271 = vmatprep.subr.mxu0 0.0
    %5272 = vmatpush1.msra.mxu0 0.0
    %5273 = vmatprep.subr.mxu0 0.0
    %5274 = vmatpush1.msra.mxu0 0.0
    %5275 = vmatprep.subr.mxu0 0.0
    %5276 = vmatpush1.msra.mxu0 0.0
    %5277 = vmatprep.subr.mxu0 0.0
    %5278 = vmatpush1.msra.mxu0 0.0
    %5279 = vmatprep.subr.mxu0 0.0
    %5280 = vmatpush1.msra.mxu0 0.0
    %5281 = vmatprep.subr.mxu0 0.0
    %5282 = vmatpush1.msra.mxu0 0.0
    %5283 = vmatprep.subr.mxu0 0.0
    %v5284 = vand.u32 %v830, 4294901760
    %v5285 = vsub.f32 %v830, %v5284
    %v5286 = vand.u32 %v5285, 4294901760
    %v5287 = vsub.f32 %v5285, %v5286
    %v5288 = vand.u32 %v5287, 4294901760
    %5289 = vmatpush1.msra.mxu0 %v5288
    %5290 = vmatprep.subr.mxu0 0.0
    %v5291 = vand.u32 %v829, 4294901760
    %v5292 = vsub.f32 %v829, %v5291
    %v5293 = vand.u32 %v5292, 4294901760
    %v5294 = vsub.f32 %v5292, %v5293
    %v5295 = vand.u32 %v5294, 4294901760
    %5296 = vmatpush1.msra.mxu0 %v5295
    %5297 = vmatprep.subr.mxu0 0.0
    %v5298 = vand.u32 %v828, 4294901760
    %v5299 = vsub.f32 %v828, %v5298
    %v5300 = vand.u32 %v5299, 4294901760
    %v5301 = vsub.f32 %v5299, %v5300
    %v5302 = vand.u32 %v5301, 4294901760
    %5303 = vmatpush1.msra.mxu0 %v5302
    %5304 = vmatprep.subr.mxu0 0.0
    %v5305 = vand.u32 %v827, 4294901760
    %v5306 = vsub.f32 %v827, %v5305
    %v5307 = vand.u32 %v5306, 4294901760
    %v5308 = vsub.f32 %v5306, %v5307
    %v5309 = vand.u32 %v5308, 4294901760
    %5310 = vmatpush1.msra.mxu0 %v5309
    %5311 = vmatprep.subr.mxu0 0.0
    %v5312 = vand.u32 %v826, 4294901760
    %v5313 = vsub.f32 %v826, %v5312
    %v5314 = vand.u32 %v5313, 4294901760
    %v5315 = vsub.f32 %v5313, %v5314
    %v5316 = vand.u32 %v5315, 4294901760
    %5317 = vmatpush1.msra.mxu0 %v5316
    %5318 = vmatprep.subr.mxu0 0.0
    %v5319 = vand.u32 %v825, 4294901760
    %v5320 = vsub.f32 %v825, %v5319
    %v5321 = vand.u32 %v5320, 4294901760
    %v5322 = vsub.f32 %v5320, %v5321
    %v5323 = vand.u32 %v5322, 4294901760
    %5324 = vmatpush1.msra.mxu0 %v5323
    %5325 = vmatprep.subr.mxu0 0.0
    %v5326 = vand.u32 %v824, 4294901760
    %v5327 = vsub.f32 %v824, %v5326
    %v5328 = vand.u32 %v5327, 4294901760
    %v5329 = vsub.f32 %v5327, %v5328
    %v5330 = vand.u32 %v5329, 4294901760
    %5331 = vmatpush1.msra.mxu0 %v5330
    %5332 = vmatprep.subr.mxu0 0.0
    %v5333 = vand.u32 %v823, 4294901760
    %v5334 = vsub.f32 %v823, %v5333
    %v5335 = vand.u32 %v5334, 4294901760
    %v5336 = vsub.f32 %v5334, %v5335
    %v5337 = vand.u32 %v5336, 4294901760
    %5338 = vmatpush1.msra.mxu0 %v5337
    %5339 = vmatprep.subr.mxu0 0.0
    %5340 = vmatpush2.msra.mxu0 0.0
    %5341 = vmatprep.subr.mxu0 0.0
    %5342 = vmatpush2.msra.mxu0 0.0
    %5343 = vmatprep.subr.mxu0 0.0
    %5344 = vmatpush2.msra.mxu0 0.0
    %5345 = vmatprep.subr.mxu0 0.0
    %5346 = vmatpush2.msra.mxu0 0.0
    %5347 = vmatprep.subr.mxu0 0.0
    %5348 = vmatpush2.msra.mxu0 0.0
    %5349 = vmatprep.subr.mxu0 0.0
    %5350 = vmatpush2.msra.mxu0 0.0
    %5351 = vmatprep.subr.mxu0 0.0
    %5352 = vmatpush2.msra.mxu0 0.0
    %5353 = vmatprep.subr.mxu0 0.0
    %5354 = vmatpush2.msra.mxu0 0.0
    %5355 = vmatprep.subr.mxu0 0.0
    %5356 = vmatpush2.msra.mxu0 0.0
    %5357 = vmatprep.subr.mxu0 0.0
    %5358 = vmatpush2.msra.mxu0 0.0
    %5359 = vmatprep.subr.mxu0 0.0
    %5360 = vmatpush2.msra.mxu0 0.0
    %5361 = vmatprep.subr.mxu0 0.0
    %5362 = vmatpush2.msra.mxu0 0.0
    %5363 = vmatprep.subr.mxu0 0.0
    %5364 = vmatpush2.msra.mxu0 0.0
    %5365 = vmatprep.subr.mxu0 0.0
    %5366 = vmatpush2.msra.mxu0 0.0
    %5367 = vmatprep.subr.mxu0 0.0
    %5368 = vmatpush2.msra.mxu0 0.0
    %5369 = vmatprep.subr.mxu0 0.0
    %5370 = vmatpush2.msra.mxu0 0.0
    %5371 = vmatprep.mubr.f32.mxu0 0.0
    %v5372 = vand.u32 %v5182, 4294901760
    %5373 = vmatmul.mubr.f32.gmra.mxu0 %v5372
    %v5374 = vpop.f32.mrf.mxu0
    %v5375 = vadd.f32 %v5264, %v5374
    %v5376 = vpop.f32.mrf.mxu0
    %5377 = vdwg.mxu0
    %5378 = vmatprep.subr.mxu0 0.0
    %5379 = vmatpush1.msra.mxu0 0.0
    %5380 = vmatprep.subr.mxu0 0.0
    %5381 = vmatpush1.msra.mxu0 0.0
    %5382 = vmatprep.subr.mxu0 0.0
    %5383 = vmatpush1.msra.mxu0 0.0
    %5384 = vmatprep.subr.mxu0 0.0
    %5385 = vmatpush1.msra.mxu0 0.0
    %5386 = vmatprep.subr.mxu0 0.0
    %5387 = vmatpush1.msra.mxu0 0.0
    %5388 = vmatprep.subr.mxu0 0.0
    %5389 = vmatpush1.msra.mxu0 0.0
    %5390 = vmatprep.subr.mxu0 0.0
    %5391 = vmatpush1.msra.mxu0 0.0
    %5392 = vmatprep.subr.mxu0 0.0
    %5393 = vmatpush1.msra.mxu0 0.0
    %5394 = vmatprep.subr.mxu0 0.0
    %v5395 = vand.u32 %v830, 4294901760
    %v5396 = vsub.f32 %v830, %v5395
    %5397 = vmatpush1.msra.mxu0 %v5396
    %5398 = vmatprep.subr.mxu0 0.0
    %v5399 = vand.u32 %v829, 4294901760
    %v5400 = vsub.f32 %v829, %v5399
    %5401 = vmatpush1.msra.mxu0 %v5400
    %5402 = vmatprep.subr.mxu0 0.0
    %v5403 = vand.u32 %v828, 4294901760
    %v5404 = vsub.f32 %v828, %v5403
    %5405 = vmatpush1.msra.mxu0 %v5404
    %5406 = vmatprep.subr.mxu0 0.0
    %v5407 = vand.u32 %v827, 4294901760
    %v5408 = vsub.f32 %v827, %v5407
    %5409 = vmatpush1.msra.mxu0 %v5408
    %5410 = vmatprep.subr.mxu0 0.0
    %v5411 = vand.u32 %v826, 4294901760
    %v5412 = vsub.f32 %v826, %v5411
    %5413 = vmatpush1.msra.mxu0 %v5412
    %5414 = vmatprep.subr.mxu0 0.0
    %v5415 = vand.u32 %v825, 4294901760
    %v5416 = vsub.f32 %v825, %v5415
    %5417 = vmatpush1.msra.mxu0 %v5416
    %5418 = vmatprep.subr.mxu0 0.0
    %v5419 = vand.u32 %v824, 4294901760
    %v5420 = vsub.f32 %v824, %v5419
    %5421 = vmatpush1.msra.mxu0 %v5420
    %5422 = vmatprep.subr.mxu0 0.0
    %v5423 = vand.u32 %v823, 4294901760
    %v5424 = vsub.f32 %v823, %v5423
    %5425 = vmatpush1.msra.mxu0 %v5424
    %5426 = vmatprep.subr.mxu0 0.0
    %5427 = vmatpush2.msra.mxu0 0.0
    %5428 = vmatprep.subr.mxu0 0.0
    %5429 = vmatpush2.msra.mxu0 0.0
    %5430 = vmatprep.subr.mxu0 0.0
    %5431 = vmatpush2.msra.mxu0 0.0
    %5432 = vmatprep.subr.mxu0 0.0
    %5433 = vmatpush2.msra.mxu0 0.0
    %5434 = vmatprep.subr.mxu0 0.0
    %5435 = vmatpush2.msra.mxu0 0.0
    %5436 = vmatprep.subr.mxu0 0.0
    %5437 = vmatpush2.msra.mxu0 0.0
    %5438 = vmatprep.subr.mxu0 0.0
    %5439 = vmatpush2.msra.mxu0 0.0
    %5440 = vmatprep.subr.mxu0 0.0
    %5441 = vmatpush2.msra.mxu0 0.0
    %5442 = vmatprep.subr.mxu0 0.0
    %5443 = vmatpush2.msra.mxu0 0.0
    %5444 = vmatprep.subr.mxu0 0.0
    %5445 = vmatpush2.msra.mxu0 0.0
    %5446 = vmatprep.subr.mxu0 0.0
    %5447 = vmatpush2.msra.mxu0 0.0
    %5448 = vmatprep.subr.mxu0 0.0
    %5449 = vmatpush2.msra.mxu0 0.0
    %5450 = vmatprep.subr.mxu0 0.0
    %5451 = vmatpush2.msra.mxu0 0.0
    %5452 = vmatprep.subr.mxu0 0.0
    %5453 = vmatpush2.msra.mxu0 0.0
    %5454 = vmatprep.subr.mxu0 0.0
    %5455 = vmatpush2.msra.mxu0 0.0
    %5456 = vmatprep.subr.mxu0 0.0
    %5457 = vmatpush2.msra.mxu0 0.0
    %5458 = vmatprep.mubr.f32.mxu0 0.0
    %v5459 = vand.u32 %v5182, 4294901760
    %v5460 = vsub.f32 %v5182, %v5459
    %5461 = vmatmul.mubr.f32.gmra.mxu0 %v5460
    %v5462 = vpop.f32.mrf.mxu0
    %v5463 = vadd.f32 %v5375, %v5462
    %v5464 = vpop.f32.mrf.mxu0
    %5465 = vdwg.mxu0
    %5466 = vmatprep.subr.mxu0 0.0
    %5467 = vmatpush1.msra.mxu0 0.0
    %5468 = vmatprep.subr.mxu0 0.0
    %5469 = vmatpush1.msra.mxu0 0.0
    %5470 = vmatprep.subr.mxu0 0.0
    %5471 = vmatpush1.msra.mxu0 0.0
    %5472 = vmatprep.subr.mxu0 0.0
    %5473 = vmatpush1.msra.mxu0 0.0
    %5474 = vmatprep.subr.mxu0 0.0
    %5475 = vmatpush1.msra.mxu0 0.0
    %5476 = vmatprep.subr.mxu0 0.0
    %5477 = vmatpush1.msra.mxu0 0.0
    %5478 = vmatprep.subr.mxu0 0.0
    %5479 = vmatpush1.msra.mxu0 0.0
    %5480 = vmatprep.subr.mxu0 0.0
    %5481 = vmatpush1.msra.mxu0 0.0
    %5482 = vmatprep.subr.mxu0 0.0
    %v5483 = vand.u32 %v830, 4294901760
    %5484 = vmatpush1.msra.mxu0 %v5483
    %5485 = vmatprep.subr.mxu0 0.0
    %v5486 = vand.u32 %v829, 4294901760
    %5487 = vmatpush1.msra.mxu0 %v5486
    %5488 = vmatprep.subr.mxu0 0.0
    %v5489 = vand.u32 %v828, 4294901760
    %5490 = vmatpush1.msra.mxu0 %v5489
    %5491 = vmatprep.subr.mxu0 0.0
    %v5492 = vand.u32 %v827, 4294901760
    %5493 = vmatpush1.msra.mxu0 %v5492
    %5494 = vmatprep.subr.mxu0 0.0
    %v5495 = vand.u32 %v826, 4294901760
    %5496 = vmatpush1.msra.mxu0 %v5495
    %5497 = vmatprep.subr.mxu0 0.0
    %v5498 = vand.u32 %v825, 4294901760
    %5499 = vmatpush1.msra.mxu0 %v5498
    %5500 = vmatprep.subr.mxu0 0.0
    %v5501 = vand.u32 %v824, 4294901760
    %5502 = vmatpush1.msra.mxu0 %v5501
    %5503 = vmatprep.subr.mxu0 0.0
    %v5504 = vand.u32 %v823, 4294901760
    %5505 = vmatpush1.msra.mxu0 %v5504
    %5506 = vmatprep.subr.mxu0 0.0
    %5507 = vmatpush2.msra.mxu0 0.0
    %5508 = vmatprep.subr.mxu0 0.0
    %5509 = vmatpush2.msra.mxu0 0.0
    %5510 = vmatprep.subr.mxu0 0.0
    %5511 = vmatpush2.msra.mxu0 0.0
    %5512 = vmatprep.subr.mxu0 0.0
    %5513 = vmatpush2.msra.mxu0 0.0
    %5514 = vmatprep.subr.mxu0 0.0
    %5515 = vmatpush2.msra.mxu0 0.0
    %5516 = vmatprep.subr.mxu0 0.0
    %5517 = vmatpush2.msra.mxu0 0.0
    %5518 = vmatprep.subr.mxu0 0.0
    %5519 = vmatpush2.msra.mxu0 0.0
    %5520 = vmatprep.subr.mxu0 0.0
    %5521 = vmatpush2.msra.mxu0 0.0
    %5522 = vmatprep.subr.mxu0 0.0
    %5523 = vmatpush2.msra.mxu0 0.0
    %5524 = vmatprep.subr.mxu0 0.0
    %5525 = vmatpush2.msra.mxu0 0.0
    %5526 = vmatprep.subr.mxu0 0.0
    %5527 = vmatpush2.msra.mxu0 0.0
    %5528 = vmatprep.subr.mxu0 0.0
    %5529 = vmatpush2.msra.mxu0 0.0
    %5530 = vmatprep.subr.mxu0 0.0
    %5531 = vmatpush2.msra.mxu0 0.0
    %5532 = vmatprep.subr.mxu0 0.0
    %5533 = vmatpush2.msra.mxu0 0.0
    %5534 = vmatprep.subr.mxu0 0.0
    %5535 = vmatpush2.msra.mxu0 0.0
    %5536 = vmatprep.subr.mxu0 0.0
    %5537 = vmatpush2.msra.mxu0 0.0
    %5538 = vmatprep.mubr.f32.mxu0 0.0
    %v5539 = vand.u32 %v5182, 4294901760
    %v5540 = vsub.f32 %v5182, %v5539
    %v5541 = vand.u32 %v5540, 4294901760
    %5542 = vmatmul.mubr.f32.gmra.mxu0 %v5541
    %v5543 = vpop.f32.mrf.mxu0
    %v5544 = vadd.f32 %v5463, %v5543
    %v5545 = vpop.f32.mrf.mxu0
    %5546 = vdwg.mxu0
    %5547 = vmatprep.subr.mxu0 0.0
    %5548 = vmatpush1.msra.mxu0 0.0
    %5549 = vmatprep.subr.mxu0 0.0
    %5550 = vmatpush1.msra.mxu0 0.0
    %5551 = vmatprep.subr.mxu0 0.0
    %5552 = vmatpush1.msra.mxu0 0.0
    %5553 = vmatprep.subr.mxu0 0.0
    %5554 = vmatpush1.msra.mxu0 0.0
    %5555 = vmatprep.subr.mxu0 0.0
    %5556 = vmatpush1.msra.mxu0 0.0
    %5557 = vmatprep.subr.mxu0 0.0
    %5558 = vmatpush1.msra.mxu0 0.0
    %5559 = vmatprep.subr.mxu0 0.0
    %5560 = vmatpush1.msra.mxu0 0.0
    %5561 = vmatprep.subr.mxu0 0.0
    %5562 = vmatpush1.msra.mxu0 0.0
    %5563 = vmatprep.subr.mxu0 0.0
    %v5564 = vand.u32 %v830, 4294901760
    %v5565 = vsub.f32 %v830, %v5564
    %v5566 = vand.u32 %v5565, 4294901760
    %5567 = vmatpush1.msra.mxu0 %v5566
    %5568 = vmatprep.subr.mxu0 0.0
    %v5569 = vand.u32 %v829, 4294901760
    %v5570 = vsub.f32 %v829, %v5569
    %v5571 = vand.u32 %v5570, 4294901760
    %5572 = vmatpush1.msra.mxu0 %v5571
    %5573 = vmatprep.subr.mxu0 0.0
    %v5574 = vand.u32 %v828, 4294901760
    %v5575 = vsub.f32 %v828, %v5574
    %v5576 = vand.u32 %v5575, 4294901760
    %5577 = vmatpush1.msra.mxu0 %v5576
    %5578 = vmatprep.subr.mxu0 0.0
    %v5579 = vand.u32 %v827, 4294901760
    %v5580 = vsub.f32 %v827, %v5579
    %v5581 = vand.u32 %v5580, 4294901760
    %5582 = vmatpush1.msra.mxu0 %v5581
    %5583 = vmatprep.subr.mxu0 0.0
    %v5584 = vand.u32 %v826, 4294901760
    %v5585 = vsub.f32 %v826, %v5584
    %v5586 = vand.u32 %v5585, 4294901760
    %5587 = vmatpush1.msra.mxu0 %v5586
    %5588 = vmatprep.subr.mxu0 0.0
    %v5589 = vand.u32 %v825, 4294901760
    %v5590 = vsub.f32 %v825, %v5589
    %v5591 = vand.u32 %v5590, 4294901760
    %5592 = vmatpush1.msra.mxu0 %v5591
    %5593 = vmatprep.subr.mxu0 0.0
    %v5594 = vand.u32 %v824, 4294901760
    %v5595 = vsub.f32 %v824, %v5594
    %v5596 = vand.u32 %v5595, 4294901760
    %5597 = vmatpush1.msra.mxu0 %v5596
    %5598 = vmatprep.subr.mxu0 0.0
    %v5599 = vand.u32 %v823, 4294901760
    %v5600 = vsub.f32 %v823, %v5599
    %v5601 = vand.u32 %v5600, 4294901760
    %5602 = vmatpush1.msra.mxu0 %v5601
    %5603 = vmatprep.subr.mxu0 0.0
    %5604 = vmatpush2.msra.mxu0 0.0
    %5605 = vmatprep.subr.mxu0 0.0
    %5606 = vmatpush2.msra.mxu0 0.0
    %5607 = vmatprep.subr.mxu0 0.0
    %5608 = vmatpush2.msra.mxu0 0.0
    %5609 = vmatprep.subr.mxu0 0.0
    %5610 = vmatpush2.msra.mxu0 0.0
    %5611 = vmatprep.subr.mxu0 0.0
    %5612 = vmatpush2.msra.mxu0 0.0
    %5613 = vmatprep.subr.mxu0 0.0
    %5614 = vmatpush2.msra.mxu0 0.0
    %5615 = vmatprep.subr.mxu0 0.0
    %5616 = vmatpush2.msra.mxu0 0.0
    %5617 = vmatprep.subr.mxu0 0.0
    %5618 = vmatpush2.msra.mxu0 0.0
    %5619 = vmatprep.subr.mxu0 0.0
    %5620 = vmatpush2.msra.mxu0 0.0
    %5621 = vmatprep.subr.mxu0 0.0
    %5622 = vmatpush2.msra.mxu0 0.0
    %5623 = vmatprep.subr.mxu0 0.0
    %5624 = vmatpush2.msra.mxu0 0.0
    %5625 = vmatprep.subr.mxu0 0.0
    %5626 = vmatpush2.msra.mxu0 0.0
    %5627 = vmatprep.subr.mxu0 0.0
    %5628 = vmatpush2.msra.mxu0 0.0
    %5629 = vmatprep.subr.mxu0 0.0
    %5630 = vmatpush2.msra.mxu0 0.0
    %5631 = vmatprep.subr.mxu0 0.0
    %5632 = vmatpush2.msra.mxu0 0.0
    %5633 = vmatprep.subr.mxu0 0.0
    %5634 = vmatpush2.msra.mxu0 0.0
    %5635 = vmatprep.mubr.f32.mxu0 0.0
    %v5636 = vand.u32 %v5182, 4294901760
    %5637 = vmatmul.mubr.f32.gmra.mxu0 %v5636
    %v5638 = vpop.f32.mrf.mxu0
    %v5639 = vadd.f32 %v5544, %v5638
    %v5640 = vpop.f32.mrf.mxu0
    %5641 = vdwg.mxu0
    %5642 = vmatprep.subr.mxu0 0.0
    %5643 = vmatpush1.msra.mxu0 0.0
    %5644 = vmatprep.subr.mxu0 0.0
    %5645 = vmatpush1.msra.mxu0 0.0
    %5646 = vmatprep.subr.mxu0 0.0
    %5647 = vmatpush1.msra.mxu0 0.0
    %5648 = vmatprep.subr.mxu0 0.0
    %5649 = vmatpush1.msra.mxu0 0.0
    %5650 = vmatprep.subr.mxu0 0.0
    %5651 = vmatpush1.msra.mxu0 0.0
    %5652 = vmatprep.subr.mxu0 0.0
    %5653 = vmatpush1.msra.mxu0 0.0
    %5654 = vmatprep.subr.mxu0 0.0
    %5655 = vmatpush1.msra.mxu0 0.0
    %5656 = vmatprep.subr.mxu0 0.0
    %5657 = vmatpush1.msra.mxu0 0.0
    %5658 = vmatprep.subr.mxu0 0.0
    %v5659 = vand.u32 %v830, 4294901760
    %5660 = vmatpush1.msra.mxu0 %v5659
    %5661 = vmatprep.subr.mxu0 0.0
    %v5662 = vand.u32 %v829, 4294901760
    %5663 = vmatpush1.msra.mxu0 %v5662
    %5664 = vmatprep.subr.mxu0 0.0
    %v5665 = vand.u32 %v828, 4294901760
    %5666 = vmatpush1.msra.mxu0 %v5665
    %5667 = vmatprep.subr.mxu0 0.0
    %v5668 = vand.u32 %v827, 4294901760
    %5669 = vmatpush1.msra.mxu0 %v5668
    %5670 = vmatprep.subr.mxu0 0.0
    %v5671 = vand.u32 %v826, 4294901760
    %5672 = vmatpush1.msra.mxu0 %v5671
    %5673 = vmatprep.subr.mxu0 0.0
    %v5674 = vand.u32 %v825, 4294901760
    %5675 = vmatpush1.msra.mxu0 %v5674
    %5676 = vmatprep.subr.mxu0 0.0
    %v5677 = vand.u32 %v824, 4294901760
    %5678 = vmatpush1.msra.mxu0 %v5677
    %5679 = vmatprep.subr.mxu0 0.0
    %v5680 = vand.u32 %v823, 4294901760
    %5681 = vmatpush1.msra.mxu0 %v5680
    %5682 = vmatprep.subr.mxu0 0.0
    %5683 = vmatpush2.msra.mxu0 0.0
    %5684 = vmatprep.subr.mxu0 0.0
    %5685 = vmatpush2.msra.mxu0 0.0
    %5686 = vmatprep.subr.mxu0 0.0
    %5687 = vmatpush2.msra.mxu0 0.0
    %5688 = vmatprep.subr.mxu0 0.0
    %5689 = vmatpush2.msra.mxu0 0.0
    %5690 = vmatprep.subr.mxu0 0.0
    %5691 = vmatpush2.msra.mxu0 0.0
    %5692 = vmatprep.subr.mxu0 0.0
    %5693 = vmatpush2.msra.mxu0 0.0
    %5694 = vmatprep.subr.mxu0 0.0
    %5695 = vmatpush2.msra.mxu0 0.0
    %5696 = vmatprep.subr.mxu0 0.0
    %5697 = vmatpush2.msra.mxu0 0.0
    %5698 = vmatprep.subr.mxu0 0.0
    %5699 = vmatpush2.msra.mxu0 0.0
    %5700 = vmatprep.subr.mxu0 0.0
    %5701 = vmatpush2.msra.mxu0 0.0
    %5702 = vmatprep.subr.mxu0 0.0
    %5703 = vmatpush2.msra.mxu0 0.0
    %5704 = vmatprep.subr.mxu0 0.0
    %5705 = vmatpush2.msra.mxu0 0.0
    %5706 = vmatprep.subr.mxu0 0.0
    %5707 = vmatpush2.msra.mxu0 0.0
    %5708 = vmatprep.subr.mxu0 0.0
    %5709 = vmatpush2.msra.mxu0 0.0
    %5710 = vmatprep.subr.mxu0 0.0
    %5711 = vmatpush2.msra.mxu0 0.0
    %5712 = vmatprep.subr.mxu0 0.0
    %5713 = vmatpush2.msra.mxu0 0.0
    %5714 = vmatprep.mubr.f32.mxu0 0.0
    %v5715 = vand.u32 %v5182, 4294901760
    %5716 = vmatmul.mubr.f32.gmra.mxu0 %v5715
    %v5717 = vpop.f32.mrf.mxu0
    %v5718 = vadd.f32 %v5639, %v5717
    %v5719 = vpop.f32.mrf.mxu0
    %5720 = vdwg.mxu0
    %v5721 = vtanh.pop %v5718
    %vm5722 = vcmp.ge.s32.totalorder %v833, 32
    %vm5723 = vcmp.lt.s32.totalorder %v833, 64
    %vm5724 = vmand %vm5722, %vm5723
    %v5725 = vsel %vm5724, %v5721, %v5180
    %v5726 = vld [vmem:[%s4] sm:$0xff]
    %v5727 = vld [vmem:[%s4 + $0x8] sm:$0xff]
    %v5728 = vld [vmem:[%s4 + $0x10] sm:$0xff]
    %v5729 = vld [vmem:[%s4 + $0x18] sm:$0xff]
    %v5730 = vld [vmem:[%s4 + $0x20] sm:$0xff]
    %v5731 = vld [vmem:[%s4 + $0x28] sm:$0xff]
    %v5732 = vld [vmem:[%s4 + $0x30] sm:$0xff]
    %v5733 = vld [vmem:[%s4 + $0x38] sm:$0xff]
    %v5734 = vld [vmem:[%s5] sm:$0x1]
    %v5736 = vlaneseq
    %v5737 = vshrl.u32 %v5736, 7
    %v5738 = vsub.s32 0, %v5737
    %v5739 = vrot.slane %v5734, %v5738
    %v5742 = vsel %vm840, %v5725, 0
    %5744 = vmatprep.subr.mxu0 0.0
    %5745 = vmatpush1.msra.mxu0 0.0
    %5746 = vmatprep.subr.mxu0 0.0
    %5747 = vmatpush1.msra.mxu0 0.0
    %5748 = vmatprep.subr.mxu0 0.0
    %5749 = vmatpush1.msra.mxu0 0.0
    %5750 = vmatprep.subr.mxu0 0.0
    %5751 = vmatpush1.msra.mxu0 0.0
    %5752 = vmatprep.subr.mxu0 0.0
    %5753 = vmatpush1.msra.mxu0 0.0
    %5754 = vmatprep.subr.mxu0 0.0
    %5755 = vmatpush1.msra.mxu0 0.0
    %5756 = vmatprep.subr.mxu0 0.0
    %5757 = vmatpush1.msra.mxu0 0.0
    %5758 = vmatprep.subr.mxu0 0.0
    %5759 = vmatpush1.msra.mxu0 0.0
    %5760 = vmatprep.subr.mxu0 0.0
    %v5761 = vand.u32 %v5733, 4294901760
    %5762 = vmatpush1.msra.mxu0 %v5761
    %5763 = vmatprep.subr.mxu0 0.0
    %v5764 = vand.u32 %v5732, 4294901760
    %5765 = vmatpush1.msra.mxu0 %v5764
    %5766 = vmatprep.subr.mxu0 0.0
    %v5767 = vand.u32 %v5731, 4294901760
    %5768 = vmatpush1.msra.mxu0 %v5767
    %5769 = vmatprep.subr.mxu0 0.0
    %v5770 = vand.u32 %v5730, 4294901760
    %5771 = vmatpush1.msra.mxu0 %v5770
    %5772 = vmatprep.subr.mxu0 0.0
    %v5773 = vand.u32 %v5729, 4294901760
    %5774 = vmatpush1.msra.mxu0 %v5773
    %5775 = vmatprep.subr.mxu0 0.0
    %v5776 = vand.u32 %v5728, 4294901760
    %5777 = vmatpush1.msra.mxu0 %v5776
    %5778 = vmatprep.subr.mxu0 0.0
    %v5779 = vand.u32 %v5727, 4294901760
    %5780 = vmatpush1.msra.mxu0 %v5779
    %5781 = vmatprep.subr.mxu0 0.0
    %v5782 = vand.u32 %v5726, 4294901760
    %5783 = vmatpush1.msra.mxu0 %v5782
    %5784 = vmatprep.subr.mxu0 0.0
    %5785 = vmatpush2.msra.mxu0 0.0
    %5786 = vmatprep.subr.mxu0 0.0
    %5787 = vmatpush2.msra.mxu0 0.0
    %5788 = vmatprep.subr.mxu0 0.0
    %5789 = vmatpush2.msra.mxu0 0.0
    %5790 = vmatprep.subr.mxu0 0.0
    %5791 = vmatpush2.msra.mxu0 0.0
    %5792 = vmatprep.subr.mxu0 0.0
    %5793 = vmatpush2.msra.mxu0 0.0
    %5794 = vmatprep.subr.mxu0 0.0
    %5795 = vmatpush2.msra.mxu0 0.0
    %5796 = vmatprep.subr.mxu0 0.0
    %5797 = vmatpush2.msra.mxu0 0.0
    %5798 = vmatprep.subr.mxu0 0.0
    %5799 = vmatpush2.msra.mxu0 0.0
    %5800 = vmatprep.subr.mxu0 0.0
    %5801 = vmatpush2.msra.mxu0 0.0
    %5802 = vmatprep.subr.mxu0 0.0
    %5803 = vmatpush2.msra.mxu0 0.0
    %5804 = vmatprep.subr.mxu0 0.0
    %5805 = vmatpush2.msra.mxu0 0.0
    %5806 = vmatprep.subr.mxu0 0.0
    %5807 = vmatpush2.msra.mxu0 0.0
    %5808 = vmatprep.subr.mxu0 0.0
    %5809 = vmatpush2.msra.mxu0 0.0
    %5810 = vmatprep.subr.mxu0 0.0
    %5811 = vmatpush2.msra.mxu0 0.0
    %5812 = vmatprep.subr.mxu0 0.0
    %5813 = vmatpush2.msra.mxu0 0.0
    %5814 = vmatprep.subr.mxu0 0.0
    %5815 = vmatpush2.msra.mxu0 0.0
    %5816 = vmatprep.mubr.f32.mxu0 0.0
    %v5817 = vand.u32 %v5742, 4294901760
    %v5818 = vsub.f32 %v5742, %v5817
    %v5819 = vand.u32 %v5818, 4294901760
    %v5820 = vsub.f32 %v5818, %v5819
    %v5821 = vand.u32 %v5820, 4294901760
    %5822 = vmatmul.mubr.f32.gmra.mxu0 %v5821
    %v5823 = vpop.f32.mrf.mxu0
    %v5824 = vadd.f32 %v5739, %v5823
    %v5825 = vpop.f32.mrf.mxu0
    %5826 = vdwg.mxu0
    %5827 = vmatprep.subr.mxu0 0.0
    %5828 = vmatpush1.msra.mxu0 0.0
    %5829 = vmatprep.subr.mxu0 0.0
    %5830 = vmatpush1.msra.mxu0 0.0
    %5831 = vmatprep.subr.mxu0 0.0
    %5832 = vmatpush1.msra.mxu0 0.0
    %5833 = vmatprep.subr.mxu0 0.0
    %5834 = vmatpush1.msra.mxu0 0.0
    %5835 = vmatprep.subr.mxu0 0.0
    %5836 = vmatpush1.msra.mxu0 0.0
    %5837 = vmatprep.subr.mxu0 0.0
    %5838 = vmatpush1.msra.mxu0 0.0
    %5839 = vmatprep.subr.mxu0 0.0
    %5840 = vmatpush1.msra.mxu0 0.0
    %5841 = vmatprep.subr.mxu0 0.0
    %5842 = vmatpush1.msra.mxu0 0.0
    %5843 = vmatprep.subr.mxu0 0.0
    %v5844 = vand.u32 %v5733, 4294901760
    %v5845 = vsub.f32 %v5733, %v5844
    %v5846 = vand.u32 %v5845, 4294901760
    %v5847 = vsub.f32 %v5845, %v5846
    %v5848 = vand.u32 %v5847, 4294901760
    %5849 = vmatpush1.msra.mxu0 %v5848
    %5850 = vmatprep.subr.mxu0 0.0
    %v5851 = vand.u32 %v5732, 4294901760
    %v5852 = vsub.f32 %v5732, %v5851
    %v5853 = vand.u32 %v5852, 4294901760
    %v5854 = vsub.f32 %v5852, %v5853
    %v5855 = vand.u32 %v5854, 4294901760
    %5856 = vmatpush1.msra.mxu0 %v5855
    %5857 = vmatprep.subr.mxu0 0.0
    %v5858 = vand.u32 %v5731, 4294901760
    %v5859 = vsub.f32 %v5731, %v5858
    %v5860 = vand.u32 %v5859, 4294901760
    %v5861 = vsub.f32 %v5859, %v5860
    %v5862 = vand.u32 %v5861, 4294901760
    %5863 = vmatpush1.msra.mxu0 %v5862
    %5864 = vmatprep.subr.mxu0 0.0
    %v5865 = vand.u32 %v5730, 4294901760
    %v5866 = vsub.f32 %v5730, %v5865
    %v5867 = vand.u32 %v5866, 4294901760
    %v5868 = vsub.f32 %v5866, %v5867
    %v5869 = vand.u32 %v5868, 4294901760
    %5870 = vmatpush1.msra.mxu0 %v5869
    %5871 = vmatprep.subr.mxu0 0.0
    %v5872 = vand.u32 %v5729, 4294901760
    %v5873 = vsub.f32 %v5729, %v5872
    %v5874 = vand.u32 %v5873, 4294901760
    %v5875 = vsub.f32 %v5873, %v5874
    %v5876 = vand.u32 %v5875, 4294901760
    %5877 = vmatpush1.msra.mxu0 %v5876
    %5878 = vmatprep.subr.mxu0 0.0
    %v5879 = vand.u32 %v5728, 4294901760
    %v5880 = vsub.f32 %v5728, %v5879
    %v5881 = vand.u32 %v5880, 4294901760
    %v5882 = vsub.f32 %v5880, %v5881
    %v5883 = vand.u32 %v5882, 4294901760
    %5884 = vmatpush1.msra.mxu0 %v5883
    %5885 = vmatprep.subr.mxu0 0.0
    %v5886 = vand.u32 %v5727, 4294901760
    %v5887 = vsub.f32 %v5727, %v5886
    %v5888 = vand.u32 %v5887, 4294901760
    %v5889 = vsub.f32 %v5887, %v5888
    %v5890 = vand.u32 %v5889, 4294901760
    %5891 = vmatpush1.msra.mxu0 %v5890
    %5892 = vmatprep.subr.mxu0 0.0
    %v5893 = vand.u32 %v5726, 4294901760
    %v5894 = vsub.f32 %v5726, %v5893
    %v5895 = vand.u32 %v5894, 4294901760
    %v5896 = vsub.f32 %v5894, %v5895
    %v5897 = vand.u32 %v5896, 4294901760
    %5898 = vmatpush1.msra.mxu0 %v5897
    %5899 = vmatprep.subr.mxu0 0.0
    %5900 = vmatpush2.msra.mxu0 0.0
    %5901 = vmatprep.subr.mxu0 0.0
    %5902 = vmatpush2.msra.mxu0 0.0
    %5903 = vmatprep.subr.mxu0 0.0
    %5904 = vmatpush2.msra.mxu0 0.0
    %5905 = vmatprep.subr.mxu0 0.0
    %5906 = vmatpush2.msra.mxu0 0.0
    %5907 = vmatprep.subr.mxu0 0.0
    %5908 = vmatpush2.msra.mxu0 0.0
    %5909 = vmatprep.subr.mxu0 0.0
    %5910 = vmatpush2.msra.mxu0 0.0
    %5911 = vmatprep.subr.mxu0 0.0
    %5912 = vmatpush2.msra.mxu0 0.0
    %5913 = vmatprep.subr.mxu0 0.0
    %5914 = vmatpush2.msra.mxu0 0.0
    %5915 = vmatprep.subr.mxu0 0.0
    %5916 = vmatpush2.msra.mxu0 0.0
    %5917 = vmatprep.subr.mxu0 0.0
    %5918 = vmatpush2.msra.mxu0 0.0
    %5919 = vmatprep.subr.mxu0 0.0
    %5920 = vmatpush2.msra.mxu0 0.0
    %5921 = vmatprep.subr.mxu0 0.0
    %5922 = vmatpush2.msra.mxu0 0.0
    %5923 = vmatprep.subr.mxu0 0.0
    %5924 = vmatpush2.msra.mxu0 0.0
    %5925 = vmatprep.subr.mxu0 0.0
    %5926 = vmatpush2.msra.mxu0 0.0
    %5927 = vmatprep.subr.mxu0 0.0
    %5928 = vmatpush2.msra.mxu0 0.0
    %5929 = vmatprep.subr.mxu0 0.0
    %5930 = vmatpush2.msra.mxu0 0.0
    %5931 = vmatprep.mubr.f32.mxu0 0.0
    %v5932 = vand.u32 %v5742, 4294901760
    %5933 = vmatmul.mubr.f32.gmra.mxu0 %v5932
    %v5934 = vpop.f32.mrf.mxu0
    %v5935 = vadd.f32 %v5824, %v5934
    %v5936 = vpop.f32.mrf.mxu0
    %5937 = vdwg.mxu0
    %5938 = vmatprep.subr.mxu0 0.0
    %5939 = vmatpush1.msra.mxu0 0.0
    %5940 = vmatprep.subr.mxu0 0.0
    %5941 = vmatpush1.msra.mxu0 0.0
    %5942 = vmatprep.subr.mxu0 0.0
    %5943 = vmatpush1.msra.mxu0 0.0
    %5944 = vmatprep.subr.mxu0 0.0
    %5945 = vmatpush1.msra.mxu0 0.0
    %5946 = vmatprep.subr.mxu0 0.0
    %5947 = vmatpush1.msra.mxu0 0.0
    %5948 = vmatprep.subr.mxu0 0.0
    %5949 = vmatpush1.msra.mxu0 0.0
    %5950 = vmatprep.subr.mxu0 0.0
    %5951 = vmatpush1.msra.mxu0 0.0
    %5952 = vmatprep.subr.mxu0 0.0
    %5953 = vmatpush1.msra.mxu0 0.0
    %5954 = vmatprep.subr.mxu0 0.0
    %v5955 = vand.u32 %v5733, 4294901760
    %v5956 = vsub.f32 %v5733, %v5955
    %5957 = vmatpush1.msra.mxu0 %v5956
    %5958 = vmatprep.subr.mxu0 0.0
    %v5959 = vand.u32 %v5732, 4294901760
    %v5960 = vsub.f32 %v5732, %v5959
    %5961 = vmatpush1.msra.mxu0 %v5960
    %5962 = vmatprep.subr.mxu0 0.0
    %v5963 = vand.u32 %v5731, 4294901760
    %v5964 = vsub.f32 %v5731, %v5963
    %5965 = vmatpush1.msra.mxu0 %v5964
    %5966 = vmatprep.subr.mxu0 0.0
    %v5967 = vand.u32 %v5730, 4294901760
    %v5968 = vsub.f32 %v5730, %v5967
    %5969 = vmatpush1.msra.mxu0 %v5968
    %5970 = vmatprep.subr.mxu0 0.0
    %v5971 = vand.u32 %v5729, 4294901760
    %v5972 = vsub.f32 %v5729, %v5971
    %5973 = vmatpush1.msra.mxu0 %v5972
    %5974 = vmatprep.subr.mxu0 0.0
    %v5975 = vand.u32 %v5728, 4294901760
    %v5976 = vsub.f32 %v5728, %v5975
    %5977 = vmatpush1.msra.mxu0 %v5976
    %5978 = vmatprep.subr.mxu0 0.0
    %v5979 = vand.u32 %v5727, 4294901760
    %v5980 = vsub.f32 %v5727, %v5979
    %5981 = vmatpush1.msra.mxu0 %v5980
    %5982 = vmatprep.subr.mxu0 0.0
    %v5983 = vand.u32 %v5726, 4294901760
    %v5984 = vsub.f32 %v5726, %v5983
    %5985 = vmatpush1.msra.mxu0 %v5984
    %5986 = vmatprep.subr.mxu0 0.0
    %5987 = vmatpush2.msra.mxu0 0.0
    %5988 = vmatprep.subr.mxu0 0.0
    %5989 = vmatpush2.msra.mxu0 0.0
    %5990 = vmatprep.subr.mxu0 0.0
    %5991 = vmatpush2.msra.mxu0 0.0
    %5992 = vmatprep.subr.mxu0 0.0
    %5993 = vmatpush2.msra.mxu0 0.0
    %5994 = vmatprep.subr.mxu0 0.0
    %5995 = vmatpush2.msra.mxu0 0.0
    %5996 = vmatprep.subr.mxu0 0.0
    %5997 = vmatpush2.msra.mxu0 0.0
    %5998 = vmatprep.subr.mxu0 0.0
    %5999 = vmatpush2.msra.mxu0 0.0
    %6000 = vmatprep.subr.mxu0 0.0
    %6001 = vmatpush2.msra.mxu0 0.0
    %6002 = vmatprep.subr.mxu0 0.0
    %6003 = vmatpush2.msra.mxu0 0.0
    %6004 = vmatprep.subr.mxu0 0.0
    %6005 = vmatpush2.msra.mxu0 0.0
    %6006 = vmatprep.subr.mxu0 0.0
    %6007 = vmatpush2.msra.mxu0 0.0
    %6008 = vmatprep.subr.mxu0 0.0
    %6009 = vmatpush2.msra.mxu0 0.0
    %6010 = vmatprep.subr.mxu0 0.0
    %6011 = vmatpush2.msra.mxu0 0.0
    %6012 = vmatprep.subr.mxu0 0.0
    %6013 = vmatpush2.msra.mxu0 0.0
    %6014 = vmatprep.subr.mxu0 0.0
    %6015 = vmatpush2.msra.mxu0 0.0
    %6016 = vmatprep.subr.mxu0 0.0
    %6017 = vmatpush2.msra.mxu0 0.0
    %6018 = vmatprep.mubr.f32.mxu0 0.0
    %v6019 = vand.u32 %v5742, 4294901760
    %v6020 = vsub.f32 %v5742, %v6019
    %6021 = vmatmul.mubr.f32.gmra.mxu0 %v6020
    %v6022 = vpop.f32.mrf.mxu0
    %v6023 = vadd.f32 %v5935, %v6022
    %v6024 = vpop.f32.mrf.mxu0
    %6025 = vdwg.mxu0
    %6026 = vmatprep.subr.mxu0 0.0
    %6027 = vmatpush1.msra.mxu0 0.0
    %6028 = vmatprep.subr.mxu0 0.0
    %6029 = vmatpush1.msra.mxu0 0.0
    %6030 = vmatprep.subr.mxu0 0.0
    %6031 = vmatpush1.msra.mxu0 0.0
    %6032 = vmatprep.subr.mxu0 0.0
    %6033 = vmatpush1.msra.mxu0 0.0
    %6034 = vmatprep.subr.mxu0 0.0
    %6035 = vmatpush1.msra.mxu0 0.0
    %6036 = vmatprep.subr.mxu0 0.0
    %6037 = vmatpush1.msra.mxu0 0.0
    %6038 = vmatprep.subr.mxu0 0.0
    %6039 = vmatpush1.msra.mxu0 0.0
    %6040 = vmatprep.subr.mxu0 0.0
    %6041 = vmatpush1.msra.mxu0 0.0
    %6042 = vmatprep.subr.mxu0 0.0
    %v6043 = vand.u32 %v5733, 4294901760
    %6044 = vmatpush1.msra.mxu0 %v6043
    %6045 = vmatprep.subr.mxu0 0.0
    %v6046 = vand.u32 %v5732, 4294901760
    %6047 = vmatpush1.msra.mxu0 %v6046
    %6048 = vmatprep.subr.mxu0 0.0
    %v6049 = vand.u32 %v5731, 4294901760
    %6050 = vmatpush1.msra.mxu0 %v6049
    %6051 = vmatprep.subr.mxu0 0.0
    %v6052 = vand.u32 %v5730, 4294901760
    %6053 = vmatpush1.msra.mxu0 %v6052
    %6054 = vmatprep.subr.mxu0 0.0
    %v6055 = vand.u32 %v5729, 4294901760
    %6056 = vmatpush1.msra.mxu0 %v6055
    %6057 = vmatprep.subr.mxu0 0.0
    %v6058 = vand.u32 %v5728, 4294901760
    %6059 = vmatpush1.msra.mxu0 %v6058
    %6060 = vmatprep.subr.mxu0 0.0
    %v6061 = vand.u32 %v5727, 4294901760
    %6062 = vmatpush1.msra.mxu0 %v6061
    %6063 = vmatprep.subr.mxu0 0.0
    %v6064 = vand.u32 %v5726, 4294901760
    %6065 = vmatpush1.msra.mxu0 %v6064
    %6066 = vmatprep.subr.mxu0 0.0
    %6067 = vmatpush2.msra.mxu0 0.0
    %6068 = vmatprep.subr.mxu0 0.0
    %6069 = vmatpush2.msra.mxu0 0.0
    %6070 = vmatprep.subr.mxu0 0.0
    %6071 = vmatpush2.msra.mxu0 0.0
    %6072 = vmatprep.subr.mxu0 0.0
    %6073 = vmatpush2.msra.mxu0 0.0
    %6074 = vmatprep.subr.mxu0 0.0
    %6075 = vmatpush2.msra.mxu0 0.0
    %6076 = vmatprep.subr.mxu0 0.0
    %6077 = vmatpush2.msra.mxu0 0.0
    %6078 = vmatprep.subr.mxu0 0.0
    %6079 = vmatpush2.msra.mxu0 0.0
    %6080 = vmatprep.subr.mxu0 0.0
    %6081 = vmatpush2.msra.mxu0 0.0
    %6082 = vmatprep.subr.mxu0 0.0
    %6083 = vmatpush2.msra.mxu0 0.0
    %6084 = vmatprep.subr.mxu0 0.0
    %6085 = vmatpush2.msra.mxu0 0.0
    %6086 = vmatprep.subr.mxu0 0.0
    %6087 = vmatpush2.msra.mxu0 0.0
    %6088 = vmatprep.subr.mxu0 0.0
    %6089 = vmatpush2.msra.mxu0 0.0
    %6090 = vmatprep.subr.mxu0 0.0
    %6091 = vmatpush2.msra.mxu0 0.0
    %6092 = vmatprep.subr.mxu0 0.0
    %6093 = vmatpush2.msra.mxu0 0.0
    %6094 = vmatprep.subr.mxu0 0.0
    %6095 = vmatpush2.msra.mxu0 0.0
    %6096 = vmatprep.subr.mxu0 0.0
    %6097 = vmatpush2.msra.mxu0 0.0
    %6098 = vmatprep.mubr.f32.mxu0 0.0
    %v6099 = vand.u32 %v5742, 4294901760
    %v6100 = vsub.f32 %v5742, %v6099
    %v6101 = vand.u32 %v6100, 4294901760
    %6102 = vmatmul.mubr.f32.gmra.mxu0 %v6101
    %v6103 = vpop.f32.mrf.mxu0
    %v6104 = vadd.f32 %v6023, %v6103
    %v6105 = vpop.f32.mrf.mxu0
    %6106 = vdwg.mxu0
    %6107 = vmatprep.subr.mxu0 0.0
    %6108 = vmatpush1.msra.mxu0 0.0
    %6109 = vmatprep.subr.mxu0 0.0
    %6110 = vmatpush1.msra.mxu0 0.0
    %6111 = vmatprep.subr.mxu0 0.0
    %6112 = vmatpush1.msra.mxu0 0.0
    %6113 = vmatprep.subr.mxu0 0.0
    %6114 = vmatpush1.msra.mxu0 0.0
    %6115 = vmatprep.subr.mxu0 0.0
    %6116 = vmatpush1.msra.mxu0 0.0
    %6117 = vmatprep.subr.mxu0 0.0
    %6118 = vmatpush1.msra.mxu0 0.0
    %6119 = vmatprep.subr.mxu0 0.0
    %6120 = vmatpush1.msra.mxu0 0.0
    %6121 = vmatprep.subr.mxu0 0.0
    %6122 = vmatpush1.msra.mxu0 0.0
    %6123 = vmatprep.subr.mxu0 0.0
    %v6124 = vand.u32 %v5733, 4294901760
    %v6125 = vsub.f32 %v5733, %v6124
    %v6126 = vand.u32 %v6125, 4294901760
    %6127 = vmatpush1.msra.mxu0 %v6126
    %6128 = vmatprep.subr.mxu0 0.0
    %v6129 = vand.u32 %v5732, 4294901760
    %v6130 = vsub.f32 %v5732, %v6129
    %v6131 = vand.u32 %v6130, 4294901760
    %6132 = vmatpush1.msra.mxu0 %v6131
    %6133 = vmatprep.subr.mxu0 0.0
    %v6134 = vand.u32 %v5731, 4294901760
    %v6135 = vsub.f32 %v5731, %v6134
    %v6136 = vand.u32 %v6135, 4294901760
    %6137 = vmatpush1.msra.mxu0 %v6136
    %6138 = vmatprep.subr.mxu0 0.0
    %v6139 = vand.u32 %v5730, 4294901760
    %v6140 = vsub.f32 %v5730, %v6139
    %v6141 = vand.u32 %v6140, 4294901760
    %6142 = vmatpush1.msra.mxu0 %v6141
    %6143 = vmatprep.subr.mxu0 0.0
    %v6144 = vand.u32 %v5729, 4294901760
    %v6145 = vsub.f32 %v5729, %v6144
    %v6146 = vand.u32 %v6145, 4294901760
    %6147 = vmatpush1.msra.mxu0 %v6146
    %6148 = vmatprep.subr.mxu0 0.0
    %v6149 = vand.u32 %v5728, 4294901760
    %v6150 = vsub.f32 %v5728, %v6149
    %v6151 = vand.u32 %v6150, 4294901760
    %6152 = vmatpush1.msra.mxu0 %v6151
    %6153 = vmatprep.subr.mxu0 0.0
    %v6154 = vand.u32 %v5727, 4294901760
    %v6155 = vsub.f32 %v5727, %v6154
    %v6156 = vand.u32 %v6155, 4294901760
    %6157 = vmatpush1.msra.mxu0 %v6156
    %6158 = vmatprep.subr.mxu0 0.0
    %v6159 = vand.u32 %v5726, 4294901760
    %v6160 = vsub.f32 %v5726, %v6159
    %v6161 = vand.u32 %v6160, 4294901760
    %6162 = vmatpush1.msra.mxu0 %v6161
    %6163 = vmatprep.subr.mxu0 0.0
    %6164 = vmatpush2.msra.mxu0 0.0
    %6165 = vmatprep.subr.mxu0 0.0
    %6166 = vmatpush2.msra.mxu0 0.0
    %6167 = vmatprep.subr.mxu0 0.0
    %6168 = vmatpush2.msra.mxu0 0.0
    %6169 = vmatprep.subr.mxu0 0.0
    %6170 = vmatpush2.msra.mxu0 0.0
    %6171 = vmatprep.subr.mxu0 0.0
    %6172 = vmatpush2.msra.mxu0 0.0
    %6173 = vmatprep.subr.mxu0 0.0
    %6174 = vmatpush2.msra.mxu0 0.0
    %6175 = vmatprep.subr.mxu0 0.0
    %6176 = vmatpush2.msra.mxu0 0.0
    %6177 = vmatprep.subr.mxu0 0.0
    %6178 = vmatpush2.msra.mxu0 0.0
    %6179 = vmatprep.subr.mxu0 0.0
    %6180 = vmatpush2.msra.mxu0 0.0
    %6181 = vmatprep.subr.mxu0 0.0
    %6182 = vmatpush2.msra.mxu0 0.0
    %6183 = vmatprep.subr.mxu0 0.0
    %6184 = vmatpush2.msra.mxu0 0.0
    %6185 = vmatprep.subr.mxu0 0.0
    %6186 = vmatpush2.msra.mxu0 0.0
    %6187 = vmatprep.subr.mxu0 0.0
    %6188 = vmatpush2.msra.mxu0 0.0
    %6189 = vmatprep.subr.mxu0 0.0
    %6190 = vmatpush2.msra.mxu0 0.0
    %6191 = vmatprep.subr.mxu0 0.0
    %6192 = vmatpush2.msra.mxu0 0.0
    %6193 = vmatprep.subr.mxu0 0.0
    %6194 = vmatpush2.msra.mxu0 0.0
    %6195 = vmatprep.mubr.f32.mxu0 0.0
    %v6196 = vand.u32 %v5742, 4294901760
    %6197 = vmatmul.mubr.f32.gmra.mxu0 %v6196
    %v6198 = vpop.f32.mrf.mxu0
    %v6199 = vadd.f32 %v6104, %v6198
    %v6200 = vpop.f32.mrf.mxu0
    %6201 = vdwg.mxu0
    %6202 = vmatprep.subr.mxu0 0.0
    %6203 = vmatpush1.msra.mxu0 0.0
    %6204 = vmatprep.subr.mxu0 0.0
    %6205 = vmatpush1.msra.mxu0 0.0
    %6206 = vmatprep.subr.mxu0 0.0
    %6207 = vmatpush1.msra.mxu0 0.0
    %6208 = vmatprep.subr.mxu0 0.0
    %6209 = vmatpush1.msra.mxu0 0.0
    %6210 = vmatprep.subr.mxu0 0.0
    %6211 = vmatpush1.msra.mxu0 0.0
    %6212 = vmatprep.subr.mxu0 0.0
    %6213 = vmatpush1.msra.mxu0 0.0
    %6214 = vmatprep.subr.mxu0 0.0
    %6215 = vmatpush1.msra.mxu0 0.0
    %6216 = vmatprep.subr.mxu0 0.0
    %6217 = vmatpush1.msra.mxu0 0.0
    %6218 = vmatprep.subr.mxu0 0.0
    %v6219 = vand.u32 %v5733, 4294901760
    %6220 = vmatpush1.msra.mxu0 %v6219
    %6221 = vmatprep.subr.mxu0 0.0
    %v6222 = vand.u32 %v5732, 4294901760
    %6223 = vmatpush1.msra.mxu0 %v6222
    %6224 = vmatprep.subr.mxu0 0.0
    %v6225 = vand.u32 %v5731, 4294901760
    %6226 = vmatpush1.msra.mxu0 %v6225
    %6227 = vmatprep.subr.mxu0 0.0
    %v6228 = vand.u32 %v5730, 4294901760
    %6229 = vmatpush1.msra.mxu0 %v6228
    %6230 = vmatprep.subr.mxu0 0.0
    %v6231 = vand.u32 %v5729, 4294901760
    %6232 = vmatpush1.msra.mxu0 %v6231
    %6233 = vmatprep.subr.mxu0 0.0
    %v6234 = vand.u32 %v5728, 4294901760
    %6235 = vmatpush1.msra.mxu0 %v6234
    %6236 = vmatprep.subr.mxu0 0.0
    %v6237 = vand.u32 %v5727, 4294901760
    %6238 = vmatpush1.msra.mxu0 %v6237
    %6239 = vmatprep.subr.mxu0 0.0
    %v6240 = vand.u32 %v5726, 4294901760
    %6241 = vmatpush1.msra.mxu0 %v6240
    %6242 = vmatprep.subr.mxu0 0.0
    %6243 = vmatpush2.msra.mxu0 0.0
    %6244 = vmatprep.subr.mxu0 0.0
    %6245 = vmatpush2.msra.mxu0 0.0
    %6246 = vmatprep.subr.mxu0 0.0
    %6247 = vmatpush2.msra.mxu0 0.0
    %6248 = vmatprep.subr.mxu0 0.0
    %6249 = vmatpush2.msra.mxu0 0.0
    %6250 = vmatprep.subr.mxu0 0.0
    %6251 = vmatpush2.msra.mxu0 0.0
    %6252 = vmatprep.subr.mxu0 0.0
    %6253 = vmatpush2.msra.mxu0 0.0
    %6254 = vmatprep.subr.mxu0 0.0
    %6255 = vmatpush2.msra.mxu0 0.0
    %6256 = vmatprep.subr.mxu0 0.0
    %6257 = vmatpush2.msra.mxu0 0.0
    %6258 = vmatprep.subr.mxu0 0.0
    %6259 = vmatpush2.msra.mxu0 0.0
    %6260 = vmatprep.subr.mxu0 0.0
    %6261 = vmatpush2.msra.mxu0 0.0
    %6262 = vmatprep.subr.mxu0 0.0
    %6263 = vmatpush2.msra.mxu0 0.0
    %6264 = vmatprep.subr.mxu0 0.0
    %6265 = vmatpush2.msra.mxu0 0.0
    %6266 = vmatprep.subr.mxu0 0.0
    %6267 = vmatpush2.msra.mxu0 0.0
    %6268 = vmatprep.subr.mxu0 0.0
    %6269 = vmatpush2.msra.mxu0 0.0
    %6270 = vmatprep.subr.mxu0 0.0
    %6271 = vmatpush2.msra.mxu0 0.0
    %6272 = vmatprep.subr.mxu0 0.0
    %6273 = vmatpush2.msra.mxu0 0.0
    %6274 = vmatprep.mubr.f32.mxu0 0.0
    %v6275 = vand.u32 %v5742, 4294901760
    %6276 = vmatmul.mubr.f32.gmra.mxu0 %v6275
    %v6277 = vpop.f32.mrf.mxu0
    %v6278 = vadd.f32 %v6199, %v6277
    %v6279 = vpop.f32.mrf.mxu0
    %6280 = vdwg.mxu0
    %vm6281 = vcmask 17408
    %6282 = vst.msk [vmem:[#allocation5] sm:$0x3] %vm6281, %v6278
    // Predicated region
    $region30: #{forward.1} parent=1 // pred_check
      _
    $region31: #{forward.1} parent=1 // pred_check_branch
      %6284 = sbr.rel (0) target = $region33
    $region32: #{forward.1} parent=1 // pred_region
      %s6286 = ssub.s32 32, 32
      %6287 = vsyncadd [#allocation4], %s6286
      %s6289 = sshll.u32 [#allocation5], 4
      %s6290 = int_to_ptr.vmem [resolvable:$true] %s6289
      %6292 = dma.vmem_to_hbm [thread:$0]  %s6290, 32, %s6, [#allocation4]
    $region33: #{forward.1} parent=1 // pred_fallthru
      _
    // Predicated region
    $region34: #{forward.1} parent=1 // pred_check
      _
    $region35: #{forward.1} parent=1 // pred_check_branch
      %6294 = sbr.rel (0) target = $region37
    $region36: #{forward.1} parent=1 // pred_region
      %6295 = dma.done [#allocation4], 32
    $region37: #{forward.1} parent=1 // pred_fallthru
      _
    %6296 = vsyncpa [#allocation3], 1
    %6297 = vsyncpa [#allocation4], 1

</llo_original>
